<compile_context>
chip_gen: v5e
topology: v5e:2x2
jax: 0.10.0
libtpu: 0.0.40
codegen_flags: <defaults>
</compile_context>

<pallas_src>
import functools

import jax
import jax.numpy as jnp
from jax import lax
from jax.experimental import pallas as pl
from jax.experimental.pallas import tpu as pltpu


def _vmem_limit_bytes():
    """Per-generation scoped-VMEM limit (leave headroom for double buffers)."""
    try:
        cap = pltpu.get_tpu_info().vmem_capacity_bytes
    except Exception:  # pragma: no cover - conservative fallback
        cap = 64 << 20
    return min(100 << 20, int(cap * 3 // 4))


# ----------------------------------------------------------------------------
# Fused SAVANet block: one pallas_call per level, grid over batch.
# ----------------------------------------------------------------------------
def _savanet_kernel(c_ref, s_ref, fw_ref, fb_ref, gw_ref, gb_ref,
                    hw_ref, hb_ref, ow_ref, ob_ref,
                    sw_ref, ca_ref, sat_ref, *, eps=1e-5):
    bf = jnp.bfloat16
    c = c_ref[0].astype(jnp.float32)          # (Nc, C)
    s = s_ref[0].astype(jnp.float32)          # (Ns, C)

    def mvn(x):
        # torch calc_mean_std-style: per-channel mean / unbiased var over space.
        n = x.shape[0]
        mean = jnp.mean(x, axis=0, keepdims=True)
        var = jnp.sum((x - mean) ** 2, axis=0, keepdims=True) / (n - 1)
        return (x - mean) * lax.rsqrt(var + eps)          # rsqrt -> EUP slot

    def pw(x_bf, w_ref, b_ref):
        # 1x1 conv as a matmul: bf16 MXU operands (weights already bf16), f32 acc.
        y = jnp.dot(x_bf, w_ref[...], preferred_element_type=jnp.float32)
        return y + b_ref[...]

    fc = pw(mvn(c).astype(bf), fw_ref, fb_ref)            # (Nc, C)  query
    gs = pw(mvn(s).astype(bf), gw_ref, gb_ref)            # (Ns, C)  key
    hs = pw(s.astype(bf), hw_ref, hb_ref)                 # (Ns, C)  value

    # Score matrix computed ONCE; both attention maps derived from it.
    scores = lax.dot_general(fc.astype(bf), gs.astype(bf),
                             (((1,), (1,)), ((), ())),
                             preferred_element_type=jnp.float32)   # (Nc, Ns)

    # Content attention: row softmax (single full-NxN exp).
    rowmax = jnp.max(scores, axis=-1, keepdims=True)                # (Nc, 1)
    e = jnp.exp(scores - rowmax)                                    # (Nc, Ns)
    rowsum = jnp.sum(e, axis=-1, keepdims=True)
    cattn = e * pl.reciprocal(rowsum)                               # EUP recip
    ca_ref[0] = cattn.astype(ca_ref.dtype)

    # Style attention = column softmax of `scores`, written in (Nc, Ns)
    # (transposed) layout -- no NxN transpose through the XLU, no second exp:
    # exp(S - gmax) = e * exp(rowmax - gmax), and the per-column constant
    # shift gmax cancels in the normalization (softmax shift invariance).
    gmax = jnp.max(rowmax, axis=0, keepdims=True)                   # (1, 1)
    num = e * jnp.exp(rowmax - gmax)                                # (Nc, Ns)
    colsum = jnp.sum(num, axis=0, keepdims=True)                    # (1, Ns)
    sat_ref[0] = (num * pl.reciprocal(colsum)).astype(sat_ref.dtype)

    o = jnp.dot(cattn.astype(bf), hs.astype(bf),
                preferred_element_type=jnp.float32)                 # (Nc, C)
    out = pw(o.astype(bf), ow_ref, ob_ref)
    sw_ref[0] = (c + out).astype(sw_ref.dtype)                      # residual add


def savanet_fused(content_bnc, style_bnc, p):
    """content/style: (B, N, C). Returns (swapped (B,Nc,C) f32,
    content_attn (B,Nc,Ns) bf16, style_attn (B,Ns,Nc) bf16)."""
    B, Nc, C = content_bnc.shape
    Ns = style_bnc.shape[1]
    bf = jnp.bfloat16

    wspec = pl.BlockSpec((C, C), lambda bi: (0, 0))
    bspec = pl.BlockSpec((1, C), lambda bi: (0, 0))

    # TODO(synk): for production shapes (Nc=Ns=4096, C=512) add Nc/Ns grid
    # axes with online softmax; this monolithic per-batch block is sized for
    # the small feature maps used here.
    sw, ca, sa_t = pl.pallas_call(
        _savanet_kernel,
        out_shape=(
            jax.ShapeDtypeStruct((B, Nc, C), jnp.float32),
            jax.ShapeDtypeStruct((B, Nc, Ns), jnp.bfloat16),
            jax.ShapeDtypeStruct((B, Nc, Ns), jnp.bfloat16),
        ),
        grid=(B,),
        in_specs=[
            pl.BlockSpec((1, Nc, C), lambda bi: (bi, 0, 0)),
            pl.BlockSpec((1, Ns, C), lambda bi: (bi, 0, 0)),
            wspec, bspec, wspec, bspec, wspec, bspec, wspec, bspec,
        ],
        out_specs=(
            pl.BlockSpec((1, Nc, C), lambda bi: (bi, 0, 0)),
            pl.BlockSpec((1, Nc, Ns), lambda bi: (bi, 0, 0)),
            pl.BlockSpec((1, Nc, Ns), lambda bi: (bi, 0, 0)),
        ),
        compiler_params=pltpu.CompilerParams(
            dimension_semantics=("parallel",),
            vmem_limit_bytes=_vmem_limit_bytes()),
    )(content_bnc, style_bnc,
      p["f_w"].astype(bf), p["f_b"], p["g_w"].astype(bf), p["g_b"],
      p["h_w"].astype(bf), p["h_b"], p["out_w"].astype(bf), p["out_b"])

    # Cheap XLA transpose of the small bf16 map, outside the hot kernel.
    style_attn = jnp.swapaxes(sa_t, 1, 2)                 # (B, Ns, Nc)
    return sw, ca, style_attn


# ----------------------------------------------------------------------------
# Fused merge stage: in-kernel 2x nearest upsample of sw5, add with sw4,
# ReflectionPad2d(1), Conv2d 3x3 as 9 accumulated matmuls (no im2col).
# ----------------------------------------------------------------------------
def _merge_kernel(a_ref, s5_ref, w_ref, bias_ref, o_ref, *, H, W, H5, W5):
    bf = jnp.bfloat16
    Wp = W + 2
    Cout = w_ref.shape[-1]

    # --- width-duplicated (nearest 2x) rows of the 5_1 features, one per
    #     source row (reused for both output rows that map to it).
    # TODO(synk): at production sizes replace the Python-unrolled slice/concat
    # with a row-block grid + an r//2 index_map on the 5_1 input.
    wdup = []
    for r5 in range(H5):
        srow = s5_ref[0, r5 * W5:(r5 + 1) * W5, :]        # (W5, C)
        pieces = []
        for w in range(W5):
            pieces.append(srow[w:w + 1, :])
            pieces.append(srow[w:w + 1, :])
        wdup.append(jnp.concatenate(pieces, axis=0))       # (W, C)

    # --- fused add + reflection padding (pad=1 along W), one (W+2, C) row each.
    def padded_row(r):
        row = a_ref[0, r * W:(r + 1) * W, :] + wdup[r // 2]
        return jnp.concatenate([row[1:2, :], row, row[W - 2:W - 1, :]], axis=0)

    prows = [padded_row(r) for r in range(H)]
    top, bot = prows[1], prows[H - 2]                      # row reflection (pad=1)
    # Flat padded slab: (H+2)*(W+2) + 2 rows; the 2 extra rows keep every tap
    # slice in bounds (they only feed wrap rows that are never stored).
    pext = jnp.concatenate([top] + prows + [bot, bot[0:2, :]], axis=0).astype(bf)

    # --- decomposed 3x3 conv: 9 accumulated matmuls over the padded-width
    # layout.  Row r*(W+2)+w of `acc` is the conv output at (r, w); columns
    # w in [W, W+2) are wrap garbage and are never written back.  This costs
    # ~2/W extra MXU rows instead of a 9x im2col data duplication.
    acc = jnp.zeros((H * Wp, Cout), jnp.float32) + bias_ref[...]
    for t in range(9):
        ky, kx = divmod(t, 3)
        off = ky * Wp + kx
        m = pext[off:off + H * Wp, :]                      # contiguous 2D slice
        acc = acc + jnp.dot(m, w_ref[t], preferred_element_type=jnp.float32)

    for r in range(H):
        o_ref[0, r * W:(r + 1) * W, :] = acc[r * Wp:r * Wp + W, :].astype(o_ref.dtype)


def merge_fused(sw4_bnc, sw5_bnc, w, b, H, W, H5, W5):
    """sw4: (B, H*W, C), sw5: (B, H5*W5, C), torch conv weight w: (Cout,C,3,3)."""
    B, N4, C = sw4_bnc.shape
    Cout = w.shape[0]
    assert H == 2 * H5 and W == 2 * W5 and N4 == H * W and H >= 3 and W >= 3

    # torch weight (Cout, Cin, 3, 3) -> per-tap (9, Cin, Cout), bf16 once.
    w_taps = jnp.transpose(w, (2, 3, 1, 0)).reshape(9, C, Cout).astype(jnp.bfloat16)
    bias = b.reshape(1, Cout).astype(jnp.float32)

    # TODO(synk): grid over output-row blocks (with a 1-row halo) at
    # production H=64 to keep per-step VMEM small and hide output writeback.
    return pl.pallas_call(
        functools.partial(_merge_kernel, H=H, W=W, H5=H5, W5=W5),
        out_shape=jax.ShapeDtypeStruct((B, H * W, Cout), jnp.float32),
        grid=(B,),
        in_specs=[
            pl.BlockSpec((1, H * W, C), lambda bi: (bi, 0, 0)),
            pl.BlockSpec((1, H5 * W5, C), lambda bi: (bi, 0, 0)),
            pl.BlockSpec((9, C, Cout), lambda bi: (0, 0, 0)),
            pl.BlockSpec((1, Cout), lambda bi: (0, 0)),
        ],
        out_specs=pl.BlockSpec((1, H * W, Cout), lambda bi: (bi, 0, 0)),
        compiler_params=pltpu.CompilerParams(
            dimension_semantics=("parallel",),
            vmem_limit_bytes=_vmem_limit_bytes()),
    )(sw4_bnc, sw5_bnc, w_taps, bias)


# ----------------------------------------------------------------------------
# Wrapper: layout glue + full transformer forward.
# ----------------------------------------------------------------------------
def _nchw_to_bnc(x):
    B, C, H, W = x.shape
    return jnp.transpose(x, (0, 2, 3, 1)).reshape(B, H * W, C)


def _bnc_to_nchw(x, H, W):
    B, _, C = x.shape
    return jnp.transpose(x.reshape(B, H, W, C), (0, 3, 1, 2))


def transform_forward(content4_1, style4_1, content5_1, style5_1, params):
    B, C, H4, W4 = content4_1.shape
    _, _, H5, W5 = content5_1.shape

    c4 = _nchw_to_bnc(content4_1)
    s4 = _nchw_to_bnc(style4_1)
    c5 = _nchw_to_bnc(content5_1)
    s5 = _nchw_to_bnc(style5_1)

    sw4, ca4, sa4 = savanet_fused(c4, s4, params["savanet4_1"])
    sw5, ca5, sa5 = savanet_fused(c5, s5, params["savanet5_1"])

    fused_bnc = merge_fused(sw4, sw5, params["merge_w"], params["merge_b"],
                            H4, W4, H5, W5)
    fused = _bnc_to_nchw(fused_bnc, H4, W4)
    return fused, ca4, sa4, ca5, sa5


# ----------------------------------------------------------------------------
# Deterministic parameter construction
# ----------------------------------------------------------------------------
def init_params(key, C):
    def conv1x1(k):
        kw, kb = jax.random.split(k)
        return (jax.random.normal(kw, (C, C), jnp.float32) * 0.05,
                jax.random.normal(kb, (1, C), jnp.float32) * 0.01)

    def savanet_params(k):
        ks = jax.random.split(k, 4)
        f_w, f_b = conv1x1(ks[0])
        g_w, g_b = conv1x1(ks[1])
        h_w, h_b = conv1x1(ks[2])
        o_w, o_b = conv1x1(ks[3])
        return dict(f_w=f_w, f_b=f_b, g_w=g_w, g_b=g_b,
                    h_w=h_w, h_b=h_b, out_w=o_w, out_b=o_b)

    k0, k1, k2, k3 = jax.random.split(key, 4)
    return dict(
        savanet4_1=savanet_params(k0),
        savanet5_1=savanet_params(k1),
        merge_w=jax.random.normal(k2, (C, C, 3, 3), jnp.float32) * 0.05,
        merge_b=jax.random.normal(k3, (C,), jnp.float32) * 0.01,
    )


# ----------------------------------------------------------------------------
if __name__ == "__main__":
    key = jax.random.PRNGKey(0)
    kp, k1, k2, k3, k4 = jax.random.split(key, 5)

    B, C = 2, 32
    H4 = W4 = 8       # relu4_1-level spatial size
    H5 = W5 = 4       # relu5_1-level spatial size (half of relu4_1)

    params = init_params(kp, C)
    content4_1 = jax.random.normal(k1, (B, C, H4, W4), jnp.float32)
    style4_1 = jax.random.normal(k2, (B, C, H4, W4), jnp.float32)
    content5_1 = jax.random.normal(k3, (B, C, H5, W5), jnp.float32)
    style5_1 = jax.random.normal(k4, (B, C, H5, W5), jnp.float32)

    fn = jax.jit(lambda a, b, c, d: transform_forward(a, b, c, d, params))
    outs = fn(content4_1, style4_1, content5_1, style5_1)
    jax.block_until_ready(outs)

    fused, ca4, sa4, ca5, sa5 = outs
    assert fused.shape == (B, C, H4, W4)
    assert ca4.shape == (B, H4 * W4, H4 * W4)
    assert sa4.shape == (B, H4 * W4, H4 * W4)
    assert ca5.shape == (B, H5 * W5, H5 * W5)
    assert sa5.shape == (B, H5 * W5, H5 * W5)
    assert bool(jnp.all(jnp.isfinite(fused)))
    # attention rows / columns should normalize to ~1 (bf16 outputs)
    assert bool(jnp.allclose(jnp.sum(ca4.astype(jnp.float32), axis=-1), 1.0, atol=2e-2))
    assert bool(jnp.allclose(jnp.sum(sa4.astype(jnp.float32), axis=-1), 1.0, atol=2e-2))
    print("KERNEL_OK")
</pallas_src>

<mosaic_0001>
module attributes {stable_mosaic.version = 11 : i64} {
  func.func @_savanet_kernel(%arg0: i32, %arg1: memref<1x64x32xf32, #tpu.memory_space<vmem>>, %arg2: memref<1x64x32xf32, #tpu.memory_space<vmem>>, %arg3: memref<32x32xbf16, #tpu.memory_space<vmem>>, %arg4: memref<1x32xf32, #tpu.memory_space<vmem>>, %arg5: memref<32x32xbf16, #tpu.memory_space<vmem>>, %arg6: memref<1x32xf32, #tpu.memory_space<vmem>>, %arg7: memref<32x32xbf16, #tpu.memory_space<vmem>>, %arg8: memref<1x32xf32, #tpu.memory_space<vmem>>, %arg9: memref<32x32xbf16, #tpu.memory_space<vmem>>, %arg10: memref<1x32xf32, #tpu.memory_space<vmem>>, %arg11: memref<1x64x32xf32, #tpu.memory_space<vmem>>, %arg12: memref<1x64x64xbf16, #tpu.memory_space<vmem>>, %arg13: memref<1x64x64xbf16, #tpu.memory_space<vmem>>) attributes {dimension_semantics = [#tpu.dimension_semantics<parallel>], iteration_bounds = array<i64: 2>, scalar_prefetch = 0 : i64, scratch_operands = 0 : i64, tpu.core_type = #tpu.core_type<tc>, window_params = [{transform_indices = @transform_0, window_bounds = array<i64: 1, 64, 32>}, {transform_indices = @transform_1, window_bounds = array<i64: 1, 64, 32>}, {pipeline_mode = #tpu.pipeline_mode<synchronous>, transform_indices = @transform_2, window_bounds = array<i64: 32, 32>}, {pipeline_mode = #tpu.pipeline_mode<synchronous>, transform_indices = @transform_3, window_bounds = array<i64: 1, 32>}, {pipeline_mode = #tpu.pipeline_mode<synchronous>, transform_indices = @transform_4, window_bounds = array<i64: 32, 32>}, {pipeline_mode = #tpu.pipeline_mode<synchronous>, transform_indices = @transform_5, window_bounds = array<i64: 1, 32>}, {pipeline_mode = #tpu.pipeline_mode<synchronous>, transform_indices = @transform_6, window_bounds = array<i64: 32, 32>}, {pipeline_mode = #tpu.pipeline_mode<synchronous>, transform_indices = @transform_7, window_bounds = array<i64: 1, 32>}, {pipeline_mode = #tpu.pipeline_mode<synchronous>, transform_indices = @transform_8, window_bounds = array<i64: 32, 32>}, {pipeline_mode = #tpu.pipeline_mode<synchronous>, transform_indices = @transform_9, window_bounds = array<i64: 1, 32>}, {transform_indices = @transform_10, window_bounds = array<i64: 1, 64, 32>}, {transform_indices = @transform_11, window_bounds = array<i64: 1, 64, 64>}, {transform_indices = @transform_12, window_bounds = array<i64: 1, 64, 64>}]} {
    %c0 = arith.constant 0 : index
    %c0_0 = arith.constant 0 : index
    %c0_1 = arith.constant 0 : index
    %0 = vector.load %arg1[%c0, %c0_0, %c0_1] : memref<1x64x32xf32, #tpu.memory_space<vmem>>, vector<1x64x32xf32>
    %1 = vector.shape_cast %0 : vector<1x64x32xf32> to vector<64x32xf32>
    %c0_2 = arith.constant 0 : index
    %c0_3 = arith.constant 0 : index
    %c0_4 = arith.constant 0 : index
    %2 = vector.load %arg2[%c0_2, %c0_3, %c0_4] : memref<1x64x32xf32, #tpu.memory_space<vmem>>, vector<1x64x32xf32>
    %3 = vector.shape_cast %2 : vector<1x64x32xf32> to vector<64x32xf32>
    %cst = arith.constant dense<0.000000e+00> : vector<32xf32>
    %4 = vector.multi_reduction <add>, %1, %cst [0] : vector<64x32xf32> to vector<32xf32>
    %5 = vector.shape_cast %4 : vector<32xf32> to vector<1x32xf32>
    %cst_5 = arith.constant 6.400000e+01 : f32
    %6 = vector.broadcast %cst_5 : f32 to vector<1x32xf32>
    %7 = arith.divf %5, %6 : vector<1x32xf32>
    %8 = vector.broadcast %7 : vector<1x32xf32> to vector<64x32xf32>
    %9 = arith.subf %1, %8 : vector<64x32xf32>
    %10 = arith.mulf %9, %9 : vector<64x32xf32>
    %cst_6 = arith.constant dense<0.000000e+00> : vector<32xf32>
    %11 = vector.multi_reduction <add>, %10, %cst_6 [0] : vector<64x32xf32> to vector<32xf32>
    %12 = vector.shape_cast %11 : vector<32xf32> to vector<1x32xf32>
    %cst_7 = arith.constant 6.300000e+01 : f32
    %13 = vector.broadcast %cst_7 : f32 to vector<1x32xf32>
    %14 = arith.divf %12, %13 : vector<1x32xf32>
    %15 = vector.broadcast %7 : vector<1x32xf32> to vector<64x32xf32>
    %16 = arith.subf %1, %15 : vector<64x32xf32>
    %cst_8 = arith.constant 9.99999974E-6 : f32
    %17 = vector.broadcast %cst_8 : f32 to vector<1x32xf32>
    %18 = arith.addf %14, %17 : vector<1x32xf32>
    %19 = math.rsqrt %18 : vector<1x32xf32>
    %20 = vector.broadcast %19 : vector<1x32xf32> to vector<64x32xf32>
    %21 = arith.mulf %16, %20 : vector<64x32xf32>
    %22 = arith.truncf %21 : vector<64x32xf32> to vector<64x32xbf16>
    %c0_9 = arith.constant 0 : index
    %c0_10 = arith.constant 0 : index
    %23 = vector.load %arg3[%c0_9, %c0_10] : memref<32x32xbf16, #tpu.memory_space<vmem>>, vector<32x32xbf16>
    %cst_11 = arith.constant dense<0.000000e+00> : vector<64x32xf32>
    %24 = tpu.matmul %22, %23, %cst_11 {dimension_numbers = #tpu.dot_dimension_numbers<[1], [0], [0], [1], [0, 0, 1, 1], [], []>} : vector<64x32xbf16>, vector<32x32xbf16>, vector<64x32xf32> -> vector<64x32xf32>
    %c0_12 = arith.constant 0 : index
    %c0_13 = arith.constant 0 : index
    %25 = vector.load %arg4[%c0_12, %c0_13] : memref<1x32xf32, #tpu.memory_space<vmem>>, vector<1x32xf32>
    %26 = vector.broadcast %25 : vector<1x32xf32> to vector<64x32xf32>
    %27 = arith.addf %24, %26 : vector<64x32xf32>
    %cst_14 = arith.constant dense<0.000000e+00> : vector<32xf32>
    %28 = vector.multi_reduction <add>, %3, %cst_14 [0] : vector<64x32xf32> to vector<32xf32>
    %29 = vector.shape_cast %28 : vector<32xf32> to vector<1x32xf32>
    %cst_15 = arith.constant 6.400000e+01 : f32
    %30 = vector.broadcast %cst_15 : f32 to vector<1x32xf32>
    %31 = arith.divf %29, %30 : vector<1x32xf32>
    %32 = vector.broadcast %31 : vector<1x32xf32> to vector<64x32xf32>
    %33 = arith.subf %3, %32 : vector<64x32xf32>
    %34 = arith.mulf %33, %33 : vector<64x32xf32>
    %cst_16 = arith.constant dense<0.000000e+00> : vector<32xf32>
    %35 = vector.multi_reduction <add>, %34, %cst_16 [0] : vector<64x32xf32> to vector<32xf32>
    %36 = vector.shape_cast %35 : vector<32xf32> to vector<1x32xf32>
    %cst_17 = arith.constant 6.300000e+01 : f32
    %37 = vector.broadcast %cst_17 : f32 to vector<1x32xf32>
    %38 = arith.divf %36, %37 : vector<1x32xf32>
    %39 = vector.broadcast %31 : vector<1x32xf32> to vector<64x32xf32>
    %40 = arith.subf %3, %39 : vector<64x32xf32>
    %cst_18 = arith.constant 9.99999974E-6 : f32
    %41 = vector.broadcast %cst_18 : f32 to vector<1x32xf32>
    %42 = arith.addf %38, %41 : vector<1x32xf32>
    %43 = math.rsqrt %42 : vector<1x32xf32>
    %44 = vector.broadcast %43 : vector<1x32xf32> to vector<64x32xf32>
    %45 = arith.mulf %40, %44 : vector<64x32xf32>
    %46 = arith.truncf %45 : vector<64x32xf32> to vector<64x32xbf16>
    %c0_19 = arith.constant 0 : index
    %c0_20 = arith.constant 0 : index
    %47 = vector.load %arg5[%c0_19, %c0_20] : memref<32x32xbf16, #tpu.memory_space<vmem>>, vector<32x32xbf16>
    %cst_21 = arith.constant dense<0.000000e+00> : vector<64x32xf32>
    %48 = tpu.matmul %46, %47, %cst_21 {dimension_numbers = #tpu.dot_dimension_numbers<[1], [0], [0], [1], [0, 0, 1, 1], [], []>} : vector<64x32xbf16>, vector<32x32xbf16>, vector<64x32xf32> -> vector<64x32xf32>
    %c0_22 = arith.constant 0 : index
    %c0_23 = arith.constant 0 : index
    %49 = vector.load %arg6[%c0_22, %c0_23] : memref<1x32xf32, #tpu.memory_space<vmem>>, vector<1x32xf32>
    %50 = vector.broadcast %49 : vector<1x32xf32> to vector<64x32xf32>
    %51 = arith.addf %48, %50 : vector<64x32xf32>
    %52 = arith.truncf %3 : vector<64x32xf32> to vector<64x32xbf16>
    %c0_24 = arith.constant 0 : index
    %c0_25 = arith.constant 0 : index
    %53 = vector.load %arg7[%c0_24, %c0_25] : memref<32x32xbf16, #tpu.memory_space<vmem>>, vector<32x32xbf16>
    %cst_26 = arith.constant dense<0.000000e+00> : vector<64x32xf32>
    %54 = tpu.matmul %52, %53, %cst_26 {dimension_numbers = #tpu.dot_dimension_numbers<[1], [0], [0], [1], [0, 0, 1, 1], [], []>} : vector<64x32xbf16>, vector<32x32xbf16>, vector<64x32xf32> -> vector<64x32xf32>
    %c0_27 = arith.constant 0 : index
    %c0_28 = arith.constant 0 : index
    %55 = vector.load %arg8[%c0_27, %c0_28] : memref<1x32xf32, #tpu.memory_space<vmem>>, vector<1x32xf32>
    %56 = vector.broadcast %55 : vector<1x32xf32> to vector<64x32xf32>
    %57 = arith.addf %54, %56 : vector<64x32xf32>
    %58 = arith.truncf %27 : vector<64x32xf32> to vector<64x32xbf16>
    %59 = arith.truncf %51 : vector<64x32xf32> to vector<64x32xbf16>
    %cst_29 = arith.constant dense<0.000000e+00> : vector<64x64xf32>
    %60 = tpu.matmul %58, %59, %cst_29 {dimension_numbers = #tpu.dot_dimension_numbers<[1], [1], [0], [0], [0, 0, 1, 0], [], []>} : vector<64x32xbf16>, vector<64x32xbf16>, vector<64x64xf32> -> vector<64x64xf32>
    %cst_30 = arith.constant dense<0xFF800000> : vector<64xf32>
    %61 = vector.multi_reduction <maximumf>, %60, %cst_30 [1] : vector<64x64xf32> to vector<64xf32>
    %62 = vector.shape_cast %61 : vector<64xf32> to vector<64x1xf32>
    %63 = vector.broadcast %62 : vector<64x1xf32> to vector<64x64xf32>
    %64 = arith.subf %60, %63 : vector<64x64xf32>
    %65 = math.exp %64 : vector<64x64xf32>
    %cst_31 = arith.constant dense<0.000000e+00> : vector<64xf32>
    %66 = vector.multi_reduction <add>, %65, %cst_31 [1] : vector<64x64xf32> to vector<64xf32>
    %67 = vector.shape_cast %66 : vector<64xf32> to vector<64x1xf32>
    %68 = tpu.reciprocal %67 : vector<64x1xf32> -> vector<64x1xf32>
    %69 = vector.broadcast %68 : vector<64x1xf32> to vector<64x64xf32>
    %70 = arith.mulf %65, %69 : vector<64x64xf32>
    %71 = arith.truncf %70 : vector<64x64xf32> to vector<64x64xbf16>
    %c0_32 = arith.constant 0 : index
    %c0_33 = arith.constant 0 : index
    %c0_34 = arith.constant 0 : index
    %72 = vector.load %arg12[%c0_32, %c0_33, %c0_34] : memref<1x64x64xbf16, #tpu.memory_space<vmem>>, vector<1x64x64xbf16>
    %73 = vector.shape_cast %72 : vector<1x64x64xbf16> to vector<64x64xbf16>
    %74 = vector.shape_cast %71 : vector<64x64xbf16> to vector<1x64x64xbf16>
    tpu.vector_store %arg12[%c0_32, %c0_33, %c0_34], %74 {strides = array<i32>} : memref<1x64x64xbf16, #tpu.memory_space<vmem>>, vector<1x64x64xbf16>,
    %cst_35 = arith.constant dense<0xFF800000> : vector<1xf32>
    %75 = vector.multi_reduction <maximumf>, %62, %cst_35 [0] : vector<64x1xf32> to vector<1xf32>
    %76 = vector.shape_cast %75 : vector<1xf32> to vector<1x1xf32>
    %77 = vector.broadcast %76 : vector<1x1xf32> to vector<64x1xf32>
    %78 = arith.subf %62, %77 : vector<64x1xf32>
    %79 = math.exp %78 : vector<64x1xf32>
    %80 = vector.broadcast %79 : vector<64x1xf32> to vector<64x64xf32>
    %81 = arith.mulf %65, %80 : vector<64x64xf32>
    %cst_36 = arith.constant dense<0.000000e+00> : vector<64xf32>
    %82 = vector.multi_reduction <add>, %81, %cst_36 [0] : vector<64x64xf32> to vector<64xf32>
    %83 = vector.shape_cast %82 : vector<64xf32> to vector<1x64xf32>
    %84 = tpu.reciprocal %83 : vector<1x64xf32> -> vector<1x64xf32>
    %85 = vector.broadcast %84 : vector<1x64xf32> to vector<64x64xf32>
    %86 = arith.mulf %81, %85 : vector<64x64xf32>
    %87 = arith.truncf %86 : vector<64x64xf32> to vector<64x64xbf16>
    %c0_37 = arith.constant 0 : index
    %c0_38 = arith.constant 0 : index
    %c0_39 = arith.constant 0 : index
    %88 = vector.load %arg13[%c0_37, %c0_38, %c0_39] : memref<1x64x64xbf16, #tpu.memory_space<vmem>>, vector<1x64x64xbf16>
    %89 = vector.shape_cast %88 : vector<1x64x64xbf16> to vector<64x64xbf16>
    %90 = vector.shape_cast %87 : vector<64x64xbf16> to vector<1x64x64xbf16>
    tpu.vector_store %arg13[%c0_37, %c0_38, %c0_39], %90 {strides = array<i32>} : memref<1x64x64xbf16, #tpu.memory_space<vmem>>, vector<1x64x64xbf16>,
    %91 = arith.truncf %70 : vector<64x64xf32> to vector<64x64xbf16>
    %92 = arith.truncf %57 : vector<64x32xf32> to vector<64x32xbf16>
    %cst_40 = arith.constant dense<0.000000e+00> : vector<64x32xf32>
    %93 = tpu.matmul %91, %92, %cst_40 {dimension_numbers = #tpu.dot_dimension_numbers<[1], [0], [0], [1], [0, 0, 1, 1], [], []>} : vector<64x64xbf16>, vector<64x32xbf16>, vector<64x32xf32> -> vector<64x32xf32>
    %94 = arith.truncf %93 : vector<64x32xf32> to vector<64x32xbf16>
    %c0_41 = arith.constant 0 : index
    %c0_42 = arith.constant 0 : index
    %95 = vector.load %arg9[%c0_41, %c0_42] : memref<32x32xbf16, #tpu.memory_space<vmem>>, vector<32x32xbf16>
    %cst_43 = arith.constant dense<0.000000e+00> : vector<64x32xf32>
    %96 = tpu.matmul %94, %95, %cst_43 {dimension_numbers = #tpu.dot_dimension_numbers<[1], [0], [0], [1], [0, 0, 1, 1], [], []>} : vector<64x32xbf16>, vector<32x32xbf16>, vector<64x32xf32> -> vector<64x32xf32>
    %c0_44 = arith.constant 0 : index
    %c0_45 = arith.constant 0 : index
    %97 = vector.load %arg10[%c0_44, %c0_45] : memref<1x32xf32, #tpu.memory_space<vmem>>, vector<1x32xf32>
    %98 = vector.broadcast %97 : vector<1x32xf32> to vector<64x32xf32>
    %99 = arith.addf %96, %98 : vector<64x32xf32>
    %100 = arith.addf %1, %99 : vector<64x32xf32>
    %c0_46 = arith.constant 0 : index
    %c0_47 = arith.constant 0 : index
    %c0_48 = arith.constant 0 : index
    %101 = vector.load %arg11[%c0_46, %c0_47, %c0_48] : memref<1x64x32xf32, #tpu.memory_space<vmem>>, vector<1x64x32xf32>
    %102 = vector.shape_cast %101 : vector<1x64x32xf32> to vector<64x32xf32>
    %103 = vector.shape_cast %100 : vector<64x32xf32> to vector<1x64x32xf32>
    tpu.vector_store %arg11[%c0_46, %c0_47, %c0_48], %103 {strides = array<i32>} : memref<1x64x32xf32, #tpu.memory_space<vmem>>, vector<1x64x32xf32>,
    return
  }
  func.func @transform_0(%arg0: i32) -> (i32, i32, i32) {
    %c0_i32 = arith.constant 0 : i32
    %c0_i32_0 = arith.constant 0 : i32
    %c0_i32_1 = arith.constant 0 : i32
    return %arg0, %c0_i32, %c0_i32_0 : i32, i32, i32
  }
  func.func @transform_1(%arg0: i32) -> (i32, i32, i32) {
    %c0_i32 = arith.constant 0 : i32
    %c0_i32_0 = arith.constant 0 : i32
    %c0_i32_1 = arith.constant 0 : i32
    return %arg0, %c0_i32, %c0_i32_0 : i32, i32, i32
  }
  func.func @transform_2(%arg0: i32) -> (i32, i32) {
    %c0_i32 = arith.constant 0 : i32
    %c0_i32_0 = arith.constant 0 : i32
    %c0_i32_1 = arith.constant 0 : i32
    return %c0_i32, %c0_i32_0 : i32, i32
  }
  func.func @transform_3(%arg0: i32) -> (i32, i32) {
    %c0_i32 = arith.constant 0 : i32
    %c0_i32_0 = arith.constant 0 : i32
    %c0_i32_1 = arith.constant 0 : i32
    return %c0_i32, %c0_i32_0 : i32, i32
  }
  func.func @transform_4(%arg0: i32) -> (i32, i32) {
    %c0_i32 = arith.constant 0 : i32
    %c0_i32_0 = arith.constant 0 : i32
    %c0_i32_1 = arith.constant 0 : i32
    return %c0_i32, %c0_i32_0 : i32, i32
  }
  func.func @transform_5(%arg0: i32) -> (i32, i32) {
    %c0_i32 = arith.constant 0 : i32
    %c0_i32_0 = arith.constant 0 : i32
    %c0_i32_1 = arith.constant 0 : i32
    return %c0_i32, %c0_i32_0 : i32, i32
  }
  func.func @transform_6(%arg0: i32) -> (i32, i32) {
    %c0_i32 = arith.constant 0 : i32
    %c0_i32_0 = arith.constant 0 : i32
    %c0_i32_1 = arith.constant 0 : i32
    return %c0_i32, %c0_i32_0 : i32, i32
  }
  func.func @transform_7(%arg0: i32) -> (i32, i32) {
    %c0_i32 = arith.constant 0 : i32
    %c0_i32_0 = arith.constant 0 : i32
    %c0_i32_1 = arith.constant 0 : i32
    return %c0_i32, %c0_i32_0 : i32, i32
  }
  func.func @transform_8(%arg0: i32) -> (i32, i32) {
    %c0_i32 = arith.constant 0 : i32
    %c0_i32_0 = arith.constant 0 : i32
    %c0_i32_1 = arith.constant 0 : i32
    return %c0_i32, %c0_i32_0 : i32, i32
  }
  func.func @transform_9(%arg0: i32) -> (i32, i32) {
    %c0_i32 = arith.constant 0 : i32
    %c0_i32_0 = arith.constant 0 : i32
    %c0_i32_1 = arith.constant 0 : i32
    return %c0_i32, %c0_i32_0 : i32, i32
  }
  func.func @transform_10(%arg0: i32) -> (i32, i32, i32) {
    %c0_i32 = arith.constant 0 : i32
    %c0_i32_0 = arith.constant 0 : i32
    %c0_i32_1 = arith.constant 0 : i32
    return %arg0, %c0_i32, %c0_i32_0 : i32, i32, i32
  }
  func.func @transform_11(%arg0: i32) -> (i32, i32, i32) {
    %c0_i32 = arith.constant 0 : i32
    %c0_i32_0 = arith.constant 0 : i32
    %c0_i32_1 = arith.constant 0 : i32
    return %arg0, %c0_i32, %c0_i32_0 : i32, i32, i32
  }
  func.func @transform_12(%arg0: i32) -> (i32, i32, i32) {
    %c0_i32 = arith.constant 0 : i32
    %c0_i32_0 = arith.constant 0 : i32
    %c0_i32_1 = arith.constant 0 : i32
    return %arg0, %c0_i32, %c0_i32_0 : i32, i32, i32
  }
}

module attributes {stable_mosaic.version = 11 : i64} {
  func.func @_savanet_kernel(%arg0: i32, %arg1: memref<1x16x32xf32, #tpu.memory_space<vmem>>, %arg2: memref<1x16x32xf32, #tpu.memory_space<vmem>>, %arg3: memref<32x32xbf16, #tpu.memory_space<vmem>>, %arg4: memref<1x32xf32, #tpu.memory_space<vmem>>, %arg5: memref<32x32xbf16, #tpu.memory_space<vmem>>, %arg6: memref<1x32xf32, #tpu.memory_space<vmem>>, %arg7: memref<32x32xbf16, #tpu.memory_space<vmem>>, %arg8: memref<1x32xf32, #tpu.memory_space<vmem>>, %arg9: memref<32x32xbf16, #tpu.memory_space<vmem>>, %arg10: memref<1x32xf32, #tpu.memory_space<vmem>>, %arg11: memref<1x16x32xf32, #tpu.memory_space<vmem>>, %arg12: memref<1x16x16xbf16, #tpu.memory_space<vmem>>, %arg13: memref<1x16x16xbf16, #tpu.memory_space<vmem>>) attributes {dimension_semantics = [#tpu.dimension_semantics<parallel>], iteration_bounds = array<i64: 2>, scalar_prefetch = 0 : i64, scratch_operands = 0 : i64, tpu.core_type = #tpu.core_type<tc>, window_params = [{transform_indices = @transform_0, window_bounds = array<i64: 1, 16, 32>}, {transform_indices = @transform_1, window_bounds = array<i64: 1, 16, 32>}, {pipeline_mode = #tpu.pipeline_mode<synchronous>, transform_indices = @transform_2, window_bounds = array<i64: 32, 32>}, {pipeline_mode = #tpu.pipeline_mode<synchronous>, transform_indices = @transform_3, window_bounds = array<i64: 1, 32>}, {pipeline_mode = #tpu.pipeline_mode<synchronous>, transform_indices = @transform_4, window_bounds = array<i64: 32, 32>}, {pipeline_mode = #tpu.pipeline_mode<synchronous>, transform_indices = @transform_5, window_bounds = array<i64: 1, 32>}, {pipeline_mode = #tpu.pipeline_mode<synchronous>, transform_indices = @transform_6, window_bounds = array<i64: 32, 32>}, {pipeline_mode = #tpu.pipeline_mode<synchronous>, transform_indices = @transform_7, window_bounds = array<i64: 1, 32>}, {pipeline_mode = #tpu.pipeline_mode<synchronous>, transform_indices = @transform_8, window_bounds = array<i64: 32, 32>}, {pipeline_mode = #tpu.pipeline_mode<synchronous>, transform_indices = @transform_9, window_bounds = array<i64: 1, 32>}, {transform_indices = @transform_10, window_bounds = array<i64: 1, 16, 32>}, {transform_indices = @transform_11, window_bounds = array<i64: 1, 16, 16>}, {transform_indices = @transform_12, window_bounds = array<i64: 1, 16, 16>}]} {
    %c0 = arith.constant 0 : index
    %c0_0 = arith.constant 0 : index
    %c0_1 = arith.constant 0 : index
    %0 = vector.load %arg1[%c0, %c0_0, %c0_1] : memref<1x16x32xf32, #tpu.memory_space<vmem>>, vector<1x16x32xf32>
    %1 = vector.shape_cast %0 : vector<1x16x32xf32> to vector<16x32xf32>
    %c0_2 = arith.constant 0 : index
    %c0_3 = arith.constant 0 : index
    %c0_4 = arith.constant 0 : index
    %2 = vector.load %arg2[%c0_2, %c0_3, %c0_4] : memref<1x16x32xf32, #tpu.memory_space<vmem>>, vector<1x16x32xf32>
    %3 = vector.shape_cast %2 : vector<1x16x32xf32> to vector<16x32xf32>
    %cst = arith.constant dense<0.000000e+00> : vector<32xf32>
    %4 = vector.multi_reduction <add>, %1, %cst [0] : vector<16x32xf32> to vector<32xf32>
    %5 = vector.shape_cast %4 : vector<32xf32> to vector<1x32xf32>
    %cst_5 = arith.constant 1.600000e+01 : f32
    %6 = vector.broadcast %cst_5 : f32 to vector<1x32xf32>
    %7 = arith.divf %5, %6 : vector<1x32xf32>
    %8 = vector.broadcast %7 : vector<1x32xf32> to vector<16x32xf32>
    %9 = arith.subf %1, %8 : vector<16x32xf32>
    %10 = arith.mulf %9, %9 : vector<16x32xf32>
    %cst_6 = arith.constant dense<0.000000e+00> : vector<32xf32>
    %11 = vector.multi_reduction <add>, %10, %cst_6 [0] : vector<16x32xf32> to vector<32xf32>
    %12 = vector.shape_cast %11 : vector<32xf32> to vector<1x32xf32>
    %cst_7 = arith.constant 1.500000e+01 : f32
    %13 = vector.broadcast %cst_7 : f32 to vector<1x32xf32>
    %14 = arith.divf %12, %13 : vector<1x32xf32>
    %15 = vector.broadcast %7 : vector<1x32xf32> to vector<16x32xf32>
    %16 = arith.subf %1, %15 : vector<16x32xf32>
    %cst_8 = arith.constant 9.99999974E-6 : f32
    %17 = vector.broadcast %cst_8 : f32 to vector<1x32xf32>
    %18 = arith.addf %14, %17 : vector<1x32xf32>
    %19 = math.rsqrt %18 : vector<1x32xf32>
    %20 = vector.broadcast %19 : vector<1x32xf32> to vector<16x32xf32>
    %21 = arith.mulf %16, %20 : vector<16x32xf32>
    %22 = arith.truncf %21 : vector<16x32xf32> to vector<16x32xbf16>
    %c0_9 = arith.constant 0 : index
    %c0_10 = arith.constant 0 : index
    %23 = vector.load %arg3[%c0_9, %c0_10] : memref<32x32xbf16, #tpu.memory_space<vmem>>, vector<32x32xbf16>
    %cst_11 = arith.constant dense<0.000000e+00> : vector<16x32xf32>
    %24 = tpu.matmul %22, %23, %cst_11 {dimension_numbers = #tpu.dot_dimension_numbers<[1], [0], [0], [1], [0, 0, 1, 1], [], []>} : vector<16x32xbf16>, vector<32x32xbf16>, vector<16x32xf32> -> vector<16x32xf32>
    %c0_12 = arith.constant 0 : index
    %c0_13 = arith.constant 0 : index
    %25 = vector.load %arg4[%c0_12, %c0_13] : memref<1x32xf32, #tpu.memory_space<vmem>>, vector<1x32xf32>
    %26 = vector.broadcast %25 : vector<1x32xf32> to vector<16x32xf32>
    %27 = arith.addf %24, %26 : vector<16x32xf32>
    %cst_14 = arith.constant dense<0.000000e+00> : vector<32xf32>
    %28 = vector.multi_reduction <add>, %3, %cst_14 [0] : vector<16x32xf32> to vector<32xf32>
    %29 = vector.shape_cast %28 : vector<32xf32> to vector<1x32xf32>
    %cst_15 = arith.constant 1.600000e+01 : f32
    %30 = vector.broadcast %cst_15 : f32 to vector<1x32xf32>
    %31 = arith.divf %29, %30 : vector<1x32xf32>
    %32 = vector.broadcast %31 : vector<1x32xf32> to vector<16x32xf32>
    %33 = arith.subf %3, %32 : vector<16x32xf32>
    %34 = arith.mulf %33, %33 : vector<16x32xf32>
    %cst_16 = arith.constant dense<0.000000e+00> : vector<32xf32>
    %35 = vector.multi_reduction <add>, %34, %cst_16 [0] : vector<16x32xf32> to vector<32xf32>
    %36 = vector.shape_cast %35 : vector<32xf32> to vector<1x32xf32>
    %cst_17 = arith.constant 1.500000e+01 : f32
    %37 = vector.broadcast %cst_17 : f32 to vector<1x32xf32>
    %38 = arith.divf %36, %37 : vector<1x32xf32>
    %39 = vector.broadcast %31 : vector<1x32xf32> to vector<16x32xf32>
    %40 = arith.subf %3, %39 : vector<16x32xf32>
    %cst_18 = arith.constant 9.99999974E-6 : f32
    %41 = vector.broadcast %cst_18 : f32 to vector<1x32xf32>
    %42 = arith.addf %38, %41 : vector<1x32xf32>
    %43 = math.rsqrt %42 : vector<1x32xf32>
    %44 = vector.broadcast %43 : vector<1x32xf32> to vector<16x32xf32>
    %45 = arith.mulf %40, %44 : vector<16x32xf32>
    %46 = arith.truncf %45 : vector<16x32xf32> to vector<16x32xbf16>
    %c0_19 = arith.constant 0 : index
    %c0_20 = arith.constant 0 : index
    %47 = vector.load %arg5[%c0_19, %c0_20] : memref<32x32xbf16, #tpu.memory_space<vmem>>, vector<32x32xbf16>
    %cst_21 = arith.constant dense<0.000000e+00> : vector<16x32xf32>
    %48 = tpu.matmul %46, %47, %cst_21 {dimension_numbers = #tpu.dot_dimension_numbers<[1], [0], [0], [1], [0, 0, 1, 1], [], []>} : vector<16x32xbf16>, vector<32x32xbf16>, vector<16x32xf32> -> vector<16x32xf32>
    %c0_22 = arith.constant 0 : index
    %c0_23 = arith.constant 0 : index
    %49 = vector.load %arg6[%c0_22, %c0_23] : memref<1x32xf32, #tpu.memory_space<vmem>>, vector<1x32xf32>
    %50 = vector.broadcast %49 : vector<1x32xf32> to vector<16x32xf32>
    %51 = arith.addf %48, %50 : vector<16x32xf32>
    %52 = arith.truncf %3 : vector<16x32xf32> to vector<16x32xbf16>
    %c0_24 = arith.constant 0 : index
    %c0_25 = arith.constant 0 : index
    %53 = vector.load %arg7[%c0_24, %c0_25] : memref<32x32xbf16, #tpu.memory_space<vmem>>, vector<32x32xbf16>
    %cst_26 = arith.constant dense<0.000000e+00> : vector<16x32xf32>
    %54 = tpu.matmul %52, %53, %cst_26 {dimension_numbers = #tpu.dot_dimension_numbers<[1], [0], [0], [1], [0, 0, 1, 1], [], []>} : vector<16x32xbf16>, vector<32x32xbf16>, vector<16x32xf32> -> vector<16x32xf32>
    %c0_27 = arith.constant 0 : index
    %c0_28 = arith.constant 0 : index
    %55 = vector.load %arg8[%c0_27, %c0_28] : memref<1x32xf32, #tpu.memory_space<vmem>>, vector<1x32xf32>
    %56 = vector.broadcast %55 : vector<1x32xf32> to vector<16x32xf32>
    %57 = arith.addf %54, %56 : vector<16x32xf32>
    %58 = arith.truncf %27 : vector<16x32xf32> to vector<16x32xbf16>
    %59 = arith.truncf %51 : vector<16x32xf32> to vector<16x32xbf16>
    %cst_29 = arith.constant dense<0.000000e+00> : vector<16x16xf32>
    %60 = tpu.matmul %58, %59, %cst_29 {dimension_numbers = #tpu.dot_dimension_numbers<[1], [1], [0], [0], [0, 0, 1, 0], [], []>} : vector<16x32xbf16>, vector<16x32xbf16>, vector<16x16xf32> -> vector<16x16xf32>
    %cst_30 = arith.constant dense<0xFF800000> : vector<16xf32>
    %61 = vector.multi_reduction <maximumf>, %60, %cst_30 [1] : vector<16x16xf32> to vector<16xf32>
    %62 = vector.shape_cast %61 : vector<16xf32> to vector<16x1xf32>
    %63 = vector.broadcast %62 : vector<16x1xf32> to vector<16x16xf32>
    %64 = arith.subf %60, %63 : vector<16x16xf32>
    %65 = math.exp %64 : vector<16x16xf32>
    %cst_31 = arith.constant dense<0.000000e+00> : vector<16xf32>
    %66 = vector.multi_reduction <add>, %65, %cst_31 [1] : vector<16x16xf32> to vector<16xf32>
    %67 = vector.shape_cast %66 : vector<16xf32> to vector<16x1xf32>
    %68 = tpu.reciprocal %67 : vector<16x1xf32> -> vector<16x1xf32>
    %69 = vector.broadcast %68 : vector<16x1xf32> to vector<16x16xf32>
    %70 = arith.mulf %65, %69 : vector<16x16xf32>
    %71 = arith.truncf %70 : vector<16x16xf32> to vector<16x16xbf16>
    %c0_32 = arith.constant 0 : index
    %c0_33 = arith.constant 0 : index
    %c0_34 = arith.constant 0 : index
    %72 = vector.load %arg12[%c0_32, %c0_33, %c0_34] : memref<1x16x16xbf16, #tpu.memory_space<vmem>>, vector<1x16x16xbf16>
    %73 = vector.shape_cast %72 : vector<1x16x16xbf16> to vector<16x16xbf16>
    %74 = vector.shape_cast %71 : vector<16x16xbf16> to vector<1x16x16xbf16>
    tpu.vector_store %arg12[%c0_32, %c0_33, %c0_34], %74 {strides = array<i32>} : memref<1x16x16xbf16, #tpu.memory_space<vmem>>, vector<1x16x16xbf16>,
    %cst_35 = arith.constant dense<0xFF800000> : vector<1xf32>
    %75 = vector.multi_reduction <maximumf>, %62, %cst_35 [0] : vector<16x1xf32> to vector<1xf32>
    %76 = vector.shape_cast %75 : vector<1xf32> to vector<1x1xf32>
    %77 = vector.broadcast %76 : vector<1x1xf32> to vector<16x1xf32>
    %78 = arith.subf %62, %77 : vector<16x1xf32>
    %79 = math.exp %78 : vector<16x1xf32>
    %80 = vector.broadcast %79 : vector<16x1xf32> to vector<16x16xf32>
    %81 = arith.mulf %65, %80 : vector<16x16xf32>
    %cst_36 = arith.constant dense<0.000000e+00> : vector<16xf32>
    %82 = vector.multi_reduction <add>, %81, %cst_36 [0] : vector<16x16xf32> to vector<16xf32>
    %83 = vector.shape_cast %82 : vector<16xf32> to vector<1x16xf32>
    %84 = tpu.reciprocal %83 : vector<1x16xf32> -> vector<1x16xf32>
    %85 = vector.broadcast %84 : vector<1x16xf32> to vector<16x16xf32>
    %86 = arith.mulf %81, %85 : vector<16x16xf32>
    %87 = arith.truncf %86 : vector<16x16xf32> to vector<16x16xbf16>
    %c0_37 = arith.constant 0 : index
    %c0_38 = arith.constant 0 : index
    %c0_39 = arith.constant 0 : index
    %88 = vector.load %arg13[%c0_37, %c0_38, %c0_39] : memref<1x16x16xbf16, #tpu.memory_space<vmem>>, vector<1x16x16xbf16>
    %89 = vector.shape_cast %88 : vector<1x16x16xbf16> to vector<16x16xbf16>
    %90 = vector.shape_cast %87 : vector<16x16xbf16> to vector<1x16x16xbf16>
    tpu.vector_store %arg13[%c0_37, %c0_38, %c0_39], %90 {strides = array<i32>} : memref<1x16x16xbf16, #tpu.memory_space<vmem>>, vector<1x16x16xbf16>,
    %91 = arith.truncf %70 : vector<16x16xf32> to vector<16x16xbf16>
    %92 = arith.truncf %57 : vector<16x32xf32> to vector<16x32xbf16>
    %cst_40 = arith.constant dense<0.000000e+00> : vector<16x32xf32>
    %93 = tpu.matmul %91, %92, %cst_40 {dimension_numbers = #tpu.dot_dimension_numbers<[1], [0], [0], [1], [0, 0, 1, 1], [], []>} : vector<16x16xbf16>, vector<16x32xbf16>, vector<16x32xf32> -> vector<16x32xf32>
    %94 = arith.truncf %93 : vector<16x32xf32> to vector<16x32xbf16>
    %c0_41 = arith.constant 0 : index
    %c0_42 = arith.constant 0 : index
    %95 = vector.load %arg9[%c0_41, %c0_42] : memref<32x32xbf16, #tpu.memory_space<vmem>>, vector<32x32xbf16>
    %cst_43 = arith.constant dense<0.000000e+00> : vector<16x32xf32>
    %96 = tpu.matmul %94, %95, %cst_43 {dimension_numbers = #tpu.dot_dimension_numbers<[1], [0], [0], [1], [0, 0, 1, 1], [], []>} : vector<16x32xbf16>, vector<32x32xbf16>, vector<16x32xf32> -> vector<16x32xf32>
    %c0_44 = arith.constant 0 : index
    %c0_45 = arith.constant 0 : index
    %97 = vector.load %arg10[%c0_44, %c0_45] : memref<1x32xf32, #tpu.memory_space<vmem>>, vector<1x32xf32>
    %98 = vector.broadcast %97 : vector<1x32xf32> to vector<16x32xf32>
    %99 = arith.addf %96, %98 : vector<16x32xf32>
    %100 = arith.addf %1, %99 : vector<16x32xf32>
    %c0_46 = arith.constant 0 : index
    %c0_47 = arith.constant 0 : index
    %c0_48 = arith.constant 0 : index
    %101 = vector.load %arg11[%c0_46, %c0_47, %c0_48] : memref<1x16x32xf32, #tpu.memory_space<vmem>>, vector<1x16x32xf32>
    %102 = vector.shape_cast %101 : vector<1x16x32xf32> to vector<16x32xf32>
    %103 = vector.shape_cast %100 : vector<16x32xf32> to vector<1x16x32xf32>
    tpu.vector_store %arg11[%c0_46, %c0_47, %c0_48], %103 {strides = array<i32>} : memref<1x16x32xf32, #tpu.memory_space<vmem>>, vector<1x16x32xf32>,
    return
  }
  func.func @transform_0(%arg0: i32) -> (i32, i32, i32) {
    %c0_i32 = arith.constant 0 : i32
    %c0_i32_0 = arith.constant 0 : i32
    %c0_i32_1 = arith.constant 0 : i32
    return %arg0, %c0_i32, %c0_i32_0 : i32, i32, i32
  }
  func.func @transform_1(%arg0: i32) -> (i32, i32, i32) {
    %c0_i32 = arith.constant 0 : i32
    %c0_i32_0 = arith.constant 0 : i32
    %c0_i32_1 = arith.constant 0 : i32
    return %arg0, %c0_i32, %c0_i32_0 : i32, i32, i32
  }
  func.func @transform_2(%arg0: i32) -> (i32, i32) {
    %c0_i32 = arith.constant 0 : i32
    %c0_i32_0 = arith.constant 0 : i32
    %c0_i32_1 = arith.constant 0 : i32
    return %c0_i32, %c0_i32_0 : i32, i32
  }
  func.func @transform_3(%arg0: i32) -> (i32, i32) {
    %c0_i32 = arith.constant 0 : i32
    %c0_i32_0 = arith.constant 0 : i32
    %c0_i32_1 = arith.constant 0 : i32
    return %c0_i32, %c0_i32_0 : i32, i32
  }
  func.func @transform_4(%arg0: i32) -> (i32, i32) {
    %c0_i32 = arith.constant 0 : i32
    %c0_i32_0 = arith.constant 0 : i32
    %c0_i32_1 = arith.constant 0 : i32
    return %c0_i32, %c0_i32_0 : i32, i32
  }
  func.func @transform_5(%arg0: i32) -> (i32, i32) {
    %c0_i32 = arith.constant 0 : i32
    %c0_i32_0 = arith.constant 0 : i32
    %c0_i32_1 = arith.constant 0 : i32
    return %c0_i32, %c0_i32_0 : i32, i32
  }
  func.func @transform_6(%arg0: i32) -> (i32, i32) {
    %c0_i32 = arith.constant 0 : i32
    %c0_i32_0 = arith.constant 0 : i32
    %c0_i32_1 = arith.constant 0 : i32
    return %c0_i32, %c0_i32_0 : i32, i32
  }
  func.func @transform_7(%arg0: i32) -> (i32, i32) {
    %c0_i32 = arith.constant 0 : i32
    %c0_i32_0 = arith.constant 0 : i32
    %c0_i32_1 = arith.constant 0 : i32
    return %c0_i32, %c0_i32_0 : i32, i32
  }
  func.func @transform_8(%arg0: i32) -> (i32, i32) {
    %c0_i32 = arith.constant 0 : i32
    %c0_i32_0 = arith.constant 0 : i32
    %c0_i32_1 = arith.constant 0 : i32
    return %c0_i32, %c0_i32_0 : i32, i32
  }
  func.func @transform_9(%arg0: i32) -> (i32, i32) {
    %c0_i32 = arith.constant 0 : i32
    %c0_i32_0 = arith.constant 0 : i32
    %c0_i32_1 = arith.constant 0 : i32
    return %c0_i32, %c0_i32_0 : i32, i32
  }
  func.func @transform_10(%arg0: i32) -> (i32, i32, i32) {
    %c0_i32 = arith.constant 0 : i32
    %c0_i32_0 = arith.constant 0 : i32
    %c0_i32_1 = arith.constant 0 : i32
    return %arg0, %c0_i32, %c0_i32_0 : i32, i32, i32
  }
  func.func @transform_11(%arg0: i32) -> (i32, i32, i32) {
    %c0_i32 = arith.constant 0 : i32
    %c0_i32_0 = arith.constant 0 : i32
    %c0_i32_1 = arith.constant 0 : i32
    return %arg0, %c0_i32, %c0_i32_0 : i32, i32, i32
  }
  func.func @transform_12(%arg0: i32) -> (i32, i32, i32) {
    %c0_i32 = arith.constant 0 : i32
    %c0_i32_0 = arith.constant 0 : i32
    %c0_i32_1 = arith.constant 0 : i32
    return %arg0, %c0_i32, %c0_i32_0 : i32, i32, i32
  }
}

module attributes {stable_mosaic.version = 11 : i64} {
  func.func @_merge_kernel(%arg0: i32, %arg1: memref<1x64x32xf32, #tpu.memory_space<vmem>>, %arg2: memref<1x16x32xf32, #tpu.memory_space<vmem>>, %arg3: memref<9x32x32xbf16, #tpu.memory_space<vmem>>, %arg4: memref<1x32xf32, #tpu.memory_space<vmem>>, %arg5: memref<1x64x32xf32, #tpu.memory_space<vmem>>) attributes {dimension_semantics = [#tpu.dimension_semantics<parallel>], iteration_bounds = array<i64: 2>, scalar_prefetch = 0 : i64, scratch_operands = 0 : i64, tpu.core_type = #tpu.core_type<tc>, window_params = [{transform_indices = @transform_0, window_bounds = array<i64: 1, 64, 32>}, {transform_indices = @transform_1, window_bounds = array<i64: 1, 16, 32>}, {pipeline_mode = #tpu.pipeline_mode<synchronous>, transform_indices = @transform_2, window_bounds = array<i64: 9, 32, 32>}, {pipeline_mode = #tpu.pipeline_mode<synchronous>, transform_indices = @transform_3, window_bounds = array<i64: 1, 32>}, {transform_indices = @transform_4, window_bounds = array<i64: 1, 64, 32>}]} {
    %c0 = arith.constant 0 : index
    %c0_0 = arith.constant 0 : index
    %c0_1 = arith.constant 0 : index
    %0 = vector.load %arg2[%c0, %c0_0, %c0_1] : memref<1x16x32xf32, #tpu.memory_space<vmem>>, vector<1x4x32xf32>
    %1 = vector.shape_cast %0 : vector<1x4x32xf32> to vector<4x32xf32>
    %2 = vector.extract_strided_slice %1 {offsets = [0, 0], sizes = [1, 32], strides = [1, 1]} : vector<4x32xf32> to vector<1x32xf32>
    %3 = vector.extract_strided_slice %1 {offsets = [0, 0], sizes = [1, 32], strides = [1, 1]} : vector<4x32xf32> to vector<1x32xf32>
    %4 = vector.extract_strided_slice %1 {offsets = [1, 0], sizes = [1, 32], strides = [1, 1]} : vector<4x32xf32> to vector<1x32xf32>
    %5 = vector.extract_strided_slice %1 {offsets = [1, 0], sizes = [1, 32], strides = [1, 1]} : vector<4x32xf32> to vector<1x32xf32>
    %6 = vector.extract_strided_slice %1 {offsets = [2, 0], sizes = [1, 32], strides = [1, 1]} : vector<4x32xf32> to vector<1x32xf32>
    %7 = vector.extract_strided_slice %1 {offsets = [2, 0], sizes = [1, 32], strides = [1, 1]} : vector<4x32xf32> to vector<1x32xf32>
    %8 = vector.extract_strided_slice %1 {offsets = [3, 0], sizes = [1, 32], strides = [1, 1]} : vector<4x32xf32> to vector<1x32xf32>
    %9 = vector.extract_strided_slice %1 {offsets = [3, 0], sizes = [1, 32], strides = [1, 1]} : vector<4x32xf32> to vector<1x32xf32>
    %10 = tpu.concatenate %2, %3, %4, %5, %6, %7, %8, %9 in 0 : vector<1x32xf32>, vector<1x32xf32>, vector<1x32xf32>, vector<1x32xf32>, vector<1x32xf32>, vector<1x32xf32>, vector<1x32xf32>, vector<1x32xf32> -> vector<8x32xf32>
    %c0_2 = arith.constant 0 : index
    %c4 = arith.constant 4 : index
    %c0_3 = arith.constant 0 : index
    %11 = vector.load %arg2[%c0_2, %c4, %c0_3] : memref<1x16x32xf32, #tpu.memory_space<vmem>>, vector<1x4x32xf32>
    %12 = vector.shape_cast %11 : vector<1x4x32xf32> to vector<4x32xf32>
    %13 = vector.extract_strided_slice %12 {offsets = [0, 0], sizes = [1, 32], strides = [1, 1]} : vector<4x32xf32> to vector<1x32xf32>
    %14 = vector.extract_strided_slice %12 {offsets = [0, 0], sizes = [1, 32], strides = [1, 1]} : vector<4x32xf32> to vector<1x32xf32>
    %15 = vector.extract_strided_slice %12 {offsets = [1, 0], sizes = [1, 32], strides = [1, 1]} : vector<4x32xf32> to vector<1x32xf32>
    %16 = vector.extract_strided_slice %12 {offsets = [1, 0], sizes = [1, 32], strides = [1, 1]} : vector<4x32xf32> to vector<1x32xf32>
    %17 = vector.extract_strided_slice %12 {offsets = [2, 0], sizes = [1, 32], strides = [1, 1]} : vector<4x32xf32> to vector<1x32xf32>
    %18 = vector.extract_strided_slice %12 {offsets = [2, 0], sizes = [1, 32], strides = [1, 1]} : vector<4x32xf32> to vector<1x32xf32>
    %19 = vector.extract_strided_slice %12 {offsets = [3, 0], sizes = [1, 32], strides = [1, 1]} : vector<4x32xf32> to vector<1x32xf32>
    %20 = vector.extract_strided_slice %12 {offsets = [3, 0], sizes = [1, 32], strides = [1, 1]} : vector<4x32xf32> to vector<1x32xf32>
    %21 = tpu.concatenate %13, %14, %15, %16, %17, %18, %19, %20 in 0 : vector<1x32xf32>, vector<1x32xf32>, vector<1x32xf32>, vector<1x32xf32>, vector<1x32xf32>, vector<1x32xf32>, vector<1x32xf32>, vector<1x32xf32> -> vector<8x32xf32>
    %c0_4 = arith.constant 0 : index
    %c8 = arith.constant 8 : index
    %c0_5 = arith.constant 0 : index
    %22 = vector.load %arg2[%c0_4, %c8, %c0_5] : memref<1x16x32xf32, #tpu.memory_space<vmem>>, vector<1x4x32xf32>
    %23 = vector.shape_cast %22 : vector<1x4x32xf32> to vector<4x32xf32>
    %24 = vector.extract_strided_slice %23 {offsets = [0, 0], sizes = [1, 32], strides = [1, 1]} : vector<4x32xf32> to vector<1x32xf32>
    %25 = vector.extract_strided_slice %23 {offsets = [0, 0], sizes = [1, 32], strides = [1, 1]} : vector<4x32xf32> to vector<1x32xf32>
    %26 = vector.extract_strided_slice %23 {offsets = [1, 0], sizes = [1, 32], strides = [1, 1]} : vector<4x32xf32> to vector<1x32xf32>
    %27 = vector.extract_strided_slice %23 {offsets = [1, 0], sizes = [1, 32], strides = [1, 1]} : vector<4x32xf32> to vector<1x32xf32>
    %28 = vector.extract_strided_slice %23 {offsets = [2, 0], sizes = [1, 32], strides = [1, 1]} : vector<4x32xf32> to vector<1x32xf32>
    %29 = vector.extract_strided_slice %23 {offsets = [2, 0], sizes = [1, 32], strides = [1, 1]} : vector<4x32xf32> to vector<1x32xf32>
    %30 = vector.extract_strided_slice %23 {offsets = [3, 0], sizes = [1, 32], strides = [1, 1]} : vector<4x32xf32> to vector<1x32xf32>
    %31 = vector.extract_strided_slice %23 {offsets = [3, 0], sizes = [1, 32], strides = [1, 1]} : vector<4x32xf32> to vector<1x32xf32>
    %32 = tpu.concatenate %24, %25, %26, %27, %28, %29, %30, %31 in 0 : vector<1x32xf32>, vector<1x32xf32>, vector<1x32xf32>, vector<1x32xf32>, vector<1x32xf32>, vector<1x32xf32>, vector<1x32xf32>, vector<1x32xf32> -> vector<8x32xf32>
    %c0_6 = arith.constant 0 : index
    %c12 = arith.constant 12 : index
    %c0_7 = arith.constant 0 : index
    %33 = vector.load %arg2[%c0_6, %c12, %c0_7] : memref<1x16x32xf32, #tpu.memory_space<vmem>>, vector<1x4x32xf32>
    %34 = vector.shape_cast %33 : vector<1x4x32xf32> to vector<4x32xf32>
    %35 = vector.extract_strided_slice %34 {offsets = [0, 0], sizes = [1, 32], strides = [1, 1]} : vector<4x32xf32> to vector<1x32xf32>
    %36 = vector.extract_strided_slice %34 {offsets = [0, 0], sizes = [1, 32], strides = [1, 1]} : vector<4x32xf32> to vector<1x32xf32>
    %37 = vector.extract_strided_slice %34 {offsets = [1, 0], sizes = [1, 32], strides = [1, 1]} : vector<4x32xf32> to vector<1x32xf32>
    %38 = vector.extract_strided_slice %34 {offsets = [1, 0], sizes = [1, 32], strides = [1, 1]} : vector<4x32xf32> to vector<1x32xf32>
    %39 = vector.extract_strided_slice %34 {offsets = [2, 0], sizes = [1, 32], strides = [1, 1]} : vector<4x32xf32> to vector<1x32xf32>
    %40 = vector.extract_strided_slice %34 {offsets = [2, 0], sizes = [1, 32], strides = [1, 1]} : vector<4x32xf32> to vector<1x32xf32>
    %41 = vector.extract_strided_slice %34 {offsets = [3, 0], sizes = [1, 32], strides = [1, 1]} : vector<4x32xf32> to vector<1x32xf32>
    %42 = vector.extract_strided_slice %34 {offsets = [3, 0], sizes = [1, 32], strides = [1, 1]} : vector<4x32xf32> to vector<1x32xf32>
    %43 = tpu.concatenate %35, %36, %37, %38, %39, %40, %41, %42 in 0 : vector<1x32xf32>, vector<1x32xf32>, vector<1x32xf32>, vector<1x32xf32>, vector<1x32xf32>, vector<1x32xf32>, vector<1x32xf32>, vector<1x32xf32> -> vector<8x32xf32>
    %c0_8 = arith.constant 0 : index
    %c0_9 = arith.constant 0 : index
    %c0_10 = arith.constant 0 : index
    %44 = vector.load %arg1[%c0_8, %c0_9, %c0_10] : memref<1x64x32xf32, #tpu.memory_space<vmem>>, vector<1x8x32xf32>
    %45 = vector.shape_cast %44 : vector<1x8x32xf32> to vector<8x32xf32>
    %46 = arith.addf %45, %10 : vector<8x32xf32>
    %47 = vector.extract_strided_slice %46 {offsets = [1, 0], sizes = [1, 32], strides = [1, 1]} : vector<8x32xf32> to vector<1x32xf32>
    %48 = vector.extract_strided_slice %46 {offsets = [6, 0], sizes = [1, 32], strides = [1, 1]} : vector<8x32xf32> to vector<1x32xf32>
    %49 = tpu.concatenate %47, %46, %48 in 0 : vector<1x32xf32>, vector<8x32xf32>, vector<1x32xf32> -> vector<10x32xf32>
    %c0_11 = arith.constant 0 : index
    %c8_12 = arith.constant 8 : index
    %c0_13 = arith.constant 0 : index
    %50 = vector.load %arg1[%c0_11, %c8_12, %c0_13] : memref<1x64x32xf32, #tpu.memory_space<vmem>>, vector<1x8x32xf32>
    %51 = vector.shape_cast %50 : vector<1x8x32xf32> to vector<8x32xf32>
    %52 = arith.addf %51, %10 : vector<8x32xf32>
    %53 = vector.extract_strided_slice %52 {offsets = [1, 0], sizes = [1, 32], strides = [1, 1]} : vector<8x32xf32> to vector<1x32xf32>
    %54 = vector.extract_strided_slice %52 {offsets = [6, 0], sizes = [1, 32], strides = [1, 1]} : vector<8x32xf32> to vector<1x32xf32>
    %55 = tpu.concatenate %53, %52, %54 in 0 : vector<1x32xf32>, vector<8x32xf32>, vector<1x32xf32> -> vector<10x32xf32>
    %c0_14 = arith.constant 0 : index
    %c16 = arith.constant 16 : index
    %c0_15 = arith.constant 0 : index
    %56 = vector.load %arg1[%c0_14, %c16, %c0_15] : memref<1x64x32xf32, #tpu.memory_space<vmem>>, vector<1x8x32xf32>
    %57 = vector.shape_cast %56 : vector<1x8x32xf32> to vector<8x32xf32>
    %58 = arith.addf %57, %21 : vector<8x32xf32>
    %59 = vector.extract_strided_slice %58 {offsets = [1, 0], sizes = [1, 32], strides = [1, 1]} : vector<8x32xf32> to vector<1x32xf32>
    %60 = vector.extract_strided_slice %58 {offsets = [6, 0], sizes = [1, 32], strides = [1, 1]} : vector<8x32xf32> to vector<1x32xf32>
    %61 = tpu.concatenate %59, %58, %60 in 0 : vector<1x32xf32>, vector<8x32xf32>, vector<1x32xf32> -> vector<10x32xf32>
    %c0_16 = arith.constant 0 : index
    %c24 = arith.constant 24 : index
    %c0_17 = arith.constant 0 : index
    %62 = vector.load %arg1[%c0_16, %c24, %c0_17] : memref<1x64x32xf32, #tpu.memory_space<vmem>>, vector<1x8x32xf32>
    %63 = vector.shape_cast %62 : vector<1x8x32xf32> to vector<8x32xf32>
    %64 = arith.addf %63, %21 : vector<8x32xf32>
    %65 = vector.extract_strided_slice %64 {offsets = [1, 0], sizes = [1, 32], strides = [1, 1]} : vector<8x32xf32> to vector<1x32xf32>
    %66 = vector.extract_strided_slice %64 {offsets = [6, 0], sizes = [1, 32], strides = [1, 1]} : vector<8x32xf32> to vector<1x32xf32>
    %67 = tpu.concatenate %65, %64, %66 in 0 : vector<1x32xf32>, vector<8x32xf32>, vector<1x32xf32> -> vector<10x32xf32>
    %c0_18 = arith.constant 0 : index
    %c32 = arith.constant 32 : index
    %c0_19 = arith.constant 0 : index
    %68 = vector.load %arg1[%c0_18, %c32, %c0_19] : memref<1x64x32xf32, #tpu.memory_space<vmem>>, vector<1x8x32xf32>
    %69 = vector.shape_cast %68 : vector<1x8x32xf32> to vector<8x32xf32>
    %70 = arith.addf %69, %32 : vector<8x32xf32>
    %71 = vector.extract_strided_slice %70 {offsets = [1, 0], sizes = [1, 32], strides = [1, 1]} : vector<8x32xf32> to vector<1x32xf32>
    %72 = vector.extract_strided_slice %70 {offsets = [6, 0], sizes = [1, 32], strides = [1, 1]} : vector<8x32xf32> to vector<1x32xf32>
    %73 = tpu.concatenate %71, %70, %72 in 0 : vector<1x32xf32>, vector<8x32xf32>, vector<1x32xf32> -> vector<10x32xf32>
    %c0_20 = arith.constant 0 : index
    %c40 = arith.constant 40 : index
    %c0_21 = arith.constant 0 : index
    %74 = vector.load %arg1[%c0_20, %c40, %c0_21] : memref<1x64x32xf32, #tpu.memory_space<vmem>>, vector<1x8x32xf32>
    %75 = vector.shape_cast %74 : vector<1x8x32xf32> to vector<8x32xf32>
    %76 = arith.addf %75, %32 : vector<8x32xf32>
    %77 = vector.extract_strided_slice %76 {offsets = [1, 0], sizes = [1, 32], strides = [1, 1]} : vector<8x32xf32> to vector<1x32xf32>
    %78 = vector.extract_strided_slice %76 {offsets = [6, 0], sizes = [1, 32], strides = [1, 1]} : vector<8x32xf32> to vector<1x32xf32>
    %79 = tpu.concatenate %77, %76, %78 in 0 : vector<1x32xf32>, vector<8x32xf32>, vector<1x32xf32> -> vector<10x32xf32>
    %c0_22 = arith.constant 0 : index
    %c48 = arith.constant 48 : index
    %c0_23 = arith.constant 0 : index
    %80 = vector.load %arg1[%c0_22, %c48, %c0_23] : memref<1x64x32xf32, #tpu.memory_space<vmem>>, vector<1x8x32xf32>
    %81 = vector.shape_cast %80 : vector<1x8x32xf32> to vector<8x32xf32>
    %82 = arith.addf %81, %43 : vector<8x32xf32>
    %83 = vector.extract_strided_slice %82 {offsets = [1, 0], sizes = [1, 32], strides = [1, 1]} : vector<8x32xf32> to vector<1x32xf32>
    %84 = vector.extract_strided_slice %82 {offsets = [6, 0], sizes = [1, 32], strides = [1, 1]} : vector<8x32xf32> to vector<1x32xf32>
    %85 = tpu.concatenate %83, %82, %84 in 0 : vector<1x32xf32>, vector<8x32xf32>, vector<1x32xf32> -> vector<10x32xf32>
    %c0_24 = arith.constant 0 : index
    %c56 = arith.constant 56 : index
    %c0_25 = arith.constant 0 : index
    %86 = vector.load %arg1[%c0_24, %c56, %c0_25] : memref<1x64x32xf32, #tpu.memory_space<vmem>>, vector<1x8x32xf32>
    %87 = vector.shape_cast %86 : vector<1x8x32xf32> to vector<8x32xf32>
    %88 = arith.addf %87, %43 : vector<8x32xf32>
    %89 = vector.extract_strided_slice %88 {offsets = [1, 0], sizes = [1, 32], strides = [1, 1]} : vector<8x32xf32> to vector<1x32xf32>
    %90 = vector.extract_strided_slice %88 {offsets = [6, 0], sizes = [1, 32], strides = [1, 1]} : vector<8x32xf32> to vector<1x32xf32>
    %91 = tpu.concatenate %89, %88, %90 in 0 : vector<1x32xf32>, vector<8x32xf32>, vector<1x32xf32> -> vector<10x32xf32>
    %92 = vector.extract_strided_slice %85 {offsets = [0, 0], sizes = [2, 32], strides = [1, 1]} : vector<10x32xf32> to vector<2x32xf32>
    %93 = tpu.concatenate %55, %49, %55, %61, %67, %73, %79, %85, %91, %85, %92 in 0 : vector<10x32xf32>, vector<10x32xf32>, vector<10x32xf32>, vector<10x32xf32>, vector<10x32xf32>, vector<10x32xf32>, vector<10x32xf32>, vector<10x32xf32>, vector<10x32xf32>, vector<10x32xf32>, vector<2x32xf32> -> vector<102x32xf32>
    %94 = arith.truncf %93 : vector<102x32xf32> to vector<102x32xbf16>
    %cst = arith.constant 0.000000e+00 : f32
    %95 = vector.broadcast %cst : f32 to vector<80x32xf32>
    %c0_26 = arith.constant 0 : index
    %c0_27 = arith.constant 0 : index
    %96 = vector.load %arg4[%c0_26, %c0_27] : memref<1x32xf32, #tpu.memory_space<vmem>>, vector<1x32xf32>
    %97 = vector.broadcast %96 : vector<1x32xf32> to vector<80x32xf32>
    %98 = arith.addf %95, %97 : vector<80x32xf32>
    %99 = vector.extract_strided_slice %94 {offsets = [0, 0], sizes = [80, 32], strides = [1, 1]} : vector<102x32xbf16> to vector<80x32xbf16>
    %c0_28 = arith.constant 0 : index
    %c0_29 = arith.constant 0 : index
    %c0_30 = arith.constant 0 : index
    %100 = vector.load %arg3[%c0_28, %c0_29, %c0_30] : memref<9x32x32xbf16, #tpu.memory_space<vmem>>, vector<1x32x32xbf16>
    %101 = vector.shape_cast %100 : vector<1x32x32xbf16> to vector<32x32xbf16>
    %cst_31 = arith.constant dense<0.000000e+00> : vector<80x32xf32>
    %102 = tpu.matmul %99, %101, %cst_31 {dimension_numbers = #tpu.dot_dimension_numbers<[1], [0], [0], [1], [0, 0, 1, 1], [], []>} : vector<80x32xbf16>, vector<32x32xbf16>, vector<80x32xf32> -> vector<80x32xf32>
    %103 = arith.addf %98, %102 : vector<80x32xf32>
    %104 = vector.extract_strided_slice %94 {offsets = [1, 0], sizes = [80, 32], strides = [1, 1]} : vector<102x32xbf16> to vector<80x32xbf16>
    %c1 = arith.constant 1 : index
    %c0_32 = arith.constant 0 : index
    %c0_33 = arith.constant 0 : index
    %105 = vector.load %arg3[%c1, %c0_32, %c0_33] : memref<9x32x32xbf16, #tpu.memory_space<vmem>>, vector<1x32x32xbf16>
    %106 = vector.shape_cast %105 : vector<1x32x32xbf16> to vector<32x32xbf16>
    %cst_34 = arith.constant dense<0.000000e+00> : vector<80x32xf32>
    %107 = tpu.matmul %104, %106, %cst_34 {dimension_numbers = #tpu.dot_dimension_numbers<[1], [0], [0], [1], [0, 0, 1, 1], [], []>} : vector<80x32xbf16>, vector<32x32xbf16>, vector<80x32xf32> -> vector<80x32xf32>
    %108 = arith.addf %103, %107 : vector<80x32xf32>
    %109 = vector.extract_strided_slice %94 {offsets = [2, 0], sizes = [80, 32], strides = [1, 1]} : vector<102x32xbf16> to vector<80x32xbf16>
    %c2 = arith.constant 2 : index
    %c0_35 = arith.constant 0 : index
    %c0_36 = arith.constant 0 : index
    %110 = vector.load %arg3[%c2, %c0_35, %c0_36] : memref<9x32x32xbf16, #tpu.memory_space<vmem>>, vector<1x32x32xbf16>
    %111 = vector.shape_cast %110 : vector<1x32x32xbf16> to vector<32x32xbf16>
    %cst_37 = arith.constant dense<0.000000e+00> : vector<80x32xf32>
    %112 = tpu.matmul %109, %111, %cst_37 {dimension_numbers = #tpu.dot_dimension_numbers<[1], [0], [0], [1], [0, 0, 1, 1], [], []>} : vector<80x32xbf16>, vector<32x32xbf16>, vector<80x32xf32> -> vector<80x32xf32>
    %113 = arith.addf %108, %112 : vector<80x32xf32>
    %114 = vector.extract_strided_slice %94 {offsets = [10, 0], sizes = [80, 32], strides = [1, 1]} : vector<102x32xbf16> to vector<80x32xbf16>
    %c3 = arith.constant 3 : index
    %c0_38 = arith.constant 0 : index
    %c0_39 = arith.constant 0 : index
    %115 = vector.load %arg3[%c3, %c0_38, %c0_39] : memref<9x32x32xbf16, #tpu.memory_space<vmem>>, vector<1x32x32xbf16>
    %116 = vector.shape_cast %115 : vector<1x32x32xbf16> to vector<32x32xbf16>
    %cst_40 = arith.constant dense<0.000000e+00> : vector<80x32xf32>
    %117 = tpu.matmul %114, %116, %cst_40 {dimension_numbers = #tpu.dot_dimension_numbers<[1], [0], [0], [1], [0, 0, 1, 1], [], []>} : vector<80x32xbf16>, vector<32x32xbf16>, vector<80x32xf32> -> vector<80x32xf32>
    %118 = arith.addf %113, %117 : vector<80x32xf32>
    %119 = vector.extract_strided_slice %94 {offsets = [11, 0], sizes = [80, 32], strides = [1, 1]} : vector<102x32xbf16> to vector<80x32xbf16>
    %c4_41 = arith.constant 4 : index
    %c0_42 = arith.constant 0 : index
    %c0_43 = arith.constant 0 : index
    %120 = vector.load %arg3[%c4_41, %c0_42, %c0_43] : memref<9x32x32xbf16, #tpu.memory_space<vmem>>, vector<1x32x32xbf16>
    %121 = vector.shape_cast %120 : vector<1x32x32xbf16> to vector<32x32xbf16>
    %cst_44 = arith.constant dense<0.000000e+00> : vector<80x32xf32>
    %122 = tpu.matmul %119, %121, %cst_44 {dimension_numbers = #tpu.dot_dimension_numbers<[1], [0], [0], [1], [0, 0, 1, 1], [], []>} : vector<80x32xbf16>, vector<32x32xbf16>, vector<80x32xf32> -> vector<80x32xf32>
    %123 = arith.addf %118, %122 : vector<80x32xf32>
    %124 = vector.extract_strided_slice %94 {offsets = [12, 0], sizes = [80, 32], strides = [1, 1]} : vector<102x32xbf16> to vector<80x32xbf16>
    %c5 = arith.constant 5 : index
    %c0_45 = arith.constant 0 : index
    %c0_46 = arith.constant 0 : index
    %125 = vector.load %arg3[%c5, %c0_45, %c0_46] : memref<9x32x32xbf16, #tpu.memory_space<vmem>>, vector<1x32x32xbf16>
    %126 = vector.shape_cast %125 : vector<1x32x32xbf16> to vector<32x32xbf16>
    %cst_47 = arith.constant dense<0.000000e+00> : vector<80x32xf32>
    %127 = tpu.matmul %124, %126, %cst_47 {dimension_numbers = #tpu.dot_dimension_numbers<[1], [0], [0], [1], [0, 0, 1, 1], [], []>} : vector<80x32xbf16>, vector<32x32xbf16>, vector<80x32xf32> -> vector<80x32xf32>
    %128 = arith.addf %123, %127 : vector<80x32xf32>
    %129 = vector.extract_strided_slice %94 {offsets = [20, 0], sizes = [80, 32], strides = [1, 1]} : vector<102x32xbf16> to vector<80x32xbf16>
    %c6 = arith.constant 6 : index
    %c0_48 = arith.constant 0 : index
    %c0_49 = arith.constant 0 : index
    %130 = vector.load %arg3[%c6, %c0_48, %c0_49] : memref<9x32x32xbf16, #tpu.memory_space<vmem>>, vector<1x32x32xbf16>
    %131 = vector.shape_cast %130 : vector<1x32x32xbf16> to vector<32x32xbf16>
    %cst_50 = arith.constant dense<0.000000e+00> : vector<80x32xf32>
    %132 = tpu.matmul %129, %131, %cst_50 {dimension_numbers = #tpu.dot_dimension_numbers<[1], [0], [0], [1], [0, 0, 1, 1], [], []>} : vector<80x32xbf16>, vector<32x32xbf16>, vector<80x32xf32> -> vector<80x32xf32>
    %133 = arith.addf %128, %132 : vector<80x32xf32>
    %134 = vector.extract_strided_slice %94 {offsets = [21, 0], sizes = [80, 32], strides = [1, 1]} : vector<102x32xbf16> to vector<80x32xbf16>
    %c7 = arith.constant 7 : index
    %c0_51 = arith.constant 0 : index
    %c0_52 = arith.constant 0 : index
    %135 = vector.load %arg3[%c7, %c0_51, %c0_52] : memref<9x32x32xbf16, #tpu.memory_space<vmem>>, vector<1x32x32xbf16>
    %136 = vector.shape_cast %135 : vector<1x32x32xbf16> to vector<32x32xbf16>
    %cst_53 = arith.constant dense<0.000000e+00> : vector<80x32xf32>
    %137 = tpu.matmul %134, %136, %cst_53 {dimension_numbers = #tpu.dot_dimension_numbers<[1], [0], [0], [1], [0, 0, 1, 1], [], []>} : vector<80x32xbf16>, vector<32x32xbf16>, vector<80x32xf32> -> vector<80x32xf32>
    %138 = arith.addf %133, %137 : vector<80x32xf32>
    %139 = vector.extract_strided_slice %94 {offsets = [22, 0], sizes = [80, 32], strides = [1, 1]} : vector<102x32xbf16> to vector<80x32xbf16>
    %c8_54 = arith.constant 8 : index
    %c0_55 = arith.constant 0 : index
    %c0_56 = arith.constant 0 : index
    %140 = vector.load %arg3[%c8_54, %c0_55, %c0_56] : memref<9x32x32xbf16, #tpu.memory_space<vmem>>, vector<1x32x32xbf16>
    %141 = vector.shape_cast %140 : vector<1x32x32xbf16> to vector<32x32xbf16>
    %cst_57 = arith.constant dense<0.000000e+00> : vector<80x32xf32>
    %142 = tpu.matmul %139, %141, %cst_57 {dimension_numbers = #tpu.dot_dimension_numbers<[1], [0], [0], [1], [0, 0, 1, 1], [], []>} : vector<80x32xbf16>, vector<32x32xbf16>, vector<80x32xf32> -> vector<80x32xf32>
    %143 = arith.addf %138, %142 : vector<80x32xf32>
    %144 = vector.extract_strided_slice %143 {offsets = [0, 0], sizes = [8, 32], strides = [1, 1]} : vector<80x32xf32> to vector<8x32xf32>
    %c0_58 = arith.constant 0 : index
    %c0_59 = arith.constant 0 : index
    %c0_60 = arith.constant 0 : index
    %145 = vector.load %arg5[%c0_58, %c0_59, %c0_60] : memref<1x64x32xf32, #tpu.memory_space<vmem>>, vector<1x8x32xf32>
    %146 = vector.shape_cast %145 : vector<1x8x32xf32> to vector<8x32xf32>
    %147 = vector.shape_cast %144 : vector<8x32xf32> to vector<1x8x32xf32>
    tpu.vector_store %arg5[%c0_58, %c0_59, %c0_60], %147 {strides = array<i32>} : memref<1x64x32xf32, #tpu.memory_space<vmem>>, vector<1x8x32xf32>,
    %148 = vector.extract_strided_slice %143 {offsets = [10, 0], sizes = [8, 32], strides = [1, 1]} : vector<80x32xf32> to vector<8x32xf32>
    %c0_61 = arith.constant 0 : index
    %c8_62 = arith.constant 8 : index
    %c0_63 = arith.constant 0 : index
    %149 = vector.load %arg5[%c0_61, %c8_62, %c0_63] : memref<1x64x32xf32, #tpu.memory_space<vmem>>, vector<1x8x32xf32>
    %150 = vector.shape_cast %149 : vector<1x8x32xf32> to vector<8x32xf32>
    %151 = vector.shape_cast %148 : vector<8x32xf32> to vector<1x8x32xf32>
    tpu.vector_store %arg5[%c0_61, %c8_62, %c0_63], %151 {strides = array<i32>} : memref<1x64x32xf32, #tpu.memory_space<vmem>>, vector<1x8x32xf32>,
    %152 = vector.extract_strided_slice %143 {offsets = [20, 0], sizes = [8, 32], strides = [1, 1]} : vector<80x32xf32> to vector<8x32xf32>
    %c0_64 = arith.constant 0 : index
    %c16_65 = arith.constant 16 : index
    %c0_66 = arith.constant 0 : index
    %153 = vector.load %arg5[%c0_64, %c16_65, %c0_66] : memref<1x64x32xf32, #tpu.memory_space<vmem>>, vector<1x8x32xf32>
    %154 = vector.shape_cast %153 : vector<1x8x32xf32> to vector<8x32xf32>
    %155 = vector.shape_cast %152 : vector<8x32xf32> to vector<1x8x32xf32>
    tpu.vector_store %arg5[%c0_64, %c16_65, %c0_66], %155 {strides = array<i32>} : memref<1x64x32xf32, #tpu.memory_space<vmem>>, vector<1x8x32xf32>,
    %156 = vector.extract_strided_slice %143 {offsets = [30, 0], sizes = [8, 32], strides = [1, 1]} : vector<80x32xf32> to vector<8x32xf32>
    %c0_67 = arith.constant 0 : index
    %c24_68 = arith.constant 24 : index
    %c0_69 = arith.constant 0 : index
    %157 = vector.load %arg5[%c0_67, %c24_68, %c0_69] : memref<1x64x32xf32, #tpu.memory_space<vmem>>, vector<1x8x32xf32>
    %158 = vector.shape_cast %157 : vector<1x8x32xf32> to vector<8x32xf32>
    %159 = vector.shape_cast %156 : vector<8x32xf32> to vector<1x8x32xf32>
    tpu.vector_store %arg5[%c0_67, %c24_68, %c0_69], %159 {strides = array<i32>} : memref<1x64x32xf32, #tpu.memory_space<vmem>>, vector<1x8x32xf32>,
    %160 = vector.extract_strided_slice %143 {offsets = [40, 0], sizes = [8, 32], strides = [1, 1]} : vector<80x32xf32> to vector<8x32xf32>
    %c0_70 = arith.constant 0 : index
    %c32_71 = arith.constant 32 : index
    %c0_72 = arith.constant 0 : index
    %161 = vector.load %arg5[%c0_70, %c32_71, %c0_72] : memref<1x64x32xf32, #tpu.memory_space<vmem>>, vector<1x8x32xf32>
    %162 = vector.shape_cast %161 : vector<1x8x32xf32> to vector<8x32xf32>
    %163 = vector.shape_cast %160 : vector<8x32xf32> to vector<1x8x32xf32>
    tpu.vector_store %arg5[%c0_70, %c32_71, %c0_72], %163 {strides = array<i32>} : memref<1x64x32xf32, #tpu.memory_space<vmem>>, vector<1x8x32xf32>,
    %164 = vector.extract_strided_slice %143 {offsets = [50, 0], sizes = [8, 32], strides = [1, 1]} : vector<80x32xf32> to vector<8x32xf32>
    %c0_73 = arith.constant 0 : index
    %c40_74 = arith.constant 40 : index
    %c0_75 = arith.constant 0 : index
    %165 = vector.load %arg5[%c0_73, %c40_74, %c0_75] : memref<1x64x32xf32, #tpu.memory_space<vmem>>, vector<1x8x32xf32>
    %166 = vector.shape_cast %165 : vector<1x8x32xf32> to vector<8x32xf32>
    %167 = vector.shape_cast %164 : vector<8x32xf32> to vector<1x8x32xf32>
    tpu.vector_store %arg5[%c0_73, %c40_74, %c0_75], %167 {strides = array<i32>} : memref<1x64x32xf32, #tpu.memory_space<vmem>>, vector<1x8x32xf32>,
    %168 = vector.extract_strided_slice %143 {offsets = [60, 0], sizes = [8, 32], strides = [1, 1]} : vector<80x32xf32> to vector<8x32xf32>
    %c0_76 = arith.constant 0 : index
    %c48_77 = arith.constant 48 : index
    %c0_78 = arith.constant 0 : index
    %169 = vector.load %arg5[%c0_76, %c48_77, %c0_78] : memref<1x64x32xf32, #tpu.memory_space<vmem>>, vector<1x8x32xf32>
    %170 = vector.shape_cast %169 : vector<1x8x32xf32> to vector<8x32xf32>
    %171 = vector.shape_cast %168 : vector<8x32xf32> to vector<1x8x32xf32>
    tpu.vector_store %arg5[%c0_76, %c48_77, %c0_78], %171 {strides = array<i32>} : memref<1x64x32xf32, #tpu.memory_space<vmem>>, vector<1x8x32xf32>,
    %172 = vector.extract_strided_slice %143 {offsets = [70, 0], sizes = [8, 32], strides = [1, 1]} : vector<80x32xf32> to vector<8x32xf32>
    %c0_79 = arith.constant 0 : index
    %c56_80 = arith.constant 56 : index
    %c0_81 = arith.constant 0 : index
    %173 = vector.load %arg5[%c0_79, %c56_80, %c0_81] : memref<1x64x32xf32, #tpu.memory_space<vmem>>, vector<1x8x32xf32>
    %174 = vector.shape_cast %173 : vector<1x8x32xf32> to vector<8x32xf32>
    %175 = vector.shape_cast %172 : vector<8x32xf32> to vector<1x8x32xf32>
    tpu.vector_store %arg5[%c0_79, %c56_80, %c0_81], %175 {strides = array<i32>} : memref<1x64x32xf32, #tpu.memory_space<vmem>>, vector<1x8x32xf32>,
    return
  }
  func.func @transform_0(%arg0: i32) -> (i32, i32, i32) {
    %c0_i32 = arith.constant 0 : i32
    %c0_i32_0 = arith.constant 0 : i32
    %c0_i32_1 = arith.constant 0 : i32
    return %arg0, %c0_i32, %c0_i32_0 : i32, i32, i32
  }
  func.func @transform_1(%arg0: i32) -> (i32, i32, i32) {
    %c0_i32 = arith.constant 0 : i32
    %c0_i32_0 = arith.constant 0 : i32
    %c0_i32_1 = arith.constant 0 : i32
    return %arg0, %c0_i32, %c0_i32_0 : i32, i32, i32
  }
  func.func @transform_2(%arg0: i32) -> (i32, i32, i32) {
    %c0_i32 = arith.constant 0 : i32
    %c0_i32_0 = arith.constant 0 : i32
    %c0_i32_1 = arith.constant 0 : i32
    %c0_i32_2 = arith.constant 0 : i32
    return %c0_i32, %c0_i32_0, %c0_i32_1 : i32, i32, i32
  }
  func.func @transform_3(%arg0: i32) -> (i32, i32) {
    %c0_i32 = arith.constant 0 : i32
    %c0_i32_0 = arith.constant 0 : i32
    %c0_i32_1 = arith.constant 0 : i32
    return %c0_i32, %c0_i32_0 : i32, i32
  }
  func.func @transform_4(%arg0: i32) -> (i32, i32, i32) {
    %c0_i32 = arith.constant 0 : i32
    %c0_i32_0 = arith.constant 0 : i32
    %c0_i32_1 = arith.constant 0 : i32
    return %arg0, %c0_i32, %c0_i32_0 : i32, i32, i32
  }
}

</mosaic_0001>

<llo_original>
// kernel: _lambda_.4
$region0: #{_lambda_.4}
  #allocation0 [shape = 'u32[]', space=smem, size = 0x4, offset = 0x4, fixed_abs, tag = 'smem constant byte address 0x4 - core index']
  #allocation1 [shape = 'u32[72,128]{1,0:T(1,128)}', space=vmem, size = 0x9000, scoped, tag = 'internal scratch']
  %s0 = inlined_call_operand.hbm [shape: f32[2,16,32], index: 0, kind: input, shape index: {}]
  %s1 = inlined_call_operand.hbm [shape: f32[2,16,32], index: 1, kind: input, shape index: {}]
  %s2 = inlined_call_operand.vmem [shape: bf16[32,32], index: 2, kind: input, shape index: {}]
  %s3 = inlined_call_operand.vmem [shape: f32[1,32], index: 3, kind: input, shape index: {}]
  %s4 = inlined_call_operand.hbm [shape: bf16[32,32], index: 4, kind: input, shape index: {}]
  %s5 = inlined_call_operand.vmem [shape: f32[1,32], index: 5, kind: input, shape index: {}]
  %s6 = inlined_call_operand.hbm [shape: bf16[32,32], index: 6, kind: input, shape index: {}]
  %s7 = inlined_call_operand.vmem [shape: f32[1,32], index: 7, kind: input, shape index: {}]
  %s8 = inlined_call_operand.hbm [shape: bf16[32,32], index: 8, kind: input, shape index: {}]
  %s9 = inlined_call_operand.vmem [shape: f32[1,32], index: 9, kind: input, shape index: {}]
  %s10 = inlined_call_operand.vmem [shape: f32[2,16,32], index: 10, kind: output, shape index: {0}]
  %s11 = inlined_call_operand.hbm [shape: bf16[2,16,16], index: 11, kind: output, shape index: {1}]
  %s12 = inlined_call_operand.vmem [shape: bf16[2,16,16], index: 12, kind: output, shape index: {2}]
  %13 = xla_tuple %s10, %s11, %s12
  %s14 = sld [smem:[#allocation0]]
  $region109: #{_lambda_.4} parent=0
    _
  %s16 = ssub.s32 1, %s14
  %s17 = scalar_select 0, %s16, %s14
  $region1: #{_lambda_.4} parent=0
    #allocation2 [shape = 'u8[16384]{0}', space=vmem, size = 0x4000, scoped, tag = 'input window, operand 0']
    #allocation3 [shape = 's32[2]{0}', space=sflag, size = 0x8, scoped, tag = 'scoped memory for _lambda_.4']
    #allocation4 [shape = 's32[2]{0}', space=sflag, size = 0x8, scoped, tag = 'scoped memory for _lambda_.4']
    #allocation5 [shape = 'u8[16384]{0}', space=vmem, size = 0x4000, scoped, tag = 'input window, operand 1']
    #allocation6 [shape = 's32[2]{0}', space=sflag, size = 0x8, scoped, tag = 'scoped memory for _lambda_.4']
    #allocation7 [shape = 'u8[8192]{0}', space=vmem, size = 0x2000, scoped, tag = 'input window, operand 4, single buffered']
    #allocation8 [shape = 'u8[8192]{0}', space=vmem, size = 0x2000, scoped, tag = 'input window, operand 6, single buffered']
    #allocation9 [shape = 's32[1]{0}', space=sflag, size = 0x4, scoped, tag = 'scoped memory for _lambda_.4']
    #allocation10 [shape = 'u8[8192]{0}', space=vmem, size = 0x2000, scoped, tag = 'input window, operand 8, single buffered']
    #allocation11 [shape = 'u8[8192]{0}', space=vmem, size = 0x2000, scoped, tag = 'output window, operand 1']
    %18 = vsyncpa [#allocation3], 0
    %s19 = scalar_lea.sflag [#allocation3], 1
    %20 = vsyncpa %s19, 0
    %21 = vsyncpa [#allocation6], 0
    %s22 = scalar_lea.sflag [#allocation6], 1
    %23 = vsyncpa %s22, 0
    %24 = vsyncpa [#allocation9], 0
    %25 = vsyncpa [#allocation4], 0
    %s26 = scalar_lea.sflag [#allocation4], 1
    %27 = vsyncpa %s26, 0
    loop: start=0, step=1, limit=4
    $region2: #{_lambda_.4} parent=1 // loop_pre_header
      _
    $region3: #{_lambda_.4} parent=1 // loop_header
      %s29 = sphi 0, %s33
      %p30 = scmp.ge.s32.totalorder %s29, 4
      %s39 = sphi 0, %s41
      %s42 = sphi 0, %s39
      %s43 = sphi 0, %s42
      %s59 = sphi 0, %s43
      %s65 = sphi 0, %s67
      %s68 = sphi 0, %s65
      %s69 = sphi 0, %s68
      %s85 = sphi 0, %s69
      %s89 = sphi 0, %s89
      %s91 = sphi 0, %s89
      %s92 = sphi 0, %s91
      %s106 = sphi 0, %s92
      %s110 = sphi 0, %s110
      %s112 = sphi 0, %s110
      %s113 = sphi 0, %s112
      %s127 = sphi 0, %s113
      %s131 = sphi 0, %s131
      %s133 = sphi 0, %s131
      %s134 = sphi 0, %s133
      %s148 = sphi 0, %s134
      %s152 = sphi 0, %s152
      %s154 = sphi 0, %s152
      %s155 = sphi 0, %s154
      %s169 = sphi 0, %s155
      %s173 = sphi 0, %s173
      %s175 = sphi 0, %s173
      %s176 = sphi 0, %s175
      %s190 = sphi 0, %s176
      %s194 = sphi 0, %s194
      %s196 = sphi 0, %s194
      %s197 = sphi 0, %s196
      %s211 = sphi 0, %s197
      %s215 = sphi 0, %s215
      %s217 = sphi 0, %s215
      %s218 = sphi 0, %s217
      %s232 = sphi 0, %s218
      %s236 = sphi 0, %s236
      %s238 = sphi 0, %s236
      %s239 = sphi 0, %s238
      %s253 = sphi 0, %s239
      %s259 = sphi 0, %s261
      %s262 = sphi 0, %s259
      %s263 = sphi 0, %s262
      %s279 = sphi 0, %s263
      %s285 = sphi 0, %s287
      %s288 = sphi 0, %s285
      %s289 = sphi 0, %s288
      %s305 = sphi 0, %s289
      %s311 = sphi 0, %s313
      %s314 = sphi 0, %s311
      %s315 = sphi 0, %s314
      %s331 = sphi 0, %s315
    $region4: #{_lambda_.4} parent=1 // loop_header_branch
      %32 = sbr.rel (%p30) target = $region8
    $region5: #{_lambda_.4} parent=1 // loop_body
      %s34 = ssub.s32 %s29, 1
      %s35 = ssub.s32 %s29, 2
      %s36 = sadd.s32 %s29, 1
      %s37 = ssub.s32 %s29, %s36
      %p38 = scmp.eq.s32.totalorder %s37, 0
      %s40 = sadd.s32 %s39, 1
      %s41 = scalar_select %p38, %s39, %s40
      %p44 = pneg %p38
      %p45 = scmp.eq.s32.totalorder %s29, 1
      %p46 = por %p44, %p45
      %p47 = scmp.ne.s32.totalorder %s39, %s42
      %p48 = scmp.eq.s32.totalorder %s29, 0
      %p49 = por %p47, %p48
      %p50 = scmp.ne.s32.totalorder %s39, %s42
      %p51 = scmp.eq.s32.totalorder %s34, 1
      %p52 = por %p50, %p51
      %p53 = scmp.ne.s32.totalorder %s42, %s43
      %p54 = scmp.eq.s32.totalorder %s34, 0
      %p55 = por %p53, %p54
      %p56 = scmp.ne.s32.totalorder %s42, %s43
      %p57 = scmp.eq.s32.totalorder %s35, 1
      %p58 = por %p56, %p57
      %p60 = scmp.ne.s32.totalorder %s43, %s59
      %p61 = scmp.eq.s32.totalorder %s35, 0
      %p62 = por %p60, %p61
      %s63 = ssub.s32 %s29, %s36
      %p64 = scmp.eq.s32.totalorder %s63, 0
      %s66 = sadd.s32 %s65, 1
      %s67 = scalar_select %p64, %s65, %s66
      %p70 = pneg %p64
      %p71 = scmp.eq.s32.totalorder %s29, 1
      %p72 = por %p70, %p71
      %p73 = scmp.ne.s32.totalorder %s65, %s68
      %p74 = scmp.eq.s32.totalorder %s29, 0
      %p75 = por %p73, %p74
      %p76 = scmp.ne.s32.totalorder %s65, %s68
      %p77 = scmp.eq.s32.totalorder %s34, 1
      %p78 = por %p76, %p77
      %p79 = scmp.ne.s32.totalorder %s68, %s69
      %p80 = scmp.eq.s32.totalorder %s34, 0
      %p81 = por %p79, %p80
      %p82 = scmp.ne.s32.totalorder %s68, %s69
      %p83 = scmp.eq.s32.totalorder %s35, 1
      %p84 = por %p82, %p83
      %p86 = scmp.ne.s32.totalorder %s69, %s85
      %p87 = scmp.eq.s32.totalorder %s35, 0
      %p88 = por %p86, %p87
      %s90 = sadd.s32 %s89, 1
      %p93 = scmp.eq.s32.totalorder %s29, 1
      %p94 = scmp.ne.s32.totalorder %s89, %s91
      %p95 = scmp.eq.s32.totalorder %s29, 0
      %p96 = por %p94, %p95
      %p97 = scmp.ne.s32.totalorder %s89, %s91
      %p98 = scmp.eq.s32.totalorder %s34, 1
      %p99 = por %p97, %p98
      %p100 = scmp.ne.s32.totalorder %s91, %s92
      %p101 = scmp.eq.s32.totalorder %s34, 0
      %p102 = por %p100, %p101
      %p103 = scmp.ne.s32.totalorder %s91, %s92
      %p104 = scmp.eq.s32.totalorder %s35, 1
      %p105 = por %p103, %p104
      %p107 = scmp.ne.s32.totalorder %s92, %s106
      %p108 = scmp.eq.s32.totalorder %s35, 0
      %p109 = por %p107, %p108
      %s111 = sadd.s32 %s110, 1
      %p114 = scmp.eq.s32.totalorder %s29, 1
      %p115 = scmp.ne.s32.totalorder %s110, %s112
      %p116 = scmp.eq.s32.totalorder %s29, 0
      %p117 = por %p115, %p116
      %p118 = scmp.ne.s32.totalorder %s110, %s112
      %p119 = scmp.eq.s32.totalorder %s34, 1
      %p120 = por %p118, %p119
      %p121 = scmp.ne.s32.totalorder %s112, %s113
      %p122 = scmp.eq.s32.totalorder %s34, 0
      %p123 = por %p121, %p122
      %p124 = scmp.ne.s32.totalorder %s112, %s113
      %p125 = scmp.eq.s32.totalorder %s35, 1
      %p126 = por %p124, %p125
      %p128 = scmp.ne.s32.totalorder %s113, %s127
      %p129 = scmp.eq.s32.totalorder %s35, 0
      %p130 = por %p128, %p129
      %s132 = sadd.s32 %s131, 1
      %p135 = scmp.eq.s32.totalorder %s29, 1
      %p136 = scmp.ne.s32.totalorder %s131, %s133
      %p137 = scmp.eq.s32.totalorder %s29, 0
      %p138 = por %p136, %p137
      %p139 = scmp.ne.s32.totalorder %s131, %s133
      %p140 = scmp.eq.s32.totalorder %s34, 1
      %p141 = por %p139, %p140
      %p142 = scmp.ne.s32.totalorder %s133, %s134
      %p143 = scmp.eq.s32.totalorder %s34, 0
      %p144 = por %p142, %p143
      %p145 = scmp.ne.s32.totalorder %s133, %s134
      %p146 = scmp.eq.s32.totalorder %s35, 1
      %p147 = por %p145, %p146
      %p149 = scmp.ne.s32.totalorder %s134, %s148
      %p150 = scmp.eq.s32.totalorder %s35, 0
      %p151 = por %p149, %p150
      %s153 = sadd.s32 %s152, 1
      %p156 = scmp.eq.s32.totalorder %s29, 1
      %p157 = scmp.ne.s32.totalorder %s152, %s154
      %p158 = scmp.eq.s32.totalorder %s29, 0
      %p159 = por %p157, %p158
      %p160 = scmp.ne.s32.totalorder %s152, %s154
      %p161 = scmp.eq.s32.totalorder %s34, 1
      %p162 = por %p160, %p161
      %p163 = scmp.ne.s32.totalorder %s154, %s155
      %p164 = scmp.eq.s32.totalorder %s34, 0
      %p165 = por %p163, %p164
      %p166 = scmp.ne.s32.totalorder %s154, %s155
      %p167 = scmp.eq.s32.totalorder %s35, 1
      %p168 = por %p166, %p167
      %p170 = scmp.ne.s32.totalorder %s155, %s169
      %p171 = scmp.eq.s32.totalorder %s35, 0
      %p172 = por %p170, %p171
      %s174 = sadd.s32 %s173, 1
      %p177 = scmp.eq.s32.totalorder %s29, 1
      %p178 = scmp.ne.s32.totalorder %s173, %s175
      %p179 = scmp.eq.s32.totalorder %s29, 0
      %p180 = por %p178, %p179
      %p181 = scmp.ne.s32.totalorder %s173, %s175
      %p182 = scmp.eq.s32.totalorder %s34, 1
      %p183 = por %p181, %p182
      %p184 = scmp.ne.s32.totalorder %s175, %s176
      %p185 = scmp.eq.s32.totalorder %s34, 0
      %p186 = por %p184, %p185
      %p187 = scmp.ne.s32.totalorder %s175, %s176
      %p188 = scmp.eq.s32.totalorder %s35, 1
      %p189 = por %p187, %p188
      %p191 = scmp.ne.s32.totalorder %s176, %s190
      %p192 = scmp.eq.s32.totalorder %s35, 0
      %p193 = por %p191, %p192
      %s195 = sadd.s32 %s194, 1
      %p198 = scmp.eq.s32.totalorder %s29, 1
      %p199 = scmp.ne.s32.totalorder %s194, %s196
      %p200 = scmp.eq.s32.totalorder %s29, 0
      %p201 = por %p199, %p200
      %p202 = scmp.ne.s32.totalorder %s194, %s196
      %p203 = scmp.eq.s32.totalorder %s34, 1
      %p204 = por %p202, %p203
      %p205 = scmp.ne.s32.totalorder %s196, %s197
      %p206 = scmp.eq.s32.totalorder %s34, 0
      %p207 = por %p205, %p206
      %p208 = scmp.ne.s32.totalorder %s196, %s197
      %p209 = scmp.eq.s32.totalorder %s35, 1
      %p210 = por %p208, %p209
      %p212 = scmp.ne.s32.totalorder %s197, %s211
      %p213 = scmp.eq.s32.totalorder %s35, 0
      %p214 = por %p212, %p213
      %s216 = sadd.s32 %s215, 1
      %p219 = scmp.eq.s32.totalorder %s29, 1
      %p220 = scmp.ne.s32.totalorder %s215, %s217
      %p221 = scmp.eq.s32.totalorder %s29, 0
      %p222 = por %p220, %p221
      %p223 = scmp.ne.s32.totalorder %s215, %s217
      %p224 = scmp.eq.s32.totalorder %s34, 1
      %p225 = por %p223, %p224
      %p226 = scmp.ne.s32.totalorder %s217, %s218
      %p227 = scmp.eq.s32.totalorder %s34, 0
      %p228 = por %p226, %p227
      %p229 = scmp.ne.s32.totalorder %s217, %s218
      %p230 = scmp.eq.s32.totalorder %s35, 1
      %p231 = por %p229, %p230
      %p233 = scmp.ne.s32.totalorder %s218, %s232
      %p234 = scmp.eq.s32.totalorder %s35, 0
      %p235 = por %p233, %p234
      %s237 = sadd.s32 %s236, 1
      %p240 = scmp.eq.s32.totalorder %s29, 1
      %p241 = scmp.ne.s32.totalorder %s236, %s238
      %p242 = scmp.eq.s32.totalorder %s29, 0
      %p243 = por %p241, %p242
      %p244 = scmp.ne.s32.totalorder %s236, %s238
      %p245 = scmp.eq.s32.totalorder %s34, 1
      %p246 = por %p244, %p245
      %p247 = scmp.ne.s32.totalorder %s238, %s239
      %p248 = scmp.eq.s32.totalorder %s34, 0
      %p249 = por %p247, %p248
      %p250 = scmp.ne.s32.totalorder %s238, %s239
      %p251 = scmp.eq.s32.totalorder %s35, 1
      %p252 = por %p250, %p251
      %p254 = scmp.ne.s32.totalorder %s239, %s253
      %p255 = scmp.eq.s32.totalorder %s35, 0
      %p256 = por %p254, %p255
      %s257 = ssub.s32 %s29, %s36
      %p258 = scmp.eq.s32.totalorder %s257, 0
      %s260 = sadd.s32 %s259, 1
      %s261 = scalar_select %p258, %s259, %s260
      %p264 = pneg %p258
      %p265 = scmp.eq.s32.totalorder %s29, 1
      %p266 = por %p264, %p265
      %p267 = scmp.ne.s32.totalorder %s259, %s262
      %p268 = scmp.eq.s32.totalorder %s29, 0
      %p269 = por %p267, %p268
      %p270 = scmp.ne.s32.totalorder %s259, %s262
      %p271 = scmp.eq.s32.totalorder %s34, 1
      %p272 = por %p270, %p271
      %p273 = scmp.ne.s32.totalorder %s262, %s263
      %p274 = scmp.eq.s32.totalorder %s34, 0
      %p275 = por %p273, %p274
      %p276 = scmp.ne.s32.totalorder %s262, %s263
      %p277 = scmp.eq.s32.totalorder %s35, 1
      %p278 = por %p276, %p277
      %p280 = scmp.ne.s32.totalorder %s263, %s279
      %p281 = scmp.eq.s32.totalorder %s35, 0
      %p282 = por %p280, %p281
      %s283 = ssub.s32 %s29, %s36
      %p284 = scmp.eq.s32.totalorder %s283, 0
      %s286 = sadd.s32 %s285, 1
      %s287 = scalar_select %p284, %s285, %s286
      %p290 = pneg %p284
      %p291 = scmp.eq.s32.totalorder %s29, 1
      %p292 = por %p290, %p291
      %p293 = scmp.ne.s32.totalorder %s285, %s288
      %p294 = scmp.eq.s32.totalorder %s29, 0
      %p295 = por %p293, %p294
      %p296 = scmp.ne.s32.totalorder %s285, %s288
      %p297 = scmp.eq.s32.totalorder %s34, 1
      %p298 = por %p296, %p297
      %p299 = scmp.ne.s32.totalorder %s288, %s289
      %p300 = scmp.eq.s32.totalorder %s34, 0
      %p301 = por %p299, %p300
      %p302 = scmp.ne.s32.totalorder %s288, %s289
      %p303 = scmp.eq.s32.totalorder %s35, 1
      %p304 = por %p302, %p303
      %p306 = scmp.ne.s32.totalorder %s289, %s305
      %p307 = scmp.eq.s32.totalorder %s35, 0
      %p308 = por %p306, %p307
      %s309 = ssub.s32 %s29, %s36
      %p310 = scmp.eq.s32.totalorder %s309, 0
      %s312 = sadd.s32 %s311, 1
      %s313 = scalar_select %p310, %s311, %s312
      %p316 = pneg %p310
      %p317 = scmp.eq.s32.totalorder %s29, 1
      %p318 = por %p316, %p317
      %p319 = scmp.ne.s32.totalorder %s311, %s314
      %p320 = scmp.eq.s32.totalorder %s29, 0
      %p321 = por %p319, %p320
      %p322 = scmp.ne.s32.totalorder %s311, %s314
      %p323 = scmp.eq.s32.totalorder %s34, 1
      %p324 = por %p322, %p323
      %p325 = scmp.ne.s32.totalorder %s314, %s315
      %p326 = scmp.eq.s32.totalorder %s34, 0
      %p327 = por %p325, %p326
      %p328 = scmp.ne.s32.totalorder %s314, %s315
      %p329 = scmp.eq.s32.totalorder %s35, 1
      %p330 = por %p328, %p329
      %p332 = scmp.ne.s32.totalorder %s315, %s331
      %p333 = scmp.eq.s32.totalorder %s35, 0
      %p334 = por %p332, %p333
      %p335 = scmp.le.s32.totalorder 1, %s29
      %p336 = scmp.lt.s32.totalorder %s29, 3
      %p337 = pnand %p335, %p336
      %p338 = pneg %p337
      // Predicated region
      $region9: #{_lambda_.4} parent=5 // pred_check
        _
      $region10: #{_lambda_.4} parent=5 // pred_check_branch
        %340 = sbr.rel (%p337) target = $region12
      $region11: #{_lambda_.4} parent=5 // pred_region
        %s341 = ssub.s32 %s29, 1
        // Predicated region
        $region13: #{_lambda_.4} parent=11 // pred_check
          %p342 = pneg %p102
        $region14: #{_lambda_.4} parent=11 // pred_check_branch
          %344 = sbr.rel (%p342) target = $region16
        $region15: #{_lambda_.4} parent=11 // pred_region
          _
        $region16: #{_lambda_.4} parent=11 // pred_fallthru
          _
        // Predicated region
        $region17: #{_lambda_.4} parent=11 // pred_check
          %p345 = pneg %p123
        $region18: #{_lambda_.4} parent=11 // pred_check_branch
          %347 = sbr.rel (%p345) target = $region20
        $region19: #{_lambda_.4} parent=11 // pred_region
          _
        $region20: #{_lambda_.4} parent=11 // pred_fallthru
          _
        // Predicated region
        $region21: #{_lambda_.4} parent=11 // pred_check
          %p348 = pneg %p144
        $region22: #{_lambda_.4} parent=11 // pred_check_branch
          %350 = sbr.rel (%p348) target = $region24
        $region23: #{_lambda_.4} parent=11 // pred_region
          %352 = vsyncadd [#allocation6], 0
          %s353 = sshll.u32 %s4, 4
          %s354 = int_to_ptr.hbm [resolvable:$true] %s353
          %s355 = sshll.u32 [#allocation7], 4
          %s356 = int_to_ptr.vmem [resolvable:$true] %s355
          %361 = dma.hbm_to_vmem [thread:$0]  %s354, 256, %s356, [#allocation6], 64, 64, 4
        $region24: #{_lambda_.4} parent=11 // pred_fallthru
          _
        // Predicated region
        $region25: #{_lambda_.4} parent=11 // pred_check
          %p362 = pneg %p165
        $region26: #{_lambda_.4} parent=11 // pred_check_branch
          %364 = sbr.rel (%p362) target = $region28
        $region27: #{_lambda_.4} parent=11 // pred_region
          _
        $region28: #{_lambda_.4} parent=11 // pred_fallthru
          _
        // Predicated region
        $region29: #{_lambda_.4} parent=11 // pred_check
          %p365 = pneg %p186
        $region30: #{_lambda_.4} parent=11 // pred_check_branch
          %367 = sbr.rel (%p365) target = $region32
        $region31: #{_lambda_.4} parent=11 // pred_region
          %369 = vsyncadd [#allocation9], 0
          %s370 = sshll.u32 %s6, 4
          %s371 = int_to_ptr.hbm [resolvable:$true] %s370
          %s372 = sshll.u32 [#allocation8], 4
          %s373 = int_to_ptr.vmem [resolvable:$true] %s372
          %378 = dma.hbm_to_vmem [thread:$0]  %s371, 256, %s373, [#allocation9], 64, 64, 4
        $region32: #{_lambda_.4} parent=11 // pred_fallthru
          _
        // Predicated region
        $region33: #{_lambda_.4} parent=11 // pred_check
          %p379 = pneg %p207
        $region34: #{_lambda_.4} parent=11 // pred_check_branch
          %381 = sbr.rel (%p379) target = $region36
        $region35: #{_lambda_.4} parent=11 // pred_region
          _
        $region36: #{_lambda_.4} parent=11 // pred_fallthru
          _
        // Predicated region
        $region37: #{_lambda_.4} parent=11 // pred_check
          %p382 = pneg %p228
        $region38: #{_lambda_.4} parent=11 // pred_check_branch
          %384 = sbr.rel (%p382) target = $region40
        $region39: #{_lambda_.4} parent=11 // pred_region
          %386 = vsyncadd [#allocation9], 0
          %s387 = sshll.u32 %s8, 4
          %s388 = int_to_ptr.hbm [resolvable:$true] %s387
          %s389 = sshll.u32 [#allocation10], 4
          %s390 = int_to_ptr.vmem [resolvable:$true] %s389
          %395 = dma.hbm_to_vmem [thread:$0]  %s388, 256, %s390, [#allocation9], 64, 64, 4
        $region40: #{_lambda_.4} parent=11 // pred_fallthru
          _
        // Predicated region
        $region41: #{_lambda_.4} parent=11 // pred_check
          %p396 = pneg %p249
        $region42: #{_lambda_.4} parent=11 // pred_check_branch
          %398 = sbr.rel (%p396) target = $region44
        $region43: #{_lambda_.4} parent=11 // pred_region
          _
        $region44: #{_lambda_.4} parent=11 // pred_fallthru
          _
      $region12: #{_lambda_.4} parent=5 // pred_fallthru
        _
      %p399 = scmp.lt.s32.totalorder %s29, 2
      // Predicated region
      $region45: #{_lambda_.4} parent=5 // pred_check
        %p400 = pneg %p399
      $region46: #{_lambda_.4} parent=5 // pred_check_branch
        %402 = sbr.rel (%p400) target = $region48
      $region47: #{_lambda_.4} parent=5 // pred_region
        // Predicated region
        $region49: #{_lambda_.4} parent=47 // pred_check
          %p403 = pneg %p49
        $region50: #{_lambda_.4} parent=47 // pred_check_branch
          %405 = sbr.rel (%p403) target = $region52
        $region51: #{_lambda_.4} parent=47 // pred_region
          %s406 = sand.u32 %s39, 1
          %s407 = scalar_lea.sflag [#allocation3], %s406
          %s408 = sand.u32 %s39, 1
          %s409 = smul.addr %s408, 16
          %s410 = scalar_lea.vmem [#allocation2], %s409
          %412 = vsyncadd %s407, 0
          %s413 = smul.addr %s29, 2
          %s414 = smul.addr %s413, 8
          %s415 = scalar_lea.hbm %s0, %s414
          %s416 = sshll.u32 %s415, 4
          %s417 = int_to_ptr.hbm [resolvable:$true] %s416
          %s418 = sshll.u32 %s410, 4
          %s419 = int_to_ptr.vmem [resolvable:$true] %s418
          %424 = dma.hbm_to_vmem [thread:$0]  %s417, 256, %s419, %s407, 128, 128, 8
        $region52: #{_lambda_.4} parent=47 // pred_fallthru
          _
        // Predicated region
        $region53: #{_lambda_.4} parent=47 // pred_check
          %p425 = pneg %p75
        $region54: #{_lambda_.4} parent=47 // pred_check_branch
          %427 = sbr.rel (%p425) target = $region56
        $region55: #{_lambda_.4} parent=47 // pred_region
          %s428 = sand.u32 %s29, 1
          %s429 = scalar_lea.sflag [#allocation6], %s428
          %s430 = sand.u32 %s65, 1
          %s431 = smul.addr %s430, 16
          %s432 = scalar_lea.vmem [#allocation5], %s431
          %434 = vsyncadd %s429, 0
          %s435 = smul.addr %s29, 2
          %s436 = smul.addr %s435, 8
          %s437 = scalar_lea.hbm %s1, %s436
          %s438 = sshll.u32 %s437, 4
          %s439 = int_to_ptr.hbm [resolvable:$true] %s438
          %s440 = sshll.u32 %s432, 4
          %s441 = int_to_ptr.vmem [resolvable:$true] %s440
          %446 = dma.hbm_to_vmem [thread:$0]  %s439, 256, %s441, %s429, 128, 128, 8
        $region56: #{_lambda_.4} parent=47 // pred_fallthru
          _
      $region48: #{_lambda_.4} parent=5 // pred_fallthru
        _
      %p447 = scmp.le.s32.totalorder 1, %s29
      %p448 = scmp.lt.s32.totalorder %s29, 3
      %p449 = pnand %p447, %p448
      %p450 = pneg %p449
      // Predicated region
      $region57: #{_lambda_.4} parent=5 // pred_check
        _
      $region58: #{_lambda_.4} parent=5 // pred_check_branch
        %452 = sbr.rel (%p449) target = $region60
      $region59: #{_lambda_.4} parent=5 // pred_region
        %s453 = ssub.s32 %s29, 1
        %s454 = sand.u32 %s42, 1
        %s455 = scalar_lea.sflag [#allocation3], %s454
        %s456 = sand.u32 %s42, 1
        %s457 = smul.addr %s456, 16
        %s458 = scalar_lea.vmem [#allocation2], %s457
        // Predicated region
        $region61: #{_lambda_.4} parent=59 // pred_check
          %p459 = pneg %p55
        $region62: #{_lambda_.4} parent=59 // pred_check_branch
          %461 = sbr.rel (%p459) target = $region64
        $region63: #{_lambda_.4} parent=59 // pred_region
          %463 = dma.done %s455, 256
        $region64: #{_lambda_.4} parent=59 // pred_fallthru
          _
        %s464 = sand.u32 %s34, 1
        %s465 = scalar_lea.sflag [#allocation6], %s464
        %s466 = sand.u32 %s68, 1
        %s467 = smul.addr %s466, 16
        %s468 = scalar_lea.vmem [#allocation5], %s467
        // Predicated region
        $region65: #{_lambda_.4} parent=59 // pred_check
          %p469 = pneg %p81
        $region66: #{_lambda_.4} parent=59 // pred_check_branch
          %471 = sbr.rel (%p469) target = $region68
        $region67: #{_lambda_.4} parent=59 // pred_region
          %473 = dma.done %s465, 256
        $region68: #{_lambda_.4} parent=59 // pred_fallthru
          _
        // Predicated region
        $region69: #{_lambda_.4} parent=59 // pred_check
          %p474 = pneg %p144
        $region70: #{_lambda_.4} parent=59 // pred_check_branch
          %476 = sbr.rel (%p474) target = $region72
        $region71: #{_lambda_.4} parent=59 // pred_region
          %478 = dma.done [#allocation6], 256
        $region72: #{_lambda_.4} parent=59 // pred_fallthru
          _
        // Predicated region
        $region73: #{_lambda_.4} parent=59 // pred_check
          %p479 = pneg %p186
        $region74: #{_lambda_.4} parent=59 // pred_check_branch
          %481 = sbr.rel (%p479) target = $region76
        $region75: #{_lambda_.4} parent=59 // pred_region
          %483 = dma.done [#allocation9], 256
        $region76: #{_lambda_.4} parent=59 // pred_fallthru
          _
        // Predicated region
        $region77: #{_lambda_.4} parent=59 // pred_check
          %p484 = pneg %p228
        $region78: #{_lambda_.4} parent=59 // pred_check_branch
          %486 = sbr.rel (%p484) target = $region80
        $region79: #{_lambda_.4} parent=59 // pred_region
          %488 = dma.done [#allocation9], 256
        $region80: #{_lambda_.4} parent=59 // pred_fallthru
          _
        %s489 = sand.u32 %s42, 1
        %s490 = scalar_lea.sflag [#allocation3], %s489
        %s491 = sand.u32 %s42, 1
        %s492 = smul.addr %s491, 16
        %s493 = scalar_lea.vmem [#allocation2], %s492
        %p494 = pneg %p55
        %p495 = pneg %p52
        %s496 = sand.u32 %s34, 1
        %s497 = scalar_lea.sflag [#allocation6], %s496
        %s498 = sand.u32 %s68, 1
        %s499 = smul.addr %s498, 16
        %s500 = scalar_lea.vmem [#allocation5], %s499
        %p501 = pneg %p81
        %p502 = pneg %p78
        %p503 = pneg %p102
        %p504 = pneg %p99
        %p505 = pneg %p123
        %p506 = pneg %p120
        %p507 = pneg %p144
        %p508 = pneg %p141
        %p509 = pneg %p165
        %p510 = pneg %p162
        %p511 = pneg %p186
        %p512 = pneg %p183
        %p513 = pneg %p207
        %p514 = pneg %p204
        %p515 = pneg %p228
        %p516 = pneg %p225
        %p517 = pneg %p249
        %p518 = pneg %p246
        %p519 = pneg %p275
        %p520 = pneg %p272
        %p521 = scmp.lt.s32.totalorder %s34, 1
        %s522 = scalar_select %p521, %s34, 1
        %s523 = smul.addr %s522, 2
        %s524 = smul.addr %s523, 8
        %s525 = scalar_lea.vmem %s10, %s524
        %p526 = pneg %p301
        %p527 = pneg %p298
        %s528 = sand.u32 %s288, 1
        %s529 = scalar_lea.sflag [#allocation4], %s528
        %s530 = sand.u32 %s288, 1
        %s531 = smul.addr %s530, 8
        %s532 = scalar_lea.vmem [#allocation11], %s531
        %p533 = pneg %p327
        %p534 = pneg %p324
        %p535 = scmp.lt.s32.totalorder %s34, 1
        %s536 = scalar_select %p535, %s34, 1
        %s537 = smul.addr %s536, 2
        %s538 = smul.addr %s537, 4
        %s539 = scalar_lea.vmem %s12, %s538
        %p540 = scmp.lt.s32.totalorder %s34, 1
        %s541 = scalar_select %p540, %s34, 1
        %s542 = smul.addr %s541, 2
        %s543 = smul.addr %s542, 8
        %s544 = scalar_lea.vmem %s10, %s543
        %p545 = scmp.lt.s32.totalorder %s34, 1
        %s546 = scalar_select %p545, %s34, 1
        %s547 = smul.addr %s546, 2
        %s548 = smul.addr %s547, 4
        %s549 = scalar_lea.vmem %s12, %s548
        %v551 = vld [vmem:[%s458] sm:$0xff]
        %v552 = vld [vmem:[%s458 + $0x8] sm:$0xff]
        %v553 = vld [vmem:[%s468] sm:$0xff]
        %v554 = vld [vmem:[%s468 + $0x8] sm:$0xff]
        %vm555 = vcmask 261120
        %v556 = vsel %vm555, %v551, 0.0
        %v557 = vsel %vm555, %v552, 0.0
        %v558 = vadd.f32 %v556, %v557
        %v559 = vrot.slane %v558, 4
        %v560 = vadd.f32 %v558, %v559
        %v561 = vrot.slane %v560, 2
        %v562 = vadd.f32 %v560, %v561
        %v563 = vrot.slane %v562, 1
        %v564 = vadd.f32 %v562, %v563
        %v565 = vrcp.pop 16.0
        %v566 = vmul.f32 16.0, %v565
        %v567 = vsub.f32 1.0, %v566
        %v568 = vmul.f32 %v565, %v567
        %v569 = vadd.f32 %v565, %v568
        %vm570 = vweird.f32 %v565
        %v571 = vsel %vm570, %v565, %v569
        %v572 = vmul.f32 %v564, %v571
        %v573 = vsub.f32 %v551, %v572
        %v574 = vsub.f32 %v552, %v572
        %v575 = vmul.f32 %v573, %v573
        %v576 = vmul.f32 %v574, %v574
        %v577 = vsel %vm555, %v575, 0.0
        %v578 = vsel %vm555, %v576, 0.0
        %v579 = vadd.f32 %v577, %v578
        %v580 = vrot.slane %v579, 4
        %v581 = vadd.f32 %v579, %v580
        %v582 = vrot.slane %v581, 2
        %v583 = vadd.f32 %v581, %v582
        %v584 = vrot.slane %v583, 1
        %v585 = vadd.f32 %v583, %v584
        %v586 = vrcp.pop 15.0
        %v587 = vmul.f32 15.0, %v586
        %v588 = vsub.f32 1.0, %v587
        %v589 = vmul.f32 %v586, %v588
        %v590 = vadd.f32 %v586, %v589
        %vm591 = vweird.f32 %v586
        %v592 = vsel %vm591, %v586, %v590
        %v593 = vmul.f32 %v585, %v592
        %v594 = vadd.f32 %v593, 1e-05
        %v595 = vrsqrt.pop %v594
        %v596 = vmul.f32 %v595, %v594
        %v597 = vmul.f32 %v596, %v595
        %v598 = vmul.f32 0.5, %v597
        %v599 = vsub.f32 1.5, %v598
        %v600 = vmul.f32 %v595, %v599
        %vm601 = vweird.f32 %v594
        %vm602 = vweird.f32 %v595
        %vm603 = vmor %vm601, %vm602
        %v604 = vsel %vm603, %v595, %v600
        %v605 = vmul.f32 %v573, %v604
        %v606 = vmul.f32 %v574, %v604
        %v607 = vpack.c.bf16 %v606, %v605
        %v608 = vld [vmem:[%s2] sm:$0xf]
        %v609 = vld [vmem:[%s2 + $0x4] sm:$0xf]
        %v610 = vld [vmem:[%s2 + $0x8] sm:$0xf]
        %v611 = vld [vmem:[%s2 + $0xc] sm:$0xf]
        %v612 = vld [vmem:[%s3] sm:$0x1]
        %v614 = vperm.slane %v612, 0
        %v620 = vunpack.c.l.b16 %v608
        %v621 = vunpack.c.l.b16 %v609
        %v622 = vunpack.c.l.b16 %v610
        %v623 = vunpack.c.l.b16 %v611
        %v624 = vpack.c.b16 %v621, %v620
        %v625 = vpack.c.b16 %v623, %v622
        %v629 = vsel %vm555, %v607, 0
        %631 = vmatpush.bf16.msra.mxu0 0
        %632 = vmatpush.bf16.msra.mxu0 0
        %633 = vmatpush.bf16.msra.mxu0 0
        %634 = vmatpush.bf16.msra.mxu0 0
        %635 = vmatpush.bf16.msra.mxu0 0
        %636 = vmatpush.bf16.msra.mxu0 0
        %637 = vmatpush.bf16.msra.mxu0 %v625
        %638 = vmatpush.bf16.msra.mxu0 %v624
        %639 = vmatmul.bf16.gmra.mxu0 %v629
        %v640 = vpop.f32.mrf.mxu0
        %v641 = vadd.f32 %v614, %v640
        %v642 = vpop.f32.mrf.mxu0
        %v643 = vadd.f32 %v614, %v642
        %644 = vdwg.mxu0
        %v645 = vsel %vm555, %v553, 0.0
        %v646 = vsel %vm555, %v554, 0.0
        %v647 = vadd.f32 %v645, %v646
        %v648 = vrot.slane %v647, 4
        %v649 = vadd.f32 %v647, %v648
        %v650 = vrot.slane %v649, 2
        %v651 = vadd.f32 %v649, %v650
        %v652 = vrot.slane %v651, 1
        %v653 = vadd.f32 %v651, %v652
        %v654 = vmul.f32 %v653, %v571
        %v655 = vsub.f32 %v553, %v654
        %v656 = vsub.f32 %v554, %v654
        %v657 = vmul.f32 %v655, %v655
        %v658 = vmul.f32 %v656, %v656
        %v659 = vsel %vm555, %v657, 0.0
        %v660 = vsel %vm555, %v658, 0.0
        %v661 = vadd.f32 %v659, %v660
        %v662 = vrot.slane %v661, 4
        %v663 = vadd.f32 %v661, %v662
        %v664 = vrot.slane %v663, 2
        %v665 = vadd.f32 %v663, %v664
        %v666 = vrot.slane %v665, 1
        %v667 = vadd.f32 %v665, %v666
        %v668 = vmul.f32 %v667, %v592
        %v669 = vadd.f32 %v668, 1e-05
        %v670 = vrsqrt.pop %v669
        %v671 = vmul.f32 %v670, %v669
        %v672 = vmul.f32 %v671, %v670
        %v673 = vmul.f32 0.5, %v672
        %v674 = vsub.f32 1.5, %v673
        %v675 = vmul.f32 %v670, %v674
        %vm676 = vweird.f32 %v669
        %vm677 = vweird.f32 %v670
        %vm678 = vmor %vm676, %vm677
        %v679 = vsel %vm678, %v670, %v675
        %v680 = vmul.f32 %v655, %v679
        %v681 = vmul.f32 %v656, %v679
        %v682 = vpack.c.bf16 %v681, %v680
        %v683 = vld [vmem:[#allocation7] sm:$0xf]
        %v684 = vld [vmem:[#allocation7 + $0x4] sm:$0xf]
        %v685 = vld [vmem:[#allocation7 + $0x8] sm:$0xf]
        %v686 = vld [vmem:[#allocation7 + $0xc] sm:$0xf]
        %v687 = vld [vmem:[%s5] sm:$0x1]
        %v689 = vperm.slane %v687, 0
        %v695 = vunpack.c.l.b16 %v683
        %v696 = vunpack.c.l.b16 %v684
        %v697 = vunpack.c.l.b16 %v685
        %v698 = vunpack.c.l.b16 %v686
        %v699 = vpack.c.b16 %v696, %v695
        %v700 = vpack.c.b16 %v698, %v697
        %v704 = vsel %vm555, %v682, 0
        %706 = vmatpush.bf16.msra.mxu0 0
        %707 = vmatpush.bf16.msra.mxu0 0
        %708 = vmatpush.bf16.msra.mxu0 0
        %709 = vmatpush.bf16.msra.mxu0 0
        %710 = vmatpush.bf16.msra.mxu0 0
        %711 = vmatpush.bf16.msra.mxu0 0
        %712 = vmatpush.bf16.msra.mxu0 %v700
        %713 = vmatpush.bf16.msra.mxu0 %v699
        %714 = vmatmul.bf16.gmra.mxu0 %v704
        %v715 = vpop.f32.mrf.mxu0
        %v716 = vadd.f32 %v689, %v715
        %v717 = vpop.f32.mrf.mxu0
        %v718 = vadd.f32 %v689, %v717
        %719 = vdwg.mxu0
        %v720 = vpack.c.bf16 %v554, %v553
        %v721 = vld [vmem:[#allocation8] sm:$0xf]
        %v722 = vld [vmem:[#allocation8 + $0x4] sm:$0xf]
        %v723 = vld [vmem:[#allocation8 + $0x8] sm:$0xf]
        %v724 = vld [vmem:[#allocation8 + $0xc] sm:$0xf]
        %v725 = vld [vmem:[%s7] sm:$0x1]
        %v727 = vperm.slane %v725, 0
        %v733 = vunpack.c.l.b16 %v721
        %v734 = vunpack.c.l.b16 %v722
        %v735 = vunpack.c.l.b16 %v723
        %v736 = vunpack.c.l.b16 %v724
        %v737 = vpack.c.b16 %v734, %v733
        %v738 = vpack.c.b16 %v736, %v735
        %v742 = vsel %vm555, %v720, 0
        %744 = vmatpush.bf16.msra.mxu0 0
        %745 = vmatpush.bf16.msra.mxu0 0
        %746 = vmatpush.bf16.msra.mxu0 0
        %747 = vmatpush.bf16.msra.mxu0 0
        %748 = vmatpush.bf16.msra.mxu0 0
        %749 = vmatpush.bf16.msra.mxu0 0
        %750 = vmatpush.bf16.msra.mxu0 %v738
        %751 = vmatpush.bf16.msra.mxu0 %v737
        %752 = vmatmul.bf16.gmra.mxu0 %v742
        %v753 = vpop.f32.mrf.mxu0
        %v754 = vadd.f32 %v727, %v753
        %v755 = vpop.f32.mrf.mxu0
        %v756 = vadd.f32 %v727, %v755
        %757 = vdwg.mxu0
        %v758 = vpack.c.bf16 %v643, %v641
        %v759 = vpack.c.bf16 %v718, %v716
        %v761 = vsel %vm555, %v758, 0
        %v764 = vsel %vm555, %v759, 0
        %766 = vmatpush.bf16.xpose.msra.mxu0 0
        %767 = vmatpush.bf16.xpose.msra.mxu0 0
        %768 = vmatpush.bf16.xpose.msra.mxu0 0
        %769 = vmatpush.bf16.xpose.msra.mxu0 0
        %770 = vmatpush.bf16.xpose.msra.mxu0 0
        %771 = vmatpush.bf16.xpose.msra.mxu0 0
        %772 = vmatpush.bf16.xpose.msra.mxu0 0
        %773 = vmatpush.bf16.xpose.msra.mxu0 %v764
        %774 = vmatmul.bf16.gmra.mxu0 %v761
        %v775 = vpop.f32.mrf.mxu0
        %v776 = vadd.f32 0.0, %v775
        %v777 = vpop.f32.mrf.mxu0
        %v778 = vadd.f32 0.0, %v777
        %779 = vdwg.mxu0
        %vm780 = vcmask 130048
        %v781 = vsel %vm780, %v776, -inf
        %782 = vmax.xlane.f32.xlu0 %v781
        %v783 = vpop.xlane.xlu0 %782
        %v784 = vsel %vm780, %v778, -inf
        %785 = vmax.xlane.f32.xlu0 %v784
        %v786 = vpop.xlane.xlu0 %785
        %v787 = vsub.f32 %v776, %v783
        %v788 = vsub.f32 %v778, %v786
        %v789 = vmul.f32 %v787, 1.442695
        %v790 = vpow.pop %v789
        %v791 = vmul.f32 %v788, 1.442695
        %v792 = vpow.pop %v791
        %v793 = vsel %vm780, %v790, 0.0
        %794 = vadd.xlane.f32.xlu0 %v793
        %v795 = vpop.xlane.xlu0 %794
        %v796 = vsel %vm780, %v792, 0.0
        %797 = vadd.xlane.f32.xlu0 %v796
        %v798 = vpop.xlane.xlu0 %797
        %v799 = vrcp.pop %v795
        %v800 = vmul.f32 %v795, %v799
        %v801 = vsub.f32 1.0, %v800
        %v802 = vmul.f32 %v799, %v801
        %v803 = vadd.f32 %v799, %v802
        %vm804 = vweird.f32 %v795
        %vm805 = vweird.f32 %v799
        %vm806 = vmor %vm804, %vm805
        %v807 = vsel %vm806, %v799, %v803
        %v808 = vand.u32 2147483647, %v795
        %vm809 = vcmp.eq.f32.partialorder %v808, 8.507059e+37
        %v810 = vand.u32 %v795, 2147483648
        %v811 = vor.u32 1.1754944e-38, %v810
        %v812 = vsel %vm809, %v811, %v807
        %v813 = vrcp.pop %v798
        %v814 = vmul.f32 %v798, %v813
        %v815 = vsub.f32 1.0, %v814
        %v816 = vmul.f32 %v813, %v815
        %v817 = vadd.f32 %v813, %v816
        %vm818 = vweird.f32 %v798
        %vm819 = vweird.f32 %v813
        %vm820 = vmor %vm818, %vm819
        %v821 = vsel %vm820, %v813, %v817
        %v822 = vand.u32 2147483647, %v798
        %vm823 = vcmp.eq.f32.partialorder %v822, 8.507059e+37
        %v824 = vand.u32 %v798, 2147483648
        %v825 = vor.u32 1.1754944e-38, %v824
        %v826 = vsel %vm823, %v825, %v821
        %v827 = vmul.f32 %v790, %v812
        %v828 = vmul.f32 %v792, %v826
        %v829 = vpack.c.bf16 %v827, %v827
        %v830 = vpack.c.bf16 %v828, %v828
        %vm831 = vcmask 125952
        %832 = vst.msk [vmem:[%s532] sm:$0xf] %vm831, %v829
        %833 = vst.msk [vmem:[%s532 + $0x4] sm:$0xf] %vm831, %v830
        %v834 = vmax.f32 %v783, %v786
        %v835 = vrot.slane %v834, 4
        %v836 = vmax.f32 %v834, %v835
        %v837 = vrot.slane %v836, 2
        %v838 = vmax.f32 %v836, %v837
        %v839 = vrot.slane %v838, 1
        %v840 = vmax.f32 %v838, %v839
        %v841 = vsub.f32 %v783, %v840
        %v842 = vsub.f32 %v786, %v840
        %v843 = vmul.f32 %v841, 1.442695
        %v844 = vpow.pop %v843
        %v845 = vmul.f32 %v842, 1.442695
        %v846 = vpow.pop %v845
        %v847 = vmul.f32 %v790, %v844
        %v848 = vmul.f32 %v792, %v846
        %v849 = vsel %vm780, %v847, 0.0
        %v850 = vsel %vm780, %v848, 0.0
        %v851 = vadd.f32 %v849, %v850
        %v852 = vrot.slane %v851, 4
        %v853 = vadd.f32 %v851, %v852
        %v854 = vrot.slane %v853, 2
        %v855 = vadd.f32 %v853, %v854
        %v856 = vrot.slane %v855, 1
        %v857 = vadd.f32 %v855, %v856
        %v858 = vrcp.pop %v857
        %v859 = vmul.f32 %v857, %v858
        %v860 = vsub.f32 1.0, %v859
        %v861 = vmul.f32 %v858, %v860
        %v862 = vadd.f32 %v858, %v861
        %vm863 = vweird.f32 %v857
        %vm864 = vweird.f32 %v858
        %vm865 = vmor %vm863, %vm864
        %v866 = vsel %vm865, %v858, %v862
        %v867 = vand.u32 2147483647, %v857
        %vm868 = vcmp.eq.f32.partialorder %v867, 8.507059e+37
        %v869 = vand.u32 %v857, 2147483648
        %v870 = vor.u32 1.1754944e-38, %v869
        %v871 = vsel %vm868, %v870, %v866
        %v872 = vmul.f32 %v847, %v871
        %v873 = vmul.f32 %v848, %v871
        %v874 = vpack.c.bf16 %v872, %v872
        %v875 = vpack.c.bf16 %v873, %v873
        %876 = vst.msk [vmem:[%s549] sm:$0xf] %vm831, %v874
        %877 = vst.msk [vmem:[%s549 + $0x4] sm:$0xf] %vm831, %v875
        %v878 = vpack.c.bf16 %v756, %v754
        %v881 = vunpack.c.l.b16 %v829
        %v882 = vunpack.c.l.b16 %v830
        %v883 = vpack.c.b16 %v882, %v881
        %v885 = vsel %vm780, %v883, 0
        %887 = vmatpush.bf16.msra.mxu0 0
        %888 = vmatpush.bf16.msra.mxu0 0
        %889 = vmatpush.bf16.msra.mxu0 0
        %890 = vmatpush.bf16.msra.mxu0 0
        %891 = vmatpush.bf16.msra.mxu0 0
        %892 = vmatpush.bf16.msra.mxu0 0
        %893 = vmatpush.bf16.msra.mxu0 0
        %894 = vmatpush.bf16.msra.mxu0 %v878
        %895 = vmatmul.bf16.gmra.mxu0 %v885
        %v896 = vpop.f32.mrf.mxu0
        %v897 = vadd.f32 0.0, %v896
        %v898 = vpop.f32.mrf.mxu0
        %v899 = vadd.f32 0.0, %v898
        %900 = vdwg.mxu0
        %v901 = vpack.c.bf16 %v899, %v897
        %v902 = vld [vmem:[#allocation10] sm:$0xf]
        %v903 = vld [vmem:[#allocation10 + $0x4] sm:$0xf]
        %v904 = vld [vmem:[#allocation10 + $0x8] sm:$0xf]
        %v905 = vld [vmem:[#allocation10 + $0xc] sm:$0xf]
        %v906 = vld [vmem:[%s9] sm:$0x1]
        %v908 = vperm.slane %v906, 0
        %v914 = vunpack.c.l.b16 %v902
        %v915 = vunpack.c.l.b16 %v903
        %v916 = vunpack.c.l.b16 %v904
        %v917 = vunpack.c.l.b16 %v905
        %v918 = vpack.c.b16 %v915, %v914
        %v919 = vpack.c.b16 %v917, %v916
        %v923 = vsel %vm555, %v901, 0
        %925 = vmatpush.bf16.msra.mxu0 0
        %926 = vmatpush.bf16.msra.mxu0 0
        %927 = vmatpush.bf16.msra.mxu0 0
        %928 = vmatpush.bf16.msra.mxu0 0
        %929 = vmatpush.bf16.msra.mxu0 0
        %930 = vmatpush.bf16.msra.mxu0 0
        %931 = vmatpush.bf16.msra.mxu0 %v919
        %932 = vmatpush.bf16.msra.mxu0 %v918
        %933 = vmatmul.bf16.gmra.mxu0 %v923
        %v934 = vpop.f32.mrf.mxu0
        %v935 = vadd.f32 %v908, %v934
        %v936 = vpop.f32.mrf.mxu0
        %v937 = vadd.f32 %v908, %v936
        %938 = vdwg.mxu0
        %v939 = vadd.f32 %v551, %v935
        %v940 = vadd.f32 %v552, %v937
        %941 = vst.msk [vmem:[%s544] sm:$0xff] %vm555, %v939
        %942 = vst.msk [vmem:[%s544 + $0x8] sm:$0xff] %vm555, %v940
        %p943 = scmp.lt.s32.totalorder %s34, 1
        %s944 = scalar_select %p943, %s34, 1
        %s945 = smul.addr %s944, 2
        %s946 = smul.addr %s945, 8
        %s947 = scalar_lea.vmem %s10, %s946
        %s948 = sand.u32 %s288, 1
        %s949 = scalar_lea.sflag [#allocation4], %s948
        %s950 = sand.u32 %s288, 1
        %s951 = smul.addr %s950, 8
        %s952 = scalar_lea.vmem [#allocation11], %s951
        %p953 = scmp.lt.s32.totalorder %s34, 1
        %s954 = scalar_select %p953, %s34, 1
        %s955 = smul.addr %s954, 2
        %s956 = smul.addr %s955, 4
        %s957 = scalar_lea.vmem %s12, %s956
        // Predicated region
        $region81: #{_lambda_.4} parent=59 // pred_check
          %p958 = pneg %p272
        $region82: #{_lambda_.4} parent=59 // pred_check_branch
          %960 = sbr.rel (%p958) target = $region84
        $region83: #{_lambda_.4} parent=59 // pred_region
          _
        $region84: #{_lambda_.4} parent=59 // pred_fallthru
          _
        // Predicated region
        $region85: #{_lambda_.4} parent=59 // pred_check
          %p961 = pneg %p298
        $region86: #{_lambda_.4} parent=59 // pred_check_branch
          %963 = sbr.rel (%p961) target = $region88
        $region87: #{_lambda_.4} parent=59 // pred_region
          %965 = vsyncadd %s949, 0
          %s966 = smul.addr %s34, 2
          %s967 = smul.addr %s966, 4
          %s968 = scalar_lea.hbm %s11, %s967
          %s969 = sshll.u32 %s952, 4
          %s970 = int_to_ptr.vmem [resolvable:$true] %s969
          %s971 = sshll.u32 %s968, 4
          %s972 = int_to_ptr.hbm [resolvable:$true] %s971
          %977 = dma.vmem_to_hbm [thread:$0]  %s970, 128, %s972, %s949, 64, 64, 4
        $region88: #{_lambda_.4} parent=59 // pred_fallthru
          _
        // Predicated region
        $region89: #{_lambda_.4} parent=59 // pred_check
          %p978 = pneg %p324
        $region90: #{_lambda_.4} parent=59 // pred_check_branch
          %980 = sbr.rel (%p978) target = $region92
        $region91: #{_lambda_.4} parent=59 // pred_region
          _
        $region92: #{_lambda_.4} parent=59 // pred_fallthru
          _
      $region60: #{_lambda_.4} parent=5 // pred_fallthru
        _
      %p981 = scmp.le.s32.totalorder 2, %s29
      // Predicated region
      $region93: #{_lambda_.4} parent=5 // pred_check
        %p982 = pneg %p981
      $region94: #{_lambda_.4} parent=5 // pred_check_branch
        %984 = sbr.rel (%p982) target = $region96
      $region95: #{_lambda_.4} parent=5 // pred_region
        %s985 = ssub.s32 %s29, 2
        // Predicated region
        $region97: #{_lambda_.4} parent=95 // pred_check
          %p986 = pneg %p278
        $region98: #{_lambda_.4} parent=95 // pred_check_branch
          %988 = sbr.rel (%p986) target = $region100
        $region99: #{_lambda_.4} parent=95 // pred_region
          %p989 = scmp.lt.s32.totalorder %s35, 1
          %s990 = scalar_select %p989, %s35, 1
          %s991 = smul.addr %s990, 2
          %s992 = smul.addr %s991, 8
          %s993 = scalar_lea.vmem %s10, %s992
        $region100: #{_lambda_.4} parent=95 // pred_fallthru
          _
        // Predicated region
        $region101: #{_lambda_.4} parent=95 // pred_check
          %p994 = pneg %p304
        $region102: #{_lambda_.4} parent=95 // pred_check_branch
          %996 = sbr.rel (%p994) target = $region104
        $region103: #{_lambda_.4} parent=95 // pred_region
          %s997 = sand.u32 %s289, 1
          %s998 = scalar_lea.sflag [#allocation4], %s997
          %s999 = sand.u32 %s289, 1
          %s1000 = smul.addr %s999, 8
          %s1001 = scalar_lea.vmem [#allocation11], %s1000
          %1003 = dma.done %s998, 128
        $region104: #{_lambda_.4} parent=95 // pred_fallthru
          _
        // Predicated region
        $region105: #{_lambda_.4} parent=95 // pred_check
          %p1004 = pneg %p330
        $region106: #{_lambda_.4} parent=95 // pred_check_branch
          %1006 = sbr.rel (%p1004) target = $region108
        $region107: #{_lambda_.4} parent=95 // pred_region
          %p1007 = scmp.lt.s32.totalorder %s35, 1
          %s1008 = scalar_select %p1007, %s35, 1
          %s1009 = smul.addr %s1008, 2
          %s1010 = smul.addr %s1009, 4
          %s1011 = scalar_lea.vmem %s12, %s1010
        $region108: #{_lambda_.4} parent=95 // pred_fallthru
          _
      $region96: #{_lambda_.4} parent=5 // pred_fallthru
        _
    $region6: #{_lambda_.4} parent=1 // loop_footer
      %s33 = sadd.s32 1, %s29
    $region7: #{_lambda_.4} parent=1 // loop_footer_branch
      %28 = sbr.rel target = $region3
    $region8: #{_lambda_.4} parent=1 // loop_exit
      _
    %1012 = vsyncpa [#allocation3], 1
    %s1013 = scalar_lea.sflag [#allocation3], 1
    %1014 = vsyncpa %s1013, 1
    %1015 = vsyncpa [#allocation6], 1
    %s1016 = scalar_lea.sflag [#allocation6], 1
    %1017 = vsyncpa %s1016, 1
    %1018 = vsyncpa [#allocation9], 1
    %1019 = vsyncpa [#allocation4], 1
    %s1020 = scalar_lea.sflag [#allocation4], 1
    %1021 = vsyncpa %s1020, 1

// kernel: _lambda_.3
$region0: #{_lambda_.3}
  #allocation0 [shape = 'u32[]', space=smem, size = 0x4, offset = 0x4, fixed_abs, tag = 'smem constant byte address 0x4 - core index']
  #allocation1 [shape = 'u32[72,128]{1,0:T(1,128)}', space=vmem, size = 0x9000, scoped, tag = 'internal scratch']
  %s0 = inlined_call_operand.hbm [shape: f32[2,64,32], index: 0, kind: input, shape index: {}]
  %s1 = inlined_call_operand.hbm [shape: f32[2,64,32], index: 1, kind: input, shape index: {}]
  %s2 = inlined_call_operand.vmem [shape: bf16[32,32], index: 2, kind: input, shape index: {}]
  %s3 = inlined_call_operand.vmem [shape: f32[1,32], index: 3, kind: input, shape index: {}]
  %s4 = inlined_call_operand.vmem [shape: bf16[32,32], index: 4, kind: input, shape index: {}]
  %s5 = inlined_call_operand.vmem [shape: f32[1,32], index: 5, kind: input, shape index: {}]
  %s6 = inlined_call_operand.hbm [shape: bf16[32,32], index: 6, kind: input, shape index: {}]
  %s7 = inlined_call_operand.vmem [shape: f32[1,32], index: 7, kind: input, shape index: {}]
  %s8 = inlined_call_operand.hbm [shape: bf16[32,32], index: 8, kind: input, shape index: {}]
  %s9 = inlined_call_operand.vmem [shape: f32[1,32], index: 9, kind: input, shape index: {}]
  %s10 = inlined_call_operand.vmem [shape: f32[2,64,32], index: 10, kind: output, shape index: {0}]
  %s11 = inlined_call_operand.hbm [shape: bf16[2,64,64], index: 11, kind: output, shape index: {1}]
  %s12 = inlined_call_operand.vmem [shape: bf16[2,64,64], index: 12, kind: output, shape index: {2}]
  %13 = xla_tuple %s10, %s11, %s12
  %s14 = sld [smem:[#allocation0]]
  $region105: #{_lambda_.3} parent=0
    _
  %s16 = ssub.s32 1, %s14
  %s17 = scalar_select 0, %s16, %s14
  $region1: #{_lambda_.3} parent=0
    #allocation2 [shape = 'u8[65536]{0}', space=vmem, size = 0x10000, scoped, tag = 'input window, operand 0']
    #allocation3 [shape = 's32[2]{0}', space=sflag, size = 0x8, scoped, tag = 'scoped memory for _lambda_.3']
    #allocation4 [shape = 's32[2]{0}', space=sflag, size = 0x8, scoped, tag = 'scoped memory for _lambda_.3']
    #allocation5 [shape = 'u8[65536]{0}', space=vmem, size = 0x10000, scoped, tag = 'input window, operand 1']
    #allocation6 [shape = 's32[2]{0}', space=sflag, size = 0x8, scoped, tag = 'scoped memory for _lambda_.3']
    #allocation7 [shape = 'u8[8192]{0}', space=vmem, size = 0x2000, scoped, tag = 'input window, operand 6, single buffered']
    #allocation8 [shape = 'u8[8192]{0}', space=vmem, size = 0x2000, scoped, tag = 'input window, operand 8, single buffered']
    #allocation9 [shape = 's32[1]{0}', space=sflag, size = 0x4, scoped, tag = 'scoped memory for _lambda_.3']
    #allocation10 [shape = 'u8[32768]{0}', space=vmem, size = 0x8000, scoped, tag = 'output window, operand 1']
    %18 = vsyncpa [#allocation3], 0
    %s19 = scalar_lea.sflag [#allocation3], 1
    %20 = vsyncpa %s19, 0
    %21 = vsyncpa [#allocation6], 0
    %s22 = scalar_lea.sflag [#allocation6], 1
    %23 = vsyncpa %s22, 0
    %24 = vsyncpa [#allocation9], 0
    %25 = vsyncpa [#allocation4], 0
    %s26 = scalar_lea.sflag [#allocation4], 1
    %27 = vsyncpa %s26, 0
    loop: start=0, step=1, limit=4
    $region2: #{_lambda_.3} parent=1 // loop_pre_header
      _
    $region3: #{_lambda_.3} parent=1 // loop_header
      %s29 = sphi 0, %s33
      %p30 = scmp.ge.s32.totalorder %s29, 4
      %s39 = sphi 0, %s41
      %s42 = sphi 0, %s39
      %s43 = sphi 0, %s42
      %s59 = sphi 0, %s43
      %s65 = sphi 0, %s67
      %s68 = sphi 0, %s65
      %s69 = sphi 0, %s68
      %s85 = sphi 0, %s69
      %s89 = sphi 0, %s89
      %s91 = sphi 0, %s89
      %s92 = sphi 0, %s91
      %s106 = sphi 0, %s92
      %s110 = sphi 0, %s110
      %s112 = sphi 0, %s110
      %s113 = sphi 0, %s112
      %s127 = sphi 0, %s113
      %s131 = sphi 0, %s131
      %s133 = sphi 0, %s131
      %s134 = sphi 0, %s133
      %s148 = sphi 0, %s134
      %s152 = sphi 0, %s152
      %s154 = sphi 0, %s152
      %s155 = sphi 0, %s154
      %s169 = sphi 0, %s155
      %s173 = sphi 0, %s173
      %s175 = sphi 0, %s173
      %s176 = sphi 0, %s175
      %s190 = sphi 0, %s176
      %s194 = sphi 0, %s194
      %s196 = sphi 0, %s194
      %s197 = sphi 0, %s196
      %s211 = sphi 0, %s197
      %s215 = sphi 0, %s215
      %s217 = sphi 0, %s215
      %s218 = sphi 0, %s217
      %s232 = sphi 0, %s218
      %s236 = sphi 0, %s236
      %s238 = sphi 0, %s236
      %s239 = sphi 0, %s238
      %s253 = sphi 0, %s239
      %s259 = sphi 0, %s261
      %s262 = sphi 0, %s259
      %s263 = sphi 0, %s262
      %s279 = sphi 0, %s263
      %s285 = sphi 0, %s287
      %s288 = sphi 0, %s285
      %s289 = sphi 0, %s288
      %s305 = sphi 0, %s289
      %s311 = sphi 0, %s313
      %s314 = sphi 0, %s311
      %s315 = sphi 0, %s314
      %s331 = sphi 0, %s315
    $region4: #{_lambda_.3} parent=1 // loop_header_branch
      %32 = sbr.rel (%p30) target = $region8
    $region5: #{_lambda_.3} parent=1 // loop_body
      %s34 = ssub.s32 %s29, 1
      %s35 = ssub.s32 %s29, 2
      %s36 = sadd.s32 %s29, 1
      %s37 = ssub.s32 %s29, %s36
      %p38 = scmp.eq.s32.totalorder %s37, 0
      %s40 = sadd.s32 %s39, 1
      %s41 = scalar_select %p38, %s39, %s40
      %p44 = pneg %p38
      %p45 = scmp.eq.s32.totalorder %s29, 1
      %p46 = por %p44, %p45
      %p47 = scmp.ne.s32.totalorder %s39, %s42
      %p48 = scmp.eq.s32.totalorder %s29, 0
      %p49 = por %p47, %p48
      %p50 = scmp.ne.s32.totalorder %s39, %s42
      %p51 = scmp.eq.s32.totalorder %s34, 1
      %p52 = por %p50, %p51
      %p53 = scmp.ne.s32.totalorder %s42, %s43
      %p54 = scmp.eq.s32.totalorder %s34, 0
      %p55 = por %p53, %p54
      %p56 = scmp.ne.s32.totalorder %s42, %s43
      %p57 = scmp.eq.s32.totalorder %s35, 1
      %p58 = por %p56, %p57
      %p60 = scmp.ne.s32.totalorder %s43, %s59
      %p61 = scmp.eq.s32.totalorder %s35, 0
      %p62 = por %p60, %p61
      %s63 = ssub.s32 %s29, %s36
      %p64 = scmp.eq.s32.totalorder %s63, 0
      %s66 = sadd.s32 %s65, 1
      %s67 = scalar_select %p64, %s65, %s66
      %p70 = pneg %p64
      %p71 = scmp.eq.s32.totalorder %s29, 1
      %p72 = por %p70, %p71
      %p73 = scmp.ne.s32.totalorder %s65, %s68
      %p74 = scmp.eq.s32.totalorder %s29, 0
      %p75 = por %p73, %p74
      %p76 = scmp.ne.s32.totalorder %s65, %s68
      %p77 = scmp.eq.s32.totalorder %s34, 1
      %p78 = por %p76, %p77
      %p79 = scmp.ne.s32.totalorder %s68, %s69
      %p80 = scmp.eq.s32.totalorder %s34, 0
      %p81 = por %p79, %p80
      %p82 = scmp.ne.s32.totalorder %s68, %s69
      %p83 = scmp.eq.s32.totalorder %s35, 1
      %p84 = por %p82, %p83
      %p86 = scmp.ne.s32.totalorder %s69, %s85
      %p87 = scmp.eq.s32.totalorder %s35, 0
      %p88 = por %p86, %p87
      %s90 = sadd.s32 %s89, 1
      %p93 = scmp.eq.s32.totalorder %s29, 1
      %p94 = scmp.ne.s32.totalorder %s89, %s91
      %p95 = scmp.eq.s32.totalorder %s29, 0
      %p96 = por %p94, %p95
      %p97 = scmp.ne.s32.totalorder %s89, %s91
      %p98 = scmp.eq.s32.totalorder %s34, 1
      %p99 = por %p97, %p98
      %p100 = scmp.ne.s32.totalorder %s91, %s92
      %p101 = scmp.eq.s32.totalorder %s34, 0
      %p102 = por %p100, %p101
      %p103 = scmp.ne.s32.totalorder %s91, %s92
      %p104 = scmp.eq.s32.totalorder %s35, 1
      %p105 = por %p103, %p104
      %p107 = scmp.ne.s32.totalorder %s92, %s106
      %p108 = scmp.eq.s32.totalorder %s35, 0
      %p109 = por %p107, %p108
      %s111 = sadd.s32 %s110, 1
      %p114 = scmp.eq.s32.totalorder %s29, 1
      %p115 = scmp.ne.s32.totalorder %s110, %s112
      %p116 = scmp.eq.s32.totalorder %s29, 0
      %p117 = por %p115, %p116
      %p118 = scmp.ne.s32.totalorder %s110, %s112
      %p119 = scmp.eq.s32.totalorder %s34, 1
      %p120 = por %p118, %p119
      %p121 = scmp.ne.s32.totalorder %s112, %s113
      %p122 = scmp.eq.s32.totalorder %s34, 0
      %p123 = por %p121, %p122
      %p124 = scmp.ne.s32.totalorder %s112, %s113
      %p125 = scmp.eq.s32.totalorder %s35, 1
      %p126 = por %p124, %p125
      %p128 = scmp.ne.s32.totalorder %s113, %s127
      %p129 = scmp.eq.s32.totalorder %s35, 0
      %p130 = por %p128, %p129
      %s132 = sadd.s32 %s131, 1
      %p135 = scmp.eq.s32.totalorder %s29, 1
      %p136 = scmp.ne.s32.totalorder %s131, %s133
      %p137 = scmp.eq.s32.totalorder %s29, 0
      %p138 = por %p136, %p137
      %p139 = scmp.ne.s32.totalorder %s131, %s133
      %p140 = scmp.eq.s32.totalorder %s34, 1
      %p141 = por %p139, %p140
      %p142 = scmp.ne.s32.totalorder %s133, %s134
      %p143 = scmp.eq.s32.totalorder %s34, 0
      %p144 = por %p142, %p143
      %p145 = scmp.ne.s32.totalorder %s133, %s134
      %p146 = scmp.eq.s32.totalorder %s35, 1
      %p147 = por %p145, %p146
      %p149 = scmp.ne.s32.totalorder %s134, %s148
      %p150 = scmp.eq.s32.totalorder %s35, 0
      %p151 = por %p149, %p150
      %s153 = sadd.s32 %s152, 1
      %p156 = scmp.eq.s32.totalorder %s29, 1
      %p157 = scmp.ne.s32.totalorder %s152, %s154
      %p158 = scmp.eq.s32.totalorder %s29, 0
      %p159 = por %p157, %p158
      %p160 = scmp.ne.s32.totalorder %s152, %s154
      %p161 = scmp.eq.s32.totalorder %s34, 1
      %p162 = por %p160, %p161
      %p163 = scmp.ne.s32.totalorder %s154, %s155
      %p164 = scmp.eq.s32.totalorder %s34, 0
      %p165 = por %p163, %p164
      %p166 = scmp.ne.s32.totalorder %s154, %s155
      %p167 = scmp.eq.s32.totalorder %s35, 1
      %p168 = por %p166, %p167
      %p170 = scmp.ne.s32.totalorder %s155, %s169
      %p171 = scmp.eq.s32.totalorder %s35, 0
      %p172 = por %p170, %p171
      %s174 = sadd.s32 %s173, 1
      %p177 = scmp.eq.s32.totalorder %s29, 1
      %p178 = scmp.ne.s32.totalorder %s173, %s175
      %p179 = scmp.eq.s32.totalorder %s29, 0
      %p180 = por %p178, %p179
      %p181 = scmp.ne.s32.totalorder %s173, %s175
      %p182 = scmp.eq.s32.totalorder %s34, 1
      %p183 = por %p181, %p182
      %p184 = scmp.ne.s32.totalorder %s175, %s176
      %p185 = scmp.eq.s32.totalorder %s34, 0
      %p186 = por %p184, %p185
      %p187 = scmp.ne.s32.totalorder %s175, %s176
      %p188 = scmp.eq.s32.totalorder %s35, 1
      %p189 = por %p187, %p188
      %p191 = scmp.ne.s32.totalorder %s176, %s190
      %p192 = scmp.eq.s32.totalorder %s35, 0
      %p193 = por %p191, %p192
      %s195 = sadd.s32 %s194, 1
      %p198 = scmp.eq.s32.totalorder %s29, 1
      %p199 = scmp.ne.s32.totalorder %s194, %s196
      %p200 = scmp.eq.s32.totalorder %s29, 0
      %p201 = por %p199, %p200
      %p202 = scmp.ne.s32.totalorder %s194, %s196
      %p203 = scmp.eq.s32.totalorder %s34, 1
      %p204 = por %p202, %p203
      %p205 = scmp.ne.s32.totalorder %s196, %s197
      %p206 = scmp.eq.s32.totalorder %s34, 0
      %p207 = por %p205, %p206
      %p208 = scmp.ne.s32.totalorder %s196, %s197
      %p209 = scmp.eq.s32.totalorder %s35, 1
      %p210 = por %p208, %p209
      %p212 = scmp.ne.s32.totalorder %s197, %s211
      %p213 = scmp.eq.s32.totalorder %s35, 0
      %p214 = por %p212, %p213
      %s216 = sadd.s32 %s215, 1
      %p219 = scmp.eq.s32.totalorder %s29, 1
      %p220 = scmp.ne.s32.totalorder %s215, %s217
      %p221 = scmp.eq.s32.totalorder %s29, 0
      %p222 = por %p220, %p221
      %p223 = scmp.ne.s32.totalorder %s215, %s217
      %p224 = scmp.eq.s32.totalorder %s34, 1
      %p225 = por %p223, %p224
      %p226 = scmp.ne.s32.totalorder %s217, %s218
      %p227 = scmp.eq.s32.totalorder %s34, 0
      %p228 = por %p226, %p227
      %p229 = scmp.ne.s32.totalorder %s217, %s218
      %p230 = scmp.eq.s32.totalorder %s35, 1
      %p231 = por %p229, %p230
      %p233 = scmp.ne.s32.totalorder %s218, %s232
      %p234 = scmp.eq.s32.totalorder %s35, 0
      %p235 = por %p233, %p234
      %s237 = sadd.s32 %s236, 1
      %p240 = scmp.eq.s32.totalorder %s29, 1
      %p241 = scmp.ne.s32.totalorder %s236, %s238
      %p242 = scmp.eq.s32.totalorder %s29, 0
      %p243 = por %p241, %p242
      %p244 = scmp.ne.s32.totalorder %s236, %s238
      %p245 = scmp.eq.s32.totalorder %s34, 1
      %p246 = por %p244, %p245
      %p247 = scmp.ne.s32.totalorder %s238, %s239
      %p248 = scmp.eq.s32.totalorder %s34, 0
      %p249 = por %p247, %p248
      %p250 = scmp.ne.s32.totalorder %s238, %s239
      %p251 = scmp.eq.s32.totalorder %s35, 1
      %p252 = por %p250, %p251
      %p254 = scmp.ne.s32.totalorder %s239, %s253
      %p255 = scmp.eq.s32.totalorder %s35, 0
      %p256 = por %p254, %p255
      %s257 = ssub.s32 %s29, %s36
      %p258 = scmp.eq.s32.totalorder %s257, 0
      %s260 = sadd.s32 %s259, 1
      %s261 = scalar_select %p258, %s259, %s260
      %p264 = pneg %p258
      %p265 = scmp.eq.s32.totalorder %s29, 1
      %p266 = por %p264, %p265
      %p267 = scmp.ne.s32.totalorder %s259, %s262
      %p268 = scmp.eq.s32.totalorder %s29, 0
      %p269 = por %p267, %p268
      %p270 = scmp.ne.s32.totalorder %s259, %s262
      %p271 = scmp.eq.s32.totalorder %s34, 1
      %p272 = por %p270, %p271
      %p273 = scmp.ne.s32.totalorder %s262, %s263
      %p274 = scmp.eq.s32.totalorder %s34, 0
      %p275 = por %p273, %p274
      %p276 = scmp.ne.s32.totalorder %s262, %s263
      %p277 = scmp.eq.s32.totalorder %s35, 1
      %p278 = por %p276, %p277
      %p280 = scmp.ne.s32.totalorder %s263, %s279
      %p281 = scmp.eq.s32.totalorder %s35, 0
      %p282 = por %p280, %p281
      %s283 = ssub.s32 %s29, %s36
      %p284 = scmp.eq.s32.totalorder %s283, 0
      %s286 = sadd.s32 %s285, 1
      %s287 = scalar_select %p284, %s285, %s286
      %p290 = pneg %p284
      %p291 = scmp.eq.s32.totalorder %s29, 1
      %p292 = por %p290, %p291
      %p293 = scmp.ne.s32.totalorder %s285, %s288
      %p294 = scmp.eq.s32.totalorder %s29, 0
      %p295 = por %p293, %p294
      %p296 = scmp.ne.s32.totalorder %s285, %s288
      %p297 = scmp.eq.s32.totalorder %s34, 1
      %p298 = por %p296, %p297
      %p299 = scmp.ne.s32.totalorder %s288, %s289
      %p300 = scmp.eq.s32.totalorder %s34, 0
      %p301 = por %p299, %p300
      %p302 = scmp.ne.s32.totalorder %s288, %s289
      %p303 = scmp.eq.s32.totalorder %s35, 1
      %p304 = por %p302, %p303
      %p306 = scmp.ne.s32.totalorder %s289, %s305
      %p307 = scmp.eq.s32.totalorder %s35, 0
      %p308 = por %p306, %p307
      %s309 = ssub.s32 %s29, %s36
      %p310 = scmp.eq.s32.totalorder %s309, 0
      %s312 = sadd.s32 %s311, 1
      %s313 = scalar_select %p310, %s311, %s312
      %p316 = pneg %p310
      %p317 = scmp.eq.s32.totalorder %s29, 1
      %p318 = por %p316, %p317
      %p319 = scmp.ne.s32.totalorder %s311, %s314
      %p320 = scmp.eq.s32.totalorder %s29, 0
      %p321 = por %p319, %p320
      %p322 = scmp.ne.s32.totalorder %s311, %s314
      %p323 = scmp.eq.s32.totalorder %s34, 1
      %p324 = por %p322, %p323
      %p325 = scmp.ne.s32.totalorder %s314, %s315
      %p326 = scmp.eq.s32.totalorder %s34, 0
      %p327 = por %p325, %p326
      %p328 = scmp.ne.s32.totalorder %s314, %s315
      %p329 = scmp.eq.s32.totalorder %s35, 1
      %p330 = por %p328, %p329
      %p332 = scmp.ne.s32.totalorder %s315, %s331
      %p333 = scmp.eq.s32.totalorder %s35, 0
      %p334 = por %p332, %p333
      %p335 = scmp.le.s32.totalorder 1, %s29
      %p336 = scmp.lt.s32.totalorder %s29, 3
      %p337 = pnand %p335, %p336
      %p338 = pneg %p337
      // Predicated region
      $region9: #{_lambda_.3} parent=5 // pred_check
        _
      $region10: #{_lambda_.3} parent=5 // pred_check_branch
        %340 = sbr.rel (%p337) target = $region12
      $region11: #{_lambda_.3} parent=5 // pred_region
        %s341 = ssub.s32 %s29, 1
        // Predicated region
        $region13: #{_lambda_.3} parent=11 // pred_check
          %p342 = pneg %p102
        $region14: #{_lambda_.3} parent=11 // pred_check_branch
          %344 = sbr.rel (%p342) target = $region16
        $region15: #{_lambda_.3} parent=11 // pred_region
          _
        $region16: #{_lambda_.3} parent=11 // pred_fallthru
          _
        // Predicated region
        $region17: #{_lambda_.3} parent=11 // pred_check
          %p345 = pneg %p123
        $region18: #{_lambda_.3} parent=11 // pred_check_branch
          %347 = sbr.rel (%p345) target = $region20
        $region19: #{_lambda_.3} parent=11 // pred_region
          _
        $region20: #{_lambda_.3} parent=11 // pred_fallthru
          _
        // Predicated region
        $region21: #{_lambda_.3} parent=11 // pred_check
          %p348 = pneg %p144
        $region22: #{_lambda_.3} parent=11 // pred_check_branch
          %350 = sbr.rel (%p348) target = $region24
        $region23: #{_lambda_.3} parent=11 // pred_region
          _
        $region24: #{_lambda_.3} parent=11 // pred_fallthru
          _
        // Predicated region
        $region25: #{_lambda_.3} parent=11 // pred_check
          %p351 = pneg %p165
        $region26: #{_lambda_.3} parent=11 // pred_check_branch
          %353 = sbr.rel (%p351) target = $region28
        $region27: #{_lambda_.3} parent=11 // pred_region
          _
        $region28: #{_lambda_.3} parent=11 // pred_fallthru
          _
        // Predicated region
        $region29: #{_lambda_.3} parent=11 // pred_check
          %p354 = pneg %p186
        $region30: #{_lambda_.3} parent=11 // pred_check_branch
          %356 = sbr.rel (%p354) target = $region32
        $region31: #{_lambda_.3} parent=11 // pred_region
          %358 = vsyncadd [#allocation6], 0
          %s359 = sshll.u32 %s6, 4
          %s360 = int_to_ptr.hbm [resolvable:$true] %s359
          %s361 = sshll.u32 [#allocation7], 4
          %s362 = int_to_ptr.vmem [resolvable:$true] %s361
          %367 = dma.hbm_to_vmem [thread:$0]  %s360, 256, %s362, [#allocation6], 64, 64, 4
        $region32: #{_lambda_.3} parent=11 // pred_fallthru
          _
        // Predicated region
        $region33: #{_lambda_.3} parent=11 // pred_check
          %p368 = pneg %p207
        $region34: #{_lambda_.3} parent=11 // pred_check_branch
          %370 = sbr.rel (%p368) target = $region36
        $region35: #{_lambda_.3} parent=11 // pred_region
          _
        $region36: #{_lambda_.3} parent=11 // pred_fallthru
          _
        // Predicated region
        $region37: #{_lambda_.3} parent=11 // pred_check
          %p371 = pneg %p228
        $region38: #{_lambda_.3} parent=11 // pred_check_branch
          %373 = sbr.rel (%p371) target = $region40
        $region39: #{_lambda_.3} parent=11 // pred_region
          %375 = vsyncadd [#allocation9], 0
          %s376 = sshll.u32 %s8, 4
          %s377 = int_to_ptr.hbm [resolvable:$true] %s376
          %s378 = sshll.u32 [#allocation8], 4
          %s379 = int_to_ptr.vmem [resolvable:$true] %s378
          %384 = dma.hbm_to_vmem [thread:$0]  %s377, 256, %s379, [#allocation9], 64, 64, 4
        $region40: #{_lambda_.3} parent=11 // pred_fallthru
          _
        // Predicated region
        $region41: #{_lambda_.3} parent=11 // pred_check
          %p385 = pneg %p249
        $region42: #{_lambda_.3} parent=11 // pred_check_branch
          %387 = sbr.rel (%p385) target = $region44
        $region43: #{_lambda_.3} parent=11 // pred_region
          _
        $region44: #{_lambda_.3} parent=11 // pred_fallthru
          _
      $region12: #{_lambda_.3} parent=5 // pred_fallthru
        _
      %p388 = scmp.lt.s32.totalorder %s29, 2
      // Predicated region
      $region45: #{_lambda_.3} parent=5 // pred_check
        %p389 = pneg %p388
      $region46: #{_lambda_.3} parent=5 // pred_check_branch
        %391 = sbr.rel (%p389) target = $region48
      $region47: #{_lambda_.3} parent=5 // pred_region
        // Predicated region
        $region49: #{_lambda_.3} parent=47 // pred_check
          %p392 = pneg %p49
        $region50: #{_lambda_.3} parent=47 // pred_check_branch
          %394 = sbr.rel (%p392) target = $region52
        $region51: #{_lambda_.3} parent=47 // pred_region
          %s395 = sand.u32 %s39, 1
          %s396 = scalar_lea.sflag [#allocation3], %s395
          %s397 = sand.u32 %s39, 1
          %s398 = smul.addr %s397, 64
          %s399 = scalar_lea.vmem [#allocation2], %s398
          %401 = vsyncadd %s396, 0
          %s402 = smul.addr %s29, 8
          %s403 = smul.addr %s402, 8
          %s404 = scalar_lea.hbm %s0, %s403
          %s405 = sshll.u32 %s404, 4
          %s406 = int_to_ptr.hbm [resolvable:$true] %s405
          %s407 = sshll.u32 %s399, 4
          %s408 = int_to_ptr.vmem [resolvable:$true] %s407
          %413 = dma.hbm_to_vmem [thread:$0]  %s406, 1024, %s408, %s396, 128, 128, 8
        $region52: #{_lambda_.3} parent=47 // pred_fallthru
          _
        // Predicated region
        $region53: #{_lambda_.3} parent=47 // pred_check
          %p414 = pneg %p75
        $region54: #{_lambda_.3} parent=47 // pred_check_branch
          %416 = sbr.rel (%p414) target = $region56
        $region55: #{_lambda_.3} parent=47 // pred_region
          %s417 = sand.u32 %s29, 1
          %s418 = scalar_lea.sflag [#allocation6], %s417
          %s419 = sand.u32 %s65, 1
          %s420 = smul.addr %s419, 64
          %s421 = scalar_lea.vmem [#allocation5], %s420
          %423 = vsyncadd %s418, 0
          %s424 = smul.addr %s29, 8
          %s425 = smul.addr %s424, 8
          %s426 = scalar_lea.hbm %s1, %s425
          %s427 = sshll.u32 %s426, 4
          %s428 = int_to_ptr.hbm [resolvable:$true] %s427
          %s429 = sshll.u32 %s421, 4
          %s430 = int_to_ptr.vmem [resolvable:$true] %s429
          %435 = dma.hbm_to_vmem [thread:$0]  %s428, 1024, %s430, %s418, 128, 128, 8
        $region56: #{_lambda_.3} parent=47 // pred_fallthru
          _
      $region48: #{_lambda_.3} parent=5 // pred_fallthru
        _
      %p436 = scmp.le.s32.totalorder 1, %s29
      %p437 = scmp.lt.s32.totalorder %s29, 3
      %p438 = pnand %p436, %p437
      %p439 = pneg %p438
      // Predicated region
      $region57: #{_lambda_.3} parent=5 // pred_check
        _
      $region58: #{_lambda_.3} parent=5 // pred_check_branch
        %441 = sbr.rel (%p438) target = $region60
      $region59: #{_lambda_.3} parent=5 // pred_region
        %s442 = ssub.s32 %s29, 1
        %s443 = sand.u32 %s42, 1
        %s444 = scalar_lea.sflag [#allocation3], %s443
        %s445 = sand.u32 %s42, 1
        %s446 = smul.addr %s445, 64
        %s447 = scalar_lea.vmem [#allocation2], %s446
        // Predicated region
        $region61: #{_lambda_.3} parent=59 // pred_check
          %p448 = pneg %p55
        $region62: #{_lambda_.3} parent=59 // pred_check_branch
          %450 = sbr.rel (%p448) target = $region64
        $region63: #{_lambda_.3} parent=59 // pred_region
          %452 = dma.done %s444, 1024
        $region64: #{_lambda_.3} parent=59 // pred_fallthru
          _
        %s453 = sand.u32 %s34, 1
        %s454 = scalar_lea.sflag [#allocation6], %s453
        %s455 = sand.u32 %s68, 1
        %s456 = smul.addr %s455, 64
        %s457 = scalar_lea.vmem [#allocation5], %s456
        // Predicated region
        $region65: #{_lambda_.3} parent=59 // pred_check
          %p458 = pneg %p81
        $region66: #{_lambda_.3} parent=59 // pred_check_branch
          %460 = sbr.rel (%p458) target = $region68
        $region67: #{_lambda_.3} parent=59 // pred_region
          %462 = dma.done %s454, 1024
        $region68: #{_lambda_.3} parent=59 // pred_fallthru
          _
        // Predicated region
        $region69: #{_lambda_.3} parent=59 // pred_check
          %p463 = pneg %p186
        $region70: #{_lambda_.3} parent=59 // pred_check_branch
          %465 = sbr.rel (%p463) target = $region72
        $region71: #{_lambda_.3} parent=59 // pred_region
          %467 = dma.done [#allocation6], 256
        $region72: #{_lambda_.3} parent=59 // pred_fallthru
          _
        // Predicated region
        $region73: #{_lambda_.3} parent=59 // pred_check
          %p468 = pneg %p228
        $region74: #{_lambda_.3} parent=59 // pred_check_branch
          %470 = sbr.rel (%p468) target = $region76
        $region75: #{_lambda_.3} parent=59 // pred_region
          %472 = dma.done [#allocation9], 256
        $region76: #{_lambda_.3} parent=59 // pred_fallthru
          _
        %s473 = sand.u32 %s42, 1
        %s474 = scalar_lea.sflag [#allocation3], %s473
        %s475 = sand.u32 %s42, 1
        %s476 = smul.addr %s475, 64
        %s477 = scalar_lea.vmem [#allocation2], %s476
        %p478 = pneg %p55
        %p479 = pneg %p52
        %s480 = sand.u32 %s34, 1
        %s481 = scalar_lea.sflag [#allocation6], %s480
        %s482 = sand.u32 %s68, 1
        %s483 = smul.addr %s482, 64
        %s484 = scalar_lea.vmem [#allocation5], %s483
        %p485 = pneg %p81
        %p486 = pneg %p78
        %p487 = pneg %p102
        %p488 = pneg %p99
        %p489 = pneg %p123
        %p490 = pneg %p120
        %p491 = pneg %p144
        %p492 = pneg %p141
        %p493 = pneg %p165
        %p494 = pneg %p162
        %p495 = pneg %p186
        %p496 = pneg %p183
        %p497 = pneg %p207
        %p498 = pneg %p204
        %p499 = pneg %p228
        %p500 = pneg %p225
        %p501 = pneg %p249
        %p502 = pneg %p246
        %p503 = pneg %p275
        %p504 = pneg %p272
        %p505 = scmp.lt.s32.totalorder %s34, 1
        %s506 = scalar_select %p505, %s34, 1
        %s507 = smul.addr %s506, 8
        %s508 = smul.addr %s507, 8
        %s509 = scalar_lea.vmem %s10, %s508
        %p510 = pneg %p301
        %p511 = pneg %p298
        %s512 = sand.u32 %s288, 1
        %s513 = scalar_lea.sflag [#allocation4], %s512
        %s514 = sand.u32 %s288, 1
        %s515 = smul.addr %s514, 32
        %s516 = scalar_lea.vmem [#allocation10], %s515
        %p517 = pneg %p327
        %p518 = pneg %p324
        %p519 = scmp.lt.s32.totalorder %s34, 1
        %s520 = scalar_select %p519, %s34, 1
        %s521 = smul.addr %s520, 8
        %s522 = smul.addr %s521, 4
        %s523 = scalar_lea.vmem %s12, %s522
        %p524 = scmp.lt.s32.totalorder %s34, 1
        %s525 = scalar_select %p524, %s34, 1
        %s526 = smul.addr %s525, 8
        %s527 = smul.addr %s526, 8
        %s528 = scalar_lea.vmem %s10, %s527
        %p529 = scmp.lt.s32.totalorder %s34, 1
        %s530 = scalar_select %p529, %s34, 1
        %s531 = smul.addr %s530, 8
        %s532 = smul.addr %s531, 4
        %s533 = scalar_lea.vmem %s12, %s532
        %v535 = vld [vmem:[%s447] sm:$0xff]
        %v536 = vld [vmem:[%s447 + $0x8] sm:$0xff]
        %v537 = vld [vmem:[%s447 + $0x10] sm:$0xff]
        %v538 = vld [vmem:[%s447 + $0x18] sm:$0xff]
        %v539 = vld [vmem:[%s447 + $0x20] sm:$0xff]
        %v540 = vld [vmem:[%s447 + $0x28] sm:$0xff]
        %v541 = vld [vmem:[%s447 + $0x30] sm:$0xff]
        %v542 = vld [vmem:[%s447 + $0x38] sm:$0xff]
        %v543 = vld [vmem:[%s457] sm:$0xff]
        %v544 = vld [vmem:[%s457 + $0x8] sm:$0xff]
        %v545 = vld [vmem:[%s457 + $0x10] sm:$0xff]
        %v546 = vld [vmem:[%s457 + $0x18] sm:$0xff]
        %v547 = vld [vmem:[%s457 + $0x20] sm:$0xff]
        %v548 = vld [vmem:[%s457 + $0x28] sm:$0xff]
        %v549 = vld [vmem:[%s457 + $0x30] sm:$0xff]
        %v550 = vld [vmem:[%s457 + $0x38] sm:$0xff]
        %vm551 = vcmask 261120
        %v552 = vsel %vm551, %v535, 0.0
        %v553 = vsel %vm551, %v536, 0.0
        %v554 = vadd.f32 %v552, %v553
        %v555 = vsel %vm551, %v537, 0.0
        %v556 = vadd.f32 %v554, %v555
        %v557 = vsel %vm551, %v538, 0.0
        %v558 = vadd.f32 %v556, %v557
        %v559 = vsel %vm551, %v539, 0.0
        %v560 = vadd.f32 %v558, %v559
        %v561 = vsel %vm551, %v540, 0.0
        %v562 = vadd.f32 %v560, %v561
        %v563 = vsel %vm551, %v541, 0.0
        %v564 = vadd.f32 %v562, %v563
        %v565 = vsel %vm551, %v542, 0.0
        %v566 = vadd.f32 %v564, %v565
        %v567 = vrot.slane %v566, 4
        %v568 = vadd.f32 %v566, %v567
        %v569 = vrot.slane %v568, 2
        %v570 = vadd.f32 %v568, %v569
        %v571 = vrot.slane %v570, 1
        %v572 = vadd.f32 %v570, %v571
        %v573 = vrcp.pop 64.0
        %v574 = vmul.f32 64.0, %v573
        %v575 = vsub.f32 1.0, %v574
        %v576 = vmul.f32 %v573, %v575
        %v577 = vadd.f32 %v573, %v576
        %vm578 = vweird.f32 %v573
        %v579 = vsel %vm578, %v573, %v577
        %v580 = vmul.f32 %v572, %v579
        %v581 = vsub.f32 %v535, %v580
        %v582 = vsub.f32 %v536, %v580
        %v583 = vsub.f32 %v537, %v580
        %v584 = vsub.f32 %v538, %v580
        %v585 = vsub.f32 %v539, %v580
        %v586 = vsub.f32 %v540, %v580
        %v587 = vsub.f32 %v541, %v580
        %v588 = vsub.f32 %v542, %v580
        %v589 = vmul.f32 %v581, %v581
        %v590 = vmul.f32 %v582, %v582
        %v591 = vmul.f32 %v583, %v583
        %v592 = vmul.f32 %v584, %v584
        %v593 = vmul.f32 %v585, %v585
        %v594 = vmul.f32 %v586, %v586
        %v595 = vmul.f32 %v587, %v587
        %v596 = vmul.f32 %v588, %v588
        %v597 = vsel %vm551, %v589, 0.0
        %v598 = vsel %vm551, %v590, 0.0
        %v599 = vadd.f32 %v597, %v598
        %v600 = vsel %vm551, %v591, 0.0
        %v601 = vadd.f32 %v599, %v600
        %v602 = vsel %vm551, %v592, 0.0
        %v603 = vadd.f32 %v601, %v602
        %v604 = vsel %vm551, %v593, 0.0
        %v605 = vadd.f32 %v603, %v604
        %v606 = vsel %vm551, %v594, 0.0
        %v607 = vadd.f32 %v605, %v606
        %v608 = vsel %vm551, %v595, 0.0
        %v609 = vadd.f32 %v607, %v608
        %v610 = vsel %vm551, %v596, 0.0
        %v611 = vadd.f32 %v609, %v610
        %v612 = vrot.slane %v611, 4
        %v613 = vadd.f32 %v611, %v612
        %v614 = vrot.slane %v613, 2
        %v615 = vadd.f32 %v613, %v614
        %v616 = vrot.slane %v615, 1
        %v617 = vadd.f32 %v615, %v616
        %v618 = vrcp.pop 63.0
        %v619 = vmul.f32 63.0, %v618
        %v620 = vsub.f32 1.0, %v619
        %v621 = vmul.f32 %v618, %v620
        %v622 = vadd.f32 %v618, %v621
        %vm623 = vweird.f32 %v618
        %v624 = vsel %vm623, %v618, %v622
        %v625 = vmul.f32 %v617, %v624
        %v626 = vadd.f32 %v625, 1e-05
        %v627 = vrsqrt.pop %v626
        %v628 = vmul.f32 %v627, %v626
        %v629 = vmul.f32 %v628, %v627
        %v630 = vmul.f32 0.5, %v629
        %v631 = vsub.f32 1.5, %v630
        %v632 = vmul.f32 %v627, %v631
        %vm633 = vweird.f32 %v626
        %vm634 = vweird.f32 %v627
        %vm635 = vmor %vm633, %vm634
        %v636 = vsel %vm635, %v627, %v632
        %v637 = vmul.f32 %v581, %v636
        %v638 = vmul.f32 %v582, %v636
        %v639 = vmul.f32 %v583, %v636
        %v640 = vmul.f32 %v584, %v636
        %v641 = vmul.f32 %v585, %v636
        %v642 = vmul.f32 %v586, %v636
        %v643 = vmul.f32 %v587, %v636
        %v644 = vmul.f32 %v588, %v636
        %v645 = vpack.c.bf16 %v638, %v637
        %v646 = vpack.c.bf16 %v640, %v639
        %v647 = vpack.c.bf16 %v642, %v641
        %v648 = vpack.c.bf16 %v644, %v643
        %v649 = vld [vmem:[%s2] sm:$0xf]
        %v650 = vld [vmem:[%s2 + $0x4] sm:$0xf]
        %v651 = vld [vmem:[%s2 + $0x8] sm:$0xf]
        %v652 = vld [vmem:[%s2 + $0xc] sm:$0xf]
        %v653 = vld [vmem:[%s3] sm:$0x1]
        %v655 = vperm.slane %v653, 0
        %v661 = vunpack.c.l.b16 %v649
        %v662 = vunpack.c.l.b16 %v650
        %v663 = vunpack.c.l.b16 %v651
        %v664 = vunpack.c.l.b16 %v652
        %v665 = vpack.c.b16 %v662, %v661
        %v666 = vpack.c.b16 %v664, %v663
        %v670 = vsel %vm551, %v645, 0
        %v673 = vsel %vm551, %v646, 0
        %v676 = vsel %vm551, %v647, 0
        %v679 = vsel %vm551, %v648, 0
        %681 = vmatpush.bf16.msra.mxu0 0
        %682 = vmatpush.bf16.msra.mxu0 0
        %683 = vmatpush.bf16.msra.mxu0 0
        %684 = vmatpush.bf16.msra.mxu0 0
        %685 = vmatpush.bf16.msra.mxu0 0
        %686 = vmatpush.bf16.msra.mxu0 0
        %687 = vmatpush.bf16.msra.mxu0 %v666
        %688 = vmatpush.bf16.msra.mxu0 %v665
        %689 = vmatmul.bf16.gmra.mxu0 %v670
        %v690 = vpop.f32.mrf.mxu0
        %v691 = vadd.f32 %v655, %v690
        %v692 = vpop.f32.mrf.mxu0
        %v693 = vadd.f32 %v655, %v692
        %694 = vmatmul.bf16.gmra.mxu0 %v673
        %v695 = vpop.f32.mrf.mxu0
        %v696 = vadd.f32 %v655, %v695
        %v697 = vpop.f32.mrf.mxu0
        %v698 = vadd.f32 %v655, %v697
        %699 = vmatmul.bf16.gmra.mxu0 %v676
        %v700 = vpop.f32.mrf.mxu0
        %v701 = vadd.f32 %v655, %v700
        %v702 = vpop.f32.mrf.mxu0
        %v703 = vadd.f32 %v655, %v702
        %704 = vmatmul.bf16.gmra.mxu0 %v679
        %v705 = vpop.f32.mrf.mxu0
        %v706 = vadd.f32 %v655, %v705
        %v707 = vpop.f32.mrf.mxu0
        %v708 = vadd.f32 %v655, %v707
        %709 = vdwg.mxu0
        %v710 = vsel %vm551, %v543, 0.0
        %v711 = vsel %vm551, %v544, 0.0
        %v712 = vadd.f32 %v710, %v711
        %v713 = vsel %vm551, %v545, 0.0
        %v714 = vadd.f32 %v712, %v713
        %v715 = vsel %vm551, %v546, 0.0
        %v716 = vadd.f32 %v714, %v715
        %v717 = vsel %vm551, %v547, 0.0
        %v718 = vadd.f32 %v716, %v717
        %v719 = vsel %vm551, %v548, 0.0
        %v720 = vadd.f32 %v718, %v719
        %v721 = vsel %vm551, %v549, 0.0
        %v722 = vadd.f32 %v720, %v721
        %v723 = vsel %vm551, %v550, 0.0
        %v724 = vadd.f32 %v722, %v723
        %v725 = vrot.slane %v724, 4
        %v726 = vadd.f32 %v724, %v725
        %v727 = vrot.slane %v726, 2
        %v728 = vadd.f32 %v726, %v727
        %v729 = vrot.slane %v728, 1
        %v730 = vadd.f32 %v728, %v729
        %v731 = vmul.f32 %v730, %v579
        %v732 = vsub.f32 %v543, %v731
        %v733 = vsub.f32 %v544, %v731
        %v734 = vsub.f32 %v545, %v731
        %v735 = vsub.f32 %v546, %v731
        %v736 = vsub.f32 %v547, %v731
        %v737 = vsub.f32 %v548, %v731
        %v738 = vsub.f32 %v549, %v731
        %v739 = vsub.f32 %v550, %v731
        %v740 = vmul.f32 %v732, %v732
        %v741 = vmul.f32 %v733, %v733
        %v742 = vmul.f32 %v734, %v734
        %v743 = vmul.f32 %v735, %v735
        %v744 = vmul.f32 %v736, %v736
        %v745 = vmul.f32 %v737, %v737
        %v746 = vmul.f32 %v738, %v738
        %v747 = vmul.f32 %v739, %v739
        %v748 = vsel %vm551, %v740, 0.0
        %v749 = vsel %vm551, %v741, 0.0
        %v750 = vadd.f32 %v748, %v749
        %v751 = vsel %vm551, %v742, 0.0
        %v752 = vadd.f32 %v750, %v751
        %v753 = vsel %vm551, %v743, 0.0
        %v754 = vadd.f32 %v752, %v753
        %v755 = vsel %vm551, %v744, 0.0
        %v756 = vadd.f32 %v754, %v755
        %v757 = vsel %vm551, %v745, 0.0
        %v758 = vadd.f32 %v756, %v757
        %v759 = vsel %vm551, %v746, 0.0
        %v760 = vadd.f32 %v758, %v759
        %v761 = vsel %vm551, %v747, 0.0
        %v762 = vadd.f32 %v760, %v761
        %v763 = vrot.slane %v762, 4
        %v764 = vadd.f32 %v762, %v763
        %v765 = vrot.slane %v764, 2
        %v766 = vadd.f32 %v764, %v765
        %v767 = vrot.slane %v766, 1
        %v768 = vadd.f32 %v766, %v767
        %v769 = vmul.f32 %v768, %v624
        %v770 = vadd.f32 %v769, 1e-05
        %v771 = vrsqrt.pop %v770
        %v772 = vmul.f32 %v771, %v770
        %v773 = vmul.f32 %v772, %v771
        %v774 = vmul.f32 0.5, %v773
        %v775 = vsub.f32 1.5, %v774
        %v776 = vmul.f32 %v771, %v775
        %vm777 = vweird.f32 %v770
        %vm778 = vweird.f32 %v771
        %vm779 = vmor %vm777, %vm778
        %v780 = vsel %vm779, %v771, %v776
        %v781 = vmul.f32 %v732, %v780
        %v782 = vmul.f32 %v733, %v780
        %v783 = vmul.f32 %v734, %v780
        %v784 = vmul.f32 %v735, %v780
        %v785 = vmul.f32 %v736, %v780
        %v786 = vmul.f32 %v737, %v780
        %v787 = vmul.f32 %v738, %v780
        %v788 = vmul.f32 %v739, %v780
        %v789 = vpack.c.bf16 %v782, %v781
        %v790 = vpack.c.bf16 %v784, %v783
        %v791 = vpack.c.bf16 %v786, %v785
        %v792 = vpack.c.bf16 %v788, %v787
        %v793 = vld [vmem:[%s4] sm:$0xf]
        %v794 = vld [vmem:[%s4 + $0x4] sm:$0xf]
        %v795 = vld [vmem:[%s4 + $0x8] sm:$0xf]
        %v796 = vld [vmem:[%s4 + $0xc] sm:$0xf]
        %v797 = vld [vmem:[%s5] sm:$0x1]
        %v799 = vperm.slane %v797, 0
        %v805 = vunpack.c.l.b16 %v793
        %v806 = vunpack.c.l.b16 %v794
        %v807 = vunpack.c.l.b16 %v795
        %v808 = vunpack.c.l.b16 %v796
        %v809 = vpack.c.b16 %v806, %v805
        %v810 = vpack.c.b16 %v808, %v807
        %v814 = vsel %vm551, %v789, 0
        %v817 = vsel %vm551, %v790, 0
        %v820 = vsel %vm551, %v791, 0
        %v823 = vsel %vm551, %v792, 0
        %825 = vmatpush.bf16.msra.mxu0 0
        %826 = vmatpush.bf16.msra.mxu0 0
        %827 = vmatpush.bf16.msra.mxu0 0
        %828 = vmatpush.bf16.msra.mxu0 0
        %829 = vmatpush.bf16.msra.mxu0 0
        %830 = vmatpush.bf16.msra.mxu0 0
        %831 = vmatpush.bf16.msra.mxu0 %v810
        %832 = vmatpush.bf16.msra.mxu0 %v809
        %833 = vmatmul.bf16.gmra.mxu0 %v814
        %v834 = vpop.f32.mrf.mxu0
        %v835 = vadd.f32 %v799, %v834
        %v836 = vpop.f32.mrf.mxu0
        %v837 = vadd.f32 %v799, %v836
        %838 = vmatmul.bf16.gmra.mxu0 %v817
        %v839 = vpop.f32.mrf.mxu0
        %v840 = vadd.f32 %v799, %v839
        %v841 = vpop.f32.mrf.mxu0
        %v842 = vadd.f32 %v799, %v841
        %843 = vmatmul.bf16.gmra.mxu0 %v820
        %v844 = vpop.f32.mrf.mxu0
        %v845 = vadd.f32 %v799, %v844
        %v846 = vpop.f32.mrf.mxu0
        %v847 = vadd.f32 %v799, %v846
        %848 = vmatmul.bf16.gmra.mxu0 %v823
        %v849 = vpop.f32.mrf.mxu0
        %v850 = vadd.f32 %v799, %v849
        %v851 = vpop.f32.mrf.mxu0
        %v852 = vadd.f32 %v799, %v851
        %853 = vdwg.mxu0
        %v854 = vpack.c.bf16 %v544, %v543
        %v855 = vpack.c.bf16 %v546, %v545
        %v856 = vpack.c.bf16 %v548, %v547
        %v857 = vpack.c.bf16 %v550, %v549
        %v858 = vld [vmem:[#allocation7] sm:$0xf]
        %v859 = vld [vmem:[#allocation7 + $0x4] sm:$0xf]
        %v860 = vld [vmem:[#allocation7 + $0x8] sm:$0xf]
        %v861 = vld [vmem:[#allocation7 + $0xc] sm:$0xf]
        %v862 = vld [vmem:[%s7] sm:$0x1]
        %v864 = vperm.slane %v862, 0
        %v870 = vunpack.c.l.b16 %v858
        %v871 = vunpack.c.l.b16 %v859
        %v872 = vunpack.c.l.b16 %v860
        %v873 = vunpack.c.l.b16 %v861
        %v874 = vpack.c.b16 %v871, %v870
        %v875 = vpack.c.b16 %v873, %v872
        %v879 = vsel %vm551, %v854, 0
        %v882 = vsel %vm551, %v855, 0
        %v885 = vsel %vm551, %v856, 0
        %v888 = vsel %vm551, %v857, 0
        %890 = vmatpush.bf16.msra.mxu0 0
        %891 = vmatpush.bf16.msra.mxu0 0
        %892 = vmatpush.bf16.msra.mxu0 0
        %893 = vmatpush.bf16.msra.mxu0 0
        %894 = vmatpush.bf16.msra.mxu0 0
        %895 = vmatpush.bf16.msra.mxu0 0
        %896 = vmatpush.bf16.msra.mxu0 %v875
        %897 = vmatpush.bf16.msra.mxu0 %v874
        %898 = vmatmul.bf16.gmra.mxu0 %v879
        %v899 = vpop.f32.mrf.mxu0
        %v900 = vadd.f32 %v864, %v899
        %v901 = vpop.f32.mrf.mxu0
        %v902 = vadd.f32 %v864, %v901
        %903 = vmatmul.bf16.gmra.mxu0 %v882
        %v904 = vpop.f32.mrf.mxu0
        %v905 = vadd.f32 %v864, %v904
        %v906 = vpop.f32.mrf.mxu0
        %v907 = vadd.f32 %v864, %v906
        %908 = vmatmul.bf16.gmra.mxu0 %v885
        %v909 = vpop.f32.mrf.mxu0
        %v910 = vadd.f32 %v864, %v909
        %v911 = vpop.f32.mrf.mxu0
        %v912 = vadd.f32 %v864, %v911
        %913 = vmatmul.bf16.gmra.mxu0 %v888
        %v914 = vpop.f32.mrf.mxu0
        %v915 = vadd.f32 %v864, %v914
        %v916 = vpop.f32.mrf.mxu0
        %v917 = vadd.f32 %v864, %v916
        %918 = vdwg.mxu0
        %v919 = vpack.c.bf16 %v693, %v691
        %v920 = vpack.c.bf16 %v698, %v696
        %v921 = vpack.c.bf16 %v703, %v701
        %v922 = vpack.c.bf16 %v708, %v706
        %v923 = vpack.c.bf16 %v837, %v835
        %v924 = vpack.c.bf16 %v842, %v840
        %v925 = vpack.c.bf16 %v847, %v845
        %v926 = vpack.c.bf16 %v852, %v850
        %v928 = vsel %vm551, %v919, 0
        %v931 = vsel %vm551, %v920, 0
        %v934 = vsel %vm551, %v921, 0
        %v937 = vsel %vm551, %v922, 0
        %v940 = vsel %vm551, %v923, 0
        %v943 = vsel %vm551, %v924, 0
        %v946 = vsel %vm551, %v925, 0
        %v949 = vsel %vm551, %v926, 0
        %951 = vmatpush.bf16.xpose.msra.mxu0 0
        %952 = vmatpush.bf16.xpose.msra.mxu0 0
        %953 = vmatpush.bf16.xpose.msra.mxu0 0
        %954 = vmatpush.bf16.xpose.msra.mxu0 0
        %955 = vmatpush.bf16.xpose.msra.mxu0 %v949
        %956 = vmatpush.bf16.xpose.msra.mxu0 %v946
        %957 = vmatpush.bf16.xpose.msra.mxu0 %v943
        %958 = vmatpush.bf16.xpose.msra.mxu0 %v940
        %959 = vmatmul.bf16.gmra.mxu0 %v928
        %v960 = vpop.f32.mrf.mxu0
        %v961 = vadd.f32 0.0, %v960
        %v962 = vpop.f32.mrf.mxu0
        %v963 = vadd.f32 0.0, %v962
        %964 = vmatmul.bf16.gmra.mxu0 %v931
        %v965 = vpop.f32.mrf.mxu0
        %v966 = vadd.f32 0.0, %v965
        %v967 = vpop.f32.mrf.mxu0
        %v968 = vadd.f32 0.0, %v967
        %969 = vmatmul.bf16.gmra.mxu0 %v934
        %v970 = vpop.f32.mrf.mxu0
        %v971 = vadd.f32 0.0, %v970
        %v972 = vpop.f32.mrf.mxu0
        %v973 = vadd.f32 0.0, %v972
        %974 = vmatmul.bf16.gmra.mxu0 %v937
        %v975 = vpop.f32.mrf.mxu0
        %v976 = vadd.f32 0.0, %v975
        %v977 = vpop.f32.mrf.mxu0
        %v978 = vadd.f32 0.0, %v977
        %979 = vdwg.mxu0
        %vm980 = vcmask 523264
        %v981 = vsel %vm980, %v961, -inf
        %982 = vmax.xlane.f32.xlu0 %v981
        %v983 = vpop.xlane.xlu0 %982
        %v984 = vsel %vm980, %v963, -inf
        %985 = vmax.xlane.f32.xlu0 %v984
        %v986 = vpop.xlane.xlu0 %985
        %v987 = vsel %vm980, %v966, -inf
        %988 = vmax.xlane.f32.xlu0 %v987
        %v989 = vpop.xlane.xlu0 %988
        %v990 = vsel %vm980, %v968, -inf
        %991 = vmax.xlane.f32.xlu0 %v990
        %v992 = vpop.xlane.xlu0 %991
        %v993 = vsel %vm980, %v971, -inf
        %994 = vmax.xlane.f32.xlu0 %v993
        %v995 = vpop.xlane.xlu0 %994
        %v996 = vsel %vm980, %v973, -inf
        %997 = vmax.xlane.f32.xlu0 %v996
        %v998 = vpop.xlane.xlu0 %997
        %v999 = vsel %vm980, %v976, -inf
        %1000 = vmax.xlane.f32.xlu0 %v999
        %v1001 = vpop.xlane.xlu0 %1000
        %v1002 = vsel %vm980, %v978, -inf
        %1003 = vmax.xlane.f32.xlu0 %v1002
        %v1004 = vpop.xlane.xlu0 %1003
        %v1005 = vsub.f32 %v961, %v983
        %v1006 = vsub.f32 %v963, %v986
        %v1007 = vsub.f32 %v966, %v989
        %v1008 = vsub.f32 %v968, %v992
        %v1009 = vsub.f32 %v971, %v995
        %v1010 = vsub.f32 %v973, %v998
        %v1011 = vsub.f32 %v976, %v1001
        %v1012 = vsub.f32 %v978, %v1004
        %v1013 = vmul.f32 %v1005, 1.442695
        %v1014 = vpow.pop %v1013
        %v1015 = vmul.f32 %v1006, 1.442695
        %v1016 = vpow.pop %v1015
        %v1017 = vmul.f32 %v1007, 1.442695
        %v1018 = vpow.pop %v1017
        %v1019 = vmul.f32 %v1008, 1.442695
        %v1020 = vpow.pop %v1019
        %v1021 = vmul.f32 %v1009, 1.442695
        %v1022 = vpow.pop %v1021
        %v1023 = vmul.f32 %v1010, 1.442695
        %v1024 = vpow.pop %v1023
        %v1025 = vmul.f32 %v1011, 1.442695
        %v1026 = vpow.pop %v1025
        %v1027 = vmul.f32 %v1012, 1.442695
        %v1028 = vpow.pop %v1027
        %v1029 = vsel %vm980, %v1014, 0.0
        %1030 = vadd.xlane.f32.xlu0 %v1029
        %v1031 = vpop.xlane.xlu0 %1030
        %v1032 = vsel %vm980, %v1016, 0.0
        %1033 = vadd.xlane.f32.xlu0 %v1032
        %v1034 = vpop.xlane.xlu0 %1033
        %v1035 = vsel %vm980, %v1018, 0.0
        %1036 = vadd.xlane.f32.xlu0 %v1035
        %v1037 = vpop.xlane.xlu0 %1036
        %v1038 = vsel %vm980, %v1020, 0.0
        %1039 = vadd.xlane.f32.xlu0 %v1038
        %v1040 = vpop.xlane.xlu0 %1039
        %v1041 = vsel %vm980, %v1022, 0.0
        %1042 = vadd.xlane.f32.xlu0 %v1041
        %v1043 = vpop.xlane.xlu0 %1042
        %v1044 = vsel %vm980, %v1024, 0.0
        %1045 = vadd.xlane.f32.xlu0 %v1044
        %v1046 = vpop.xlane.xlu0 %1045
        %v1047 = vsel %vm980, %v1026, 0.0
        %1048 = vadd.xlane.f32.xlu0 %v1047
        %v1049 = vpop.xlane.xlu0 %1048
        %v1050 = vsel %vm980, %v1028, 0.0
        %1051 = vadd.xlane.f32.xlu0 %v1050
        %v1052 = vpop.xlane.xlu0 %1051
        %v1053 = vrcp.pop %v1031
        %v1054 = vmul.f32 %v1031, %v1053
        %v1055 = vsub.f32 1.0, %v1054
        %v1056 = vmul.f32 %v1053, %v1055
        %v1057 = vadd.f32 %v1053, %v1056
        %vm1058 = vweird.f32 %v1031
        %vm1059 = vweird.f32 %v1053
        %vm1060 = vmor %vm1058, %vm1059
        %v1061 = vsel %vm1060, %v1053, %v1057
        %v1062 = vand.u32 2147483647, %v1031
        %vm1063 = vcmp.eq.f32.partialorder %v1062, 8.507059e+37
        %v1064 = vand.u32 %v1031, 2147483648
        %v1065 = vor.u32 1.1754944e-38, %v1064
        %v1066 = vsel %vm1063, %v1065, %v1061
        %v1067 = vrcp.pop %v1034
        %v1068 = vmul.f32 %v1034, %v1067
        %v1069 = vsub.f32 1.0, %v1068
        %v1070 = vmul.f32 %v1067, %v1069
        %v1071 = vadd.f32 %v1067, %v1070
        %vm1072 = vweird.f32 %v1034
        %vm1073 = vweird.f32 %v1067
        %vm1074 = vmor %vm1072, %vm1073
        %v1075 = vsel %vm1074, %v1067, %v1071
        %v1076 = vand.u32 2147483647, %v1034
        %vm1077 = vcmp.eq.f32.partialorder %v1076, 8.507059e+37
        %v1078 = vand.u32 %v1034, 2147483648
        %v1079 = vor.u32 1.1754944e-38, %v1078
        %v1080 = vsel %vm1077, %v1079, %v1075
        %v1081 = vrcp.pop %v1037
        %v1082 = vmul.f32 %v1037, %v1081
        %v1083 = vsub.f32 1.0, %v1082
        %v1084 = vmul.f32 %v1081, %v1083
        %v1085 = vadd.f32 %v1081, %v1084
        %vm1086 = vweird.f32 %v1037
        %vm1087 = vweird.f32 %v1081
        %vm1088 = vmor %vm1086, %vm1087
        %v1089 = vsel %vm1088, %v1081, %v1085
        %v1090 = vand.u32 2147483647, %v1037
        %vm1091 = vcmp.eq.f32.partialorder %v1090, 8.507059e+37
        %v1092 = vand.u32 %v1037, 2147483648
        %v1093 = vor.u32 1.1754944e-38, %v1092
        %v1094 = vsel %vm1091, %v1093, %v1089
        %v1095 = vrcp.pop %v1040
        %v1096 = vmul.f32 %v1040, %v1095
        %v1097 = vsub.f32 1.0, %v1096
        %v1098 = vmul.f32 %v1095, %v1097
        %v1099 = vadd.f32 %v1095, %v1098
        %vm1100 = vweird.f32 %v1040
        %vm1101 = vweird.f32 %v1095
        %vm1102 = vmor %vm1100, %vm1101
        %v1103 = vsel %vm1102, %v1095, %v1099
        %v1104 = vand.u32 2147483647, %v1040
        %vm1105 = vcmp.eq.f32.partialorder %v1104, 8.507059e+37
        %v1106 = vand.u32 %v1040, 2147483648
        %v1107 = vor.u32 1.1754944e-38, %v1106
        %v1108 = vsel %vm1105, %v1107, %v1103
        %v1109 = vrcp.pop %v1043
        %v1110 = vmul.f32 %v1043, %v1109
        %v1111 = vsub.f32 1.0, %v1110
        %v1112 = vmul.f32 %v1109, %v1111
        %v1113 = vadd.f32 %v1109, %v1112
        %vm1114 = vweird.f32 %v1043
        %vm1115 = vweird.f32 %v1109
        %vm1116 = vmor %vm1114, %vm1115
        %v1117 = vsel %vm1116, %v1109, %v1113
        %v1118 = vand.u32 2147483647, %v1043
        %vm1119 = vcmp.eq.f32.partialorder %v1118, 8.507059e+37
        %v1120 = vand.u32 %v1043, 2147483648
        %v1121 = vor.u32 1.1754944e-38, %v1120
        %v1122 = vsel %vm1119, %v1121, %v1117
        %v1123 = vrcp.pop %v1046
        %v1124 = vmul.f32 %v1046, %v1123
        %v1125 = vsub.f32 1.0, %v1124
        %v1126 = vmul.f32 %v1123, %v1125
        %v1127 = vadd.f32 %v1123, %v1126
        %vm1128 = vweird.f32 %v1046
        %vm1129 = vweird.f32 %v1123
        %vm1130 = vmor %vm1128, %vm1129
        %v1131 = vsel %vm1130, %v1123, %v1127
        %v1132 = vand.u32 2147483647, %v1046
        %vm1133 = vcmp.eq.f32.partialorder %v1132, 8.507059e+37
        %v1134 = vand.u32 %v1046, 2147483648
        %v1135 = vor.u32 1.1754944e-38, %v1134
        %v1136 = vsel %vm1133, %v1135, %v1131
        %v1137 = vrcp.pop %v1049
        %v1138 = vmul.f32 %v1049, %v1137
        %v1139 = vsub.f32 1.0, %v1138
        %v1140 = vmul.f32 %v1137, %v1139
        %v1141 = vadd.f32 %v1137, %v1140
        %vm1142 = vweird.f32 %v1049
        %vm1143 = vweird.f32 %v1137
        %vm1144 = vmor %vm1142, %vm1143
        %v1145 = vsel %vm1144, %v1137, %v1141
        %v1146 = vand.u32 2147483647, %v1049
        %vm1147 = vcmp.eq.f32.partialorder %v1146, 8.507059e+37
        %v1148 = vand.u32 %v1049, 2147483648
        %v1149 = vor.u32 1.1754944e-38, %v1148
        %v1150 = vsel %vm1147, %v1149, %v1145
        %v1151 = vrcp.pop %v1052
        %v1152 = vmul.f32 %v1052, %v1151
        %v1153 = vsub.f32 1.0, %v1152
        %v1154 = vmul.f32 %v1151, %v1153
        %v1155 = vadd.f32 %v1151, %v1154
        %vm1156 = vweird.f32 %v1052
        %vm1157 = vweird.f32 %v1151
        %vm1158 = vmor %vm1156, %vm1157
        %v1159 = vsel %vm1158, %v1151, %v1155
        %v1160 = vand.u32 2147483647, %v1052
        %vm1161 = vcmp.eq.f32.partialorder %v1160, 8.507059e+37
        %v1162 = vand.u32 %v1052, 2147483648
        %v1163 = vor.u32 1.1754944e-38, %v1162
        %v1164 = vsel %vm1161, %v1163, %v1159
        %v1165 = vmul.f32 %v1014, %v1066
        %v1166 = vmul.f32 %v1016, %v1080
        %v1167 = vmul.f32 %v1018, %v1094
        %v1168 = vmul.f32 %v1020, %v1108
        %v1169 = vmul.f32 %v1022, %v1122
        %v1170 = vmul.f32 %v1024, %v1136
        %v1171 = vmul.f32 %v1026, %v1150
        %v1172 = vmul.f32 %v1028, %v1164
        %v1173 = vpack.c.bf16 %v1165, %v1165
        %v1174 = vpack.c.bf16 %v1166, %v1166
        %v1175 = vpack.c.bf16 %v1167, %v1167
        %v1176 = vpack.c.bf16 %v1168, %v1168
        %v1177 = vpack.c.bf16 %v1169, %v1169
        %v1178 = vpack.c.bf16 %v1170, %v1170
        %v1179 = vpack.c.bf16 %v1171, %v1171
        %v1180 = vpack.c.bf16 %v1172, %v1172
        %vm1181 = vcmask 519168
        %1182 = vst.msk [vmem:[%s516] sm:$0xf] %vm1181, %v1173
        %1183 = vst.msk [vmem:[%s516 + $0x4] sm:$0xf] %vm1181, %v1174
        %1184 = vst.msk [vmem:[%s516 + $0x8] sm:$0xf] %vm1181, %v1175
        %1185 = vst.msk [vmem:[%s516 + $0xc] sm:$0xf] %vm1181, %v1176
        %1186 = vst.msk [vmem:[%s516 + $0x10] sm:$0xf] %vm1181, %v1177
        %1187 = vst.msk [vmem:[%s516 + $0x14] sm:$0xf] %vm1181, %v1178
        %1188 = vst.msk [vmem:[%s516 + $0x18] sm:$0xf] %vm1181, %v1179
        %1189 = vst.msk [vmem:[%s516 + $0x1c] sm:$0xf] %vm1181, %v1180
        %v1190 = vmax.f32 %v983, %v995
        %v1191 = vmax.f32 %v986, %v998
        %v1192 = vmax.f32 %v989, %v1001
        %v1193 = vmax.f32 %v992, %v1004
        %v1194 = vmax.f32 %v1190, %v1191
        %v1195 = vmax.f32 %v1192, %v1193
        %v1196 = vmax.f32 %v1194, %v1195
        %v1197 = vrot.slane %v1196, 4
        %v1198 = vmax.f32 %v1196, %v1197
        %v1199 = vrot.slane %v1198, 2
        %v1200 = vmax.f32 %v1198, %v1199
        %v1201 = vrot.slane %v1200, 1
        %v1202 = vmax.f32 %v1200, %v1201
        %v1203 = vsub.f32 %v983, %v1202
        %v1204 = vsub.f32 %v986, %v1202
        %v1205 = vsub.f32 %v989, %v1202
        %v1206 = vsub.f32 %v992, %v1202
        %v1207 = vsub.f32 %v995, %v1202
        %v1208 = vsub.f32 %v998, %v1202
        %v1209 = vsub.f32 %v1001, %v1202
        %v1210 = vsub.f32 %v1004, %v1202
        %v1211 = vmul.f32 %v1203, 1.442695
        %v1212 = vpow.pop %v1211
        %v1213 = vmul.f32 %v1204, 1.442695
        %v1214 = vpow.pop %v1213
        %v1215 = vmul.f32 %v1205, 1.442695
        %v1216 = vpow.pop %v1215
        %v1217 = vmul.f32 %v1206, 1.442695
        %v1218 = vpow.pop %v1217
        %v1219 = vmul.f32 %v1207, 1.442695
        %v1220 = vpow.pop %v1219
        %v1221 = vmul.f32 %v1208, 1.442695
        %v1222 = vpow.pop %v1221
        %v1223 = vmul.f32 %v1209, 1.442695
        %v1224 = vpow.pop %v1223
        %v1225 = vmul.f32 %v1210, 1.442695
        %v1226 = vpow.pop %v1225
        %v1227 = vmul.f32 %v1014, %v1212
        %v1228 = vmul.f32 %v1016, %v1214
        %v1229 = vmul.f32 %v1018, %v1216
        %v1230 = vmul.f32 %v1020, %v1218
        %v1231 = vmul.f32 %v1022, %v1220
        %v1232 = vmul.f32 %v1024, %v1222
        %v1233 = vmul.f32 %v1026, %v1224
        %v1234 = vmul.f32 %v1028, %v1226
        %v1235 = vsel %vm980, %v1227, 0.0
        %v1236 = vsel %vm980, %v1228, 0.0
        %v1237 = vadd.f32 %v1235, %v1236
        %v1238 = vsel %vm980, %v1229, 0.0
        %v1239 = vadd.f32 %v1237, %v1238
        %v1240 = vsel %vm980, %v1230, 0.0
        %v1241 = vadd.f32 %v1239, %v1240
        %v1242 = vsel %vm980, %v1231, 0.0
        %v1243 = vadd.f32 %v1241, %v1242
        %v1244 = vsel %vm980, %v1232, 0.0
        %v1245 = vadd.f32 %v1243, %v1244
        %v1246 = vsel %vm980, %v1233, 0.0
        %v1247 = vadd.f32 %v1245, %v1246
        %v1248 = vsel %vm980, %v1234, 0.0
        %v1249 = vadd.f32 %v1247, %v1248
        %v1250 = vrot.slane %v1249, 4
        %v1251 = vadd.f32 %v1249, %v1250
        %v1252 = vrot.slane %v1251, 2
        %v1253 = vadd.f32 %v1251, %v1252
        %v1254 = vrot.slane %v1253, 1
        %v1255 = vadd.f32 %v1253, %v1254
        %v1256 = vrcp.pop %v1255
        %v1257 = vmul.f32 %v1255, %v1256
        %v1258 = vsub.f32 1.0, %v1257
        %v1259 = vmul.f32 %v1256, %v1258
        %v1260 = vadd.f32 %v1256, %v1259
        %vm1261 = vweird.f32 %v1255
        %vm1262 = vweird.f32 %v1256
        %vm1263 = vmor %vm1261, %vm1262
        %v1264 = vsel %vm1263, %v1256, %v1260
        %v1265 = vand.u32 2147483647, %v1255
        %vm1266 = vcmp.eq.f32.partialorder %v1265, 8.507059e+37
        %v1267 = vand.u32 %v1255, 2147483648
        %v1268 = vor.u32 1.1754944e-38, %v1267
        %v1269 = vsel %vm1266, %v1268, %v1264
        %v1270 = vmul.f32 %v1227, %v1269
        %v1271 = vmul.f32 %v1228, %v1269
        %v1272 = vmul.f32 %v1229, %v1269
        %v1273 = vmul.f32 %v1230, %v1269
        %v1274 = vmul.f32 %v1231, %v1269
        %v1275 = vmul.f32 %v1232, %v1269
        %v1276 = vmul.f32 %v1233, %v1269
        %v1277 = vmul.f32 %v1234, %v1269
        %v1278 = vpack.c.bf16 %v1270, %v1270
        %v1279 = vpack.c.bf16 %v1271, %v1271
        %v1280 = vpack.c.bf16 %v1272, %v1272
        %v1281 = vpack.c.bf16 %v1273, %v1273
        %v1282 = vpack.c.bf16 %v1274, %v1274
        %v1283 = vpack.c.bf16 %v1275, %v1275
        %v1284 = vpack.c.bf16 %v1276, %v1276
        %v1285 = vpack.c.bf16 %v1277, %v1277
        %1286 = vst.msk [vmem:[%s533] sm:$0xf] %vm1181, %v1278
        %1287 = vst.msk [vmem:[%s533 + $0x4] sm:$0xf] %vm1181, %v1279
        %1288 = vst.msk [vmem:[%s533 + $0x8] sm:$0xf] %vm1181, %v1280
        %1289 = vst.msk [vmem:[%s533 + $0xc] sm:$0xf] %vm1181, %v1281
        %1290 = vst.msk [vmem:[%s533 + $0x10] sm:$0xf] %vm1181, %v1282
        %1291 = vst.msk [vmem:[%s533 + $0x14] sm:$0xf] %vm1181, %v1283
        %1292 = vst.msk [vmem:[%s533 + $0x18] sm:$0xf] %vm1181, %v1284
        %1293 = vst.msk [vmem:[%s533 + $0x1c] sm:$0xf] %vm1181, %v1285
        %v1294 = vpack.c.bf16 %v902, %v900
        %v1295 = vpack.c.bf16 %v907, %v905
        %v1296 = vpack.c.bf16 %v912, %v910
        %v1297 = vpack.c.bf16 %v917, %v915
        %v1306 = vunpack.c.l.b16 %v1173
        %v1307 = vunpack.c.l.b16 %v1174
        %v1308 = vunpack.c.l.b16 %v1175
        %v1309 = vunpack.c.l.b16 %v1176
        %v1310 = vunpack.c.l.b16 %v1177
        %v1311 = vunpack.c.l.b16 %v1178
        %v1312 = vunpack.c.l.b16 %v1179
        %v1313 = vunpack.c.l.b16 %v1180
        %v1314 = vpack.c.b16 %v1307, %v1306
        %v1315 = vpack.c.b16 %v1309, %v1308
        %v1316 = vpack.c.b16 %v1311, %v1310
        %v1317 = vpack.c.b16 %v1313, %v1312
        %v1319 = vsel %vm980, %v1314, 0
        %v1322 = vsel %vm980, %v1315, 0
        %v1325 = vsel %vm980, %v1316, 0
        %v1328 = vsel %vm980, %v1317, 0
        %1330 = vmatpush.bf16.msra.mxu0 0
        %1331 = vmatpush.bf16.msra.mxu0 0
        %1332 = vmatpush.bf16.msra.mxu0 0
        %1333 = vmatpush.bf16.msra.mxu0 0
        %1334 = vmatpush.bf16.msra.mxu0 %v1297
        %1335 = vmatpush.bf16.msra.mxu0 %v1296
        %1336 = vmatpush.bf16.msra.mxu0 %v1295
        %1337 = vmatpush.bf16.msra.mxu0 %v1294
        %1338 = vmatmul.bf16.gmra.mxu0 %v1319
        %v1339 = vpop.f32.mrf.mxu0
        %v1340 = vadd.f32 0.0, %v1339
        %v1341 = vpop.f32.mrf.mxu0
        %v1342 = vadd.f32 0.0, %v1341
        %1343 = vmatmul.bf16.gmra.mxu0 %v1322
        %v1344 = vpop.f32.mrf.mxu0
        %v1345 = vadd.f32 0.0, %v1344
        %v1346 = vpop.f32.mrf.mxu0
        %v1347 = vadd.f32 0.0, %v1346
        %1348 = vmatmul.bf16.gmra.mxu0 %v1325
        %v1349 = vpop.f32.mrf.mxu0
        %v1350 = vadd.f32 0.0, %v1349
        %v1351 = vpop.f32.mrf.mxu0
        %v1352 = vadd.f32 0.0, %v1351
        %1353 = vmatmul.bf16.gmra.mxu0 %v1328
        %v1354 = vpop.f32.mrf.mxu0
        %v1355 = vadd.f32 0.0, %v1354
        %v1356 = vpop.f32.mrf.mxu0
        %v1357 = vadd.f32 0.0, %v1356
        %1358 = vdwg.mxu0
        %v1359 = vpack.c.bf16 %v1342, %v1340
        %v1360 = vpack.c.bf16 %v1347, %v1345
        %v1361 = vpack.c.bf16 %v1352, %v1350
        %v1362 = vpack.c.bf16 %v1357, %v1355
        %v1363 = vld [vmem:[#allocation8] sm:$0xf]
        %v1364 = vld [vmem:[#allocation8 + $0x4] sm:$0xf]
        %v1365 = vld [vmem:[#allocation8 + $0x8] sm:$0xf]
        %v1366 = vld [vmem:[#allocation8 + $0xc] sm:$0xf]
        %v1367 = vld [vmem:[%s9] sm:$0x1]
        %v1369 = vperm.slane %v1367, 0
        %v1375 = vunpack.c.l.b16 %v1363
        %v1376 = vunpack.c.l.b16 %v1364
        %v1377 = vunpack.c.l.b16 %v1365
        %v1378 = vunpack.c.l.b16 %v1366
        %v1379 = vpack.c.b16 %v1376, %v1375
        %v1380 = vpack.c.b16 %v1378, %v1377
        %v1384 = vsel %vm551, %v1359, 0
        %v1387 = vsel %vm551, %v1360, 0
        %v1390 = vsel %vm551, %v1361, 0
        %v1393 = vsel %vm551, %v1362, 0
        %1395 = vmatpush.bf16.msra.mxu0 0
        %1396 = vmatpush.bf16.msra.mxu0 0
        %1397 = vmatpush.bf16.msra.mxu0 0
        %1398 = vmatpush.bf16.msra.mxu0 0
        %1399 = vmatpush.bf16.msra.mxu0 0
        %1400 = vmatpush.bf16.msra.mxu0 0
        %1401 = vmatpush.bf16.msra.mxu0 %v1380
        %1402 = vmatpush.bf16.msra.mxu0 %v1379
        %1403 = vmatmul.bf16.gmra.mxu0 %v1384
        %v1404 = vpop.f32.mrf.mxu0
        %v1405 = vadd.f32 %v1369, %v1404
        %v1406 = vpop.f32.mrf.mxu0
        %v1407 = vadd.f32 %v1369, %v1406
        %1408 = vmatmul.bf16.gmra.mxu0 %v1387
        %v1409 = vpop.f32.mrf.mxu0
        %v1410 = vadd.f32 %v1369, %v1409
        %v1411 = vpop.f32.mrf.mxu0
        %v1412 = vadd.f32 %v1369, %v1411
        %1413 = vmatmul.bf16.gmra.mxu0 %v1390
        %v1414 = vpop.f32.mrf.mxu0
        %v1415 = vadd.f32 %v1369, %v1414
        %v1416 = vpop.f32.mrf.mxu0
        %v1417 = vadd.f32 %v1369, %v1416
        %1418 = vmatmul.bf16.gmra.mxu0 %v1393
        %v1419 = vpop.f32.mrf.mxu0
        %v1420 = vadd.f32 %v1369, %v1419
        %v1421 = vpop.f32.mrf.mxu0
        %v1422 = vadd.f32 %v1369, %v1421
        %1423 = vdwg.mxu0
        %v1424 = vadd.f32 %v535, %v1405
        %v1425 = vadd.f32 %v536, %v1407
        %v1426 = vadd.f32 %v537, %v1410
        %v1427 = vadd.f32 %v538, %v1412
        %v1428 = vadd.f32 %v539, %v1415
        %v1429 = vadd.f32 %v540, %v1417
        %v1430 = vadd.f32 %v541, %v1420
        %v1431 = vadd.f32 %v542, %v1422
        %1432 = vst.msk [vmem:[%s528] sm:$0xff] %vm551, %v1424
        %1433 = vst.msk [vmem:[%s528 + $0x8] sm:$0xff] %vm551, %v1425
        %1434 = vst.msk [vmem:[%s528 + $0x10] sm:$0xff] %vm551, %v1426
        %1435 = vst.msk [vmem:[%s528 + $0x18] sm:$0xff] %vm551, %v1427
        %1436 = vst.msk [vmem:[%s528 + $0x20] sm:$0xff] %vm551, %v1428
        %1437 = vst.msk [vmem:[%s528 + $0x28] sm:$0xff] %vm551, %v1429
        %1438 = vst.msk [vmem:[%s528 + $0x30] sm:$0xff] %vm551, %v1430
        %1439 = vst.msk [vmem:[%s528 + $0x38] sm:$0xff] %vm551, %v1431
        %p1440 = scmp.lt.s32.totalorder %s34, 1
        %s1441 = scalar_select %p1440, %s34, 1
        %s1442 = smul.addr %s1441, 8
        %s1443 = smul.addr %s1442, 8
        %s1444 = scalar_lea.vmem %s10, %s1443
        %s1445 = sand.u32 %s288, 1
        %s1446 = scalar_lea.sflag [#allocation4], %s1445
        %s1447 = sand.u32 %s288, 1
        %s1448 = smul.addr %s1447, 32
        %s1449 = scalar_lea.vmem [#allocation10], %s1448
        %p1450 = scmp.lt.s32.totalorder %s34, 1
        %s1451 = scalar_select %p1450, %s34, 1
        %s1452 = smul.addr %s1451, 8
        %s1453 = smul.addr %s1452, 4
        %s1454 = scalar_lea.vmem %s12, %s1453
        // Predicated region
        $region77: #{_lambda_.3} parent=59 // pred_check
          %p1455 = pneg %p272
        $region78: #{_lambda_.3} parent=59 // pred_check_branch
          %1457 = sbr.rel (%p1455) target = $region80
        $region79: #{_lambda_.3} parent=59 // pred_region
          _
        $region80: #{_lambda_.3} parent=59 // pred_fallthru
          _
        // Predicated region
        $region81: #{_lambda_.3} parent=59 // pred_check
          %p1458 = pneg %p298
        $region82: #{_lambda_.3} parent=59 // pred_check_branch
          %1460 = sbr.rel (%p1458) target = $region84
        $region83: #{_lambda_.3} parent=59 // pred_region
          %1462 = vsyncadd %s1446, 0
          %s1463 = smul.addr %s34, 8
          %s1464 = smul.addr %s1463, 4
          %s1465 = scalar_lea.hbm %s11, %s1464
          %s1466 = sshll.u32 %s1449, 4
          %s1467 = int_to_ptr.vmem [resolvable:$true] %s1466
          %s1468 = sshll.u32 %s1465, 4
          %s1469 = int_to_ptr.hbm [resolvable:$true] %s1468
          %1474 = dma.vmem_to_hbm [thread:$0]  %s1467, 512, %s1469, %s1446, 64, 64, 4
        $region84: #{_lambda_.3} parent=59 // pred_fallthru
          _
        // Predicated region
        $region85: #{_lambda_.3} parent=59 // pred_check
          %p1475 = pneg %p324
        $region86: #{_lambda_.3} parent=59 // pred_check_branch
          %1477 = sbr.rel (%p1475) target = $region88
        $region87: #{_lambda_.3} parent=59 // pred_region
          _
        $region88: #{_lambda_.3} parent=59 // pred_fallthru
          _
      $region60: #{_lambda_.3} parent=5 // pred_fallthru
        _
      %p1478 = scmp.le.s32.totalorder 2, %s29
      // Predicated region
      $region89: #{_lambda_.3} parent=5 // pred_check
        %p1479 = pneg %p1478
      $region90: #{_lambda_.3} parent=5 // pred_check_branch
        %1481 = sbr.rel (%p1479) target = $region92
      $region91: #{_lambda_.3} parent=5 // pred_region
        %s1482 = ssub.s32 %s29, 2
        // Predicated region
        $region93: #{_lambda_.3} parent=91 // pred_check
          %p1483 = pneg %p278
        $region94: #{_lambda_.3} parent=91 // pred_check_branch
          %1485 = sbr.rel (%p1483) target = $region96
        $region95: #{_lambda_.3} parent=91 // pred_region
          %p1486 = scmp.lt.s32.totalorder %s35, 1
          %s1487 = scalar_select %p1486, %s35, 1
          %s1488 = smul.addr %s1487, 8
          %s1489 = smul.addr %s1488, 8
          %s1490 = scalar_lea.vmem %s10, %s1489
        $region96: #{_lambda_.3} parent=91 // pred_fallthru
          _
        // Predicated region
        $region97: #{_lambda_.3} parent=91 // pred_check
          %p1491 = pneg %p304
        $region98: #{_lambda_.3} parent=91 // pred_check_branch
          %1493 = sbr.rel (%p1491) target = $region100
        $region99: #{_lambda_.3} parent=91 // pred_region
          %s1494 = sand.u32 %s289, 1
          %s1495 = scalar_lea.sflag [#allocation4], %s1494
          %s1496 = sand.u32 %s289, 1
          %s1497 = smul.addr %s1496, 32
          %s1498 = scalar_lea.vmem [#allocation10], %s1497
          %1500 = dma.done %s1495, 512
        $region100: #{_lambda_.3} parent=91 // pred_fallthru
          _
        // Predicated region
        $region101: #{_lambda_.3} parent=91 // pred_check
          %p1501 = pneg %p330
        $region102: #{_lambda_.3} parent=91 // pred_check_branch
          %1503 = sbr.rel (%p1501) target = $region104
        $region103: #{_lambda_.3} parent=91 // pred_region
          %p1504 = scmp.lt.s32.totalorder %s35, 1
          %s1505 = scalar_select %p1504, %s35, 1
          %s1506 = smul.addr %s1505, 8
          %s1507 = smul.addr %s1506, 4
          %s1508 = scalar_lea.vmem %s12, %s1507
        $region104: #{_lambda_.3} parent=91 // pred_fallthru
          _
      $region92: #{_lambda_.3} parent=5 // pred_fallthru
        _
    $region6: #{_lambda_.3} parent=1 // loop_footer
      %s33 = sadd.s32 1, %s29
    $region7: #{_lambda_.3} parent=1 // loop_footer_branch
      %28 = sbr.rel target = $region3
    $region8: #{_lambda_.3} parent=1 // loop_exit
      _
    %1509 = vsyncpa [#allocation3], 1
    %s1510 = scalar_lea.sflag [#allocation3], 1
    %1511 = vsyncpa %s1510, 1
    %1512 = vsyncpa [#allocation6], 1
    %s1513 = scalar_lea.sflag [#allocation6], 1
    %1514 = vsyncpa %s1513, 1
    %1515 = vsyncpa [#allocation9], 1
    %1516 = vsyncpa [#allocation4], 1
    %s1517 = scalar_lea.sflag [#allocation4], 1
    %1518 = vsyncpa %s1517, 1

// kernel: _lambda_.5
$region0: #{_lambda_.5}
  #allocation0 [shape = 'u32[]', space=smem, size = 0x4, offset = 0x4, fixed_abs, tag = 'smem constant byte address 0x4 - core index']
  #allocation1 [shape = 'u32[72,128]{1,0:T(1,128)}', space=vmem, size = 0x9000, scoped, tag = 'internal scratch']
  %s0 = inlined_call_operand.vmem [shape: f32[2,64,32], index: 0, kind: input, shape index: {}]
  %s1 = inlined_call_operand.vmem [shape: f32[2,16,32], index: 1, kind: input, shape index: {}]
  %s2 = inlined_call_operand.hbm [shape: bf16[9,32,32], index: 2, kind: input, shape index: {}]
  %s3 = inlined_call_operand.vmem [shape: f32[1,32], index: 3, kind: input, shape index: {}]
  %s4 = inlined_call_operand.hbm [shape: f32[2,64,32], index: 4, kind: output, shape index: {}]
  %s5 = sld [smem:[#allocation0]]
  $region53: #{_lambda_.5} parent=0
    _
  %s7 = ssub.s32 1, %s5
  %s8 = scalar_select 0, %s7, %s5
  $region1: #{_lambda_.5} parent=0
    #allocation2 [shape = 'u8[73728]{0}', space=vmem, size = 0x12000, scoped, tag = 'input window, operand 2, single buffered']
    #allocation3 [shape = 's32[2]{0}', space=sflag, size = 0x8, scoped, tag = 'scoped memory for _lambda_.5']
    #allocation4 [shape = 's32[2]{0}', space=sflag, size = 0x8, scoped, tag = 'scoped memory for _lambda_.5']
    #allocation5 [shape = 'u8[65536]{0}', space=vmem, size = 0x10000, scoped, tag = 'output window, operand 0']
    %9 = vsyncpa [#allocation3], 0
    %10 = vsyncpa [#allocation4], 0
    %s11 = scalar_lea.sflag [#allocation4], 1
    %12 = vsyncpa %s11, 0
    loop: start=0, step=1, limit=4
    $region2: #{_lambda_.5} parent=1 // loop_pre_header
      _
    $region3: #{_lambda_.5} parent=1 // loop_header
      %s14 = sphi 0, %s18
      %p15 = scmp.ge.s32.totalorder %s14, 4
      %s24 = sphi 0, %s26
      %s27 = sphi 0, %s24
      %s28 = sphi 0, %s27
      %s44 = sphi 0, %s28
      %s50 = sphi 0, %s52
      %s53 = sphi 0, %s50
      %s54 = sphi 0, %s53
      %s70 = sphi 0, %s54
      %s74 = sphi 0, %s74
      %s76 = sphi 0, %s74
      %s77 = sphi 0, %s76
      %s91 = sphi 0, %s77
      %s95 = sphi 0, %s95
      %s97 = sphi 0, %s95
      %s98 = sphi 0, %s97
      %s112 = sphi 0, %s98
      %s118 = sphi 0, %s120
      %s121 = sphi 0, %s118
      %s122 = sphi 0, %s121
      %s138 = sphi 0, %s122
    $region4: #{_lambda_.5} parent=1 // loop_header_branch
      %17 = sbr.rel (%p15) target = $region8
    $region5: #{_lambda_.5} parent=1 // loop_body
      %s19 = ssub.s32 %s14, 1
      %s20 = ssub.s32 %s14, 2
      %s21 = sadd.s32 %s14, 1
      %s22 = ssub.s32 %s14, %s21
      %p23 = scmp.eq.s32.totalorder %s22, 0
      %s25 = sadd.s32 %s24, 1
      %s26 = scalar_select %p23, %s24, %s25
      %p29 = pneg %p23
      %p30 = scmp.eq.s32.totalorder %s14, 1
      %p31 = por %p29, %p30
      %p32 = scmp.ne.s32.totalorder %s24, %s27
      %p33 = scmp.eq.s32.totalorder %s14, 0
      %p34 = por %p32, %p33
      %p35 = scmp.ne.s32.totalorder %s24, %s27
      %p36 = scmp.eq.s32.totalorder %s19, 1
      %p37 = por %p35, %p36
      %p38 = scmp.ne.s32.totalorder %s27, %s28
      %p39 = scmp.eq.s32.totalorder %s19, 0
      %p40 = por %p38, %p39
      %p41 = scmp.ne.s32.totalorder %s27, %s28
      %p42 = scmp.eq.s32.totalorder %s20, 1
      %p43 = por %p41, %p42
      %p45 = scmp.ne.s32.totalorder %s28, %s44
      %p46 = scmp.eq.s32.totalorder %s20, 0
      %p47 = por %p45, %p46
      %s48 = ssub.s32 %s14, %s21
      %p49 = scmp.eq.s32.totalorder %s48, 0
      %s51 = sadd.s32 %s50, 1
      %s52 = scalar_select %p49, %s50, %s51
      %p55 = pneg %p49
      %p56 = scmp.eq.s32.totalorder %s14, 1
      %p57 = por %p55, %p56
      %p58 = scmp.ne.s32.totalorder %s50, %s53
      %p59 = scmp.eq.s32.totalorder %s14, 0
      %p60 = por %p58, %p59
      %p61 = scmp.ne.s32.totalorder %s50, %s53
      %p62 = scmp.eq.s32.totalorder %s19, 1
      %p63 = por %p61, %p62
      %p64 = scmp.ne.s32.totalorder %s53, %s54
      %p65 = scmp.eq.s32.totalorder %s19, 0
      %p66 = por %p64, %p65
      %p67 = scmp.ne.s32.totalorder %s53, %s54
      %p68 = scmp.eq.s32.totalorder %s20, 1
      %p69 = por %p67, %p68
      %p71 = scmp.ne.s32.totalorder %s54, %s70
      %p72 = scmp.eq.s32.totalorder %s20, 0
      %p73 = por %p71, %p72
      %s75 = sadd.s32 %s74, 1
      %p78 = scmp.eq.s32.totalorder %s14, 1
      %p79 = scmp.ne.s32.totalorder %s74, %s76
      %p80 = scmp.eq.s32.totalorder %s14, 0
      %p81 = por %p79, %p80
      %p82 = scmp.ne.s32.totalorder %s74, %s76
      %p83 = scmp.eq.s32.totalorder %s19, 1
      %p84 = por %p82, %p83
      %p85 = scmp.ne.s32.totalorder %s76, %s77
      %p86 = scmp.eq.s32.totalorder %s19, 0
      %p87 = por %p85, %p86
      %p88 = scmp.ne.s32.totalorder %s76, %s77
      %p89 = scmp.eq.s32.totalorder %s20, 1
      %p90 = por %p88, %p89
      %p92 = scmp.ne.s32.totalorder %s77, %s91
      %p93 = scmp.eq.s32.totalorder %s20, 0
      %p94 = por %p92, %p93
      %s96 = sadd.s32 %s95, 1
      %p99 = scmp.eq.s32.totalorder %s14, 1
      %p100 = scmp.ne.s32.totalorder %s95, %s97
      %p101 = scmp.eq.s32.totalorder %s14, 0
      %p102 = por %p100, %p101
      %p103 = scmp.ne.s32.totalorder %s95, %s97
      %p104 = scmp.eq.s32.totalorder %s19, 1
      %p105 = por %p103, %p104
      %p106 = scmp.ne.s32.totalorder %s97, %s98
      %p107 = scmp.eq.s32.totalorder %s19, 0
      %p108 = por %p106, %p107
      %p109 = scmp.ne.s32.totalorder %s97, %s98
      %p110 = scmp.eq.s32.totalorder %s20, 1
      %p111 = por %p109, %p110
      %p113 = scmp.ne.s32.totalorder %s98, %s112
      %p114 = scmp.eq.s32.totalorder %s20, 0
      %p115 = por %p113, %p114
      %s116 = ssub.s32 %s14, %s21
      %p117 = scmp.eq.s32.totalorder %s116, 0
      %s119 = sadd.s32 %s118, 1
      %s120 = scalar_select %p117, %s118, %s119
      %p123 = pneg %p117
      %p124 = scmp.eq.s32.totalorder %s14, 1
      %p125 = por %p123, %p124
      %p126 = scmp.ne.s32.totalorder %s118, %s121
      %p127 = scmp.eq.s32.totalorder %s14, 0
      %p128 = por %p126, %p127
      %p129 = scmp.ne.s32.totalorder %s118, %s121
      %p130 = scmp.eq.s32.totalorder %s19, 1
      %p131 = por %p129, %p130
      %p132 = scmp.ne.s32.totalorder %s121, %s122
      %p133 = scmp.eq.s32.totalorder %s19, 0
      %p134 = por %p132, %p133
      %p135 = scmp.ne.s32.totalorder %s121, %s122
      %p136 = scmp.eq.s32.totalorder %s20, 1
      %p137 = por %p135, %p136
      %p139 = scmp.ne.s32.totalorder %s122, %s138
      %p140 = scmp.eq.s32.totalorder %s20, 0
      %p141 = por %p139, %p140
      %p142 = scmp.le.s32.totalorder 1, %s14
      %p143 = scmp.lt.s32.totalorder %s14, 3
      %p144 = pnand %p142, %p143
      %p145 = pneg %p144
      // Predicated region
      $region9: #{_lambda_.5} parent=5 // pred_check
        _
      $region10: #{_lambda_.5} parent=5 // pred_check_branch
        %147 = sbr.rel (%p144) target = $region12
      $region11: #{_lambda_.5} parent=5 // pred_region
        %s148 = ssub.s32 %s14, 1
        // Predicated region
        $region13: #{_lambda_.5} parent=11 // pred_check
          %p149 = pneg %p87
        $region14: #{_lambda_.5} parent=11 // pred_check_branch
          %151 = sbr.rel (%p149) target = $region16
        $region15: #{_lambda_.5} parent=11 // pred_region
          %153 = vsyncadd [#allocation3], 0
          %s154 = sshll.u32 %s2, 4
          %s155 = int_to_ptr.hbm [resolvable:$true] %s154
          %s156 = sshll.u32 [#allocation2], 4
          %s157 = int_to_ptr.vmem [resolvable:$true] %s156
          %162 = dma.hbm_to_vmem [thread:$0]  %s155, 2304, %s157, [#allocation3], 64, 64, 4
        $region16: #{_lambda_.5} parent=11 // pred_fallthru
          _
        // Predicated region
        $region17: #{_lambda_.5} parent=11 // pred_check
          %p163 = pneg %p108
        $region18: #{_lambda_.5} parent=11 // pred_check_branch
          %165 = sbr.rel (%p163) target = $region20
        $region19: #{_lambda_.5} parent=11 // pred_region
          _
        $region20: #{_lambda_.5} parent=11 // pred_fallthru
          _
      $region12: #{_lambda_.5} parent=5 // pred_fallthru
        _
      %p166 = scmp.lt.s32.totalorder %s14, 2
      // Predicated region
      $region21: #{_lambda_.5} parent=5 // pred_check
        %p167 = pneg %p166
      $region22: #{_lambda_.5} parent=5 // pred_check_branch
        %169 = sbr.rel (%p167) target = $region24
      $region23: #{_lambda_.5} parent=5 // pred_region
        // Predicated region
        $region25: #{_lambda_.5} parent=23 // pred_check
          %p170 = pneg %p34
        $region26: #{_lambda_.5} parent=23 // pred_check_branch
          %172 = sbr.rel (%p170) target = $region28
        $region27: #{_lambda_.5} parent=23 // pred_region
          %p173 = scmp.lt.s32.totalorder %s14, 1
          %s174 = scalar_select %p173, %s14, 1
          %s175 = smul.addr %s174, 8
          %s176 = smul.addr %s175, 8
          %s177 = scalar_lea.vmem %s0, %s176
        $region28: #{_lambda_.5} parent=23 // pred_fallthru
          _
        // Predicated region
        $region29: #{_lambda_.5} parent=23 // pred_check
          %p178 = pneg %p60
        $region30: #{_lambda_.5} parent=23 // pred_check_branch
          %180 = sbr.rel (%p178) target = $region32
        $region31: #{_lambda_.5} parent=23 // pred_region
          %p181 = scmp.lt.s32.totalorder %s14, 1
          %s182 = scalar_select %p181, %s14, 1
          %s183 = smul.addr %s182, 2
          %s184 = smul.addr %s183, 8
          %s185 = scalar_lea.vmem %s1, %s184
        $region32: #{_lambda_.5} parent=23 // pred_fallthru
          _
      $region24: #{_lambda_.5} parent=5 // pred_fallthru
        _
      %p186 = scmp.le.s32.totalorder 1, %s14
      %p187 = scmp.lt.s32.totalorder %s14, 3
      %p188 = pnand %p186, %p187
      %p189 = pneg %p188
      // Predicated region
      $region33: #{_lambda_.5} parent=5 // pred_check
        _
      $region34: #{_lambda_.5} parent=5 // pred_check_branch
        %191 = sbr.rel (%p188) target = $region36
      $region35: #{_lambda_.5} parent=5 // pred_region
        %s192 = ssub.s32 %s14, 1
        // Predicated region
        $region37: #{_lambda_.5} parent=35 // pred_check
          %p193 = pneg %p87
        $region38: #{_lambda_.5} parent=35 // pred_check_branch
          %195 = sbr.rel (%p193) target = $region40
        $region39: #{_lambda_.5} parent=35 // pred_region
          %197 = dma.done [#allocation3], 2304
        $region40: #{_lambda_.5} parent=35 // pred_fallthru
          _
        %p198 = scmp.lt.s32.totalorder %s19, 1
        %s199 = scalar_select %p198, %s19, 1
        %s200 = smul.addr %s199, 8
        %s201 = smul.addr %s200, 8
        %s202 = scalar_lea.vmem %s0, %s201
        %p203 = pneg %p40
        %p204 = pneg %p37
        %p205 = scmp.lt.s32.totalorder %s19, 1
        %s206 = scalar_select %p205, %s19, 1
        %s207 = smul.addr %s206, 2
        %s208 = smul.addr %s207, 8
        %s209 = scalar_lea.vmem %s1, %s208
        %p210 = pneg %p66
        %p211 = pneg %p63
        %p212 = pneg %p87
        %p213 = pneg %p84
        %p214 = pneg %p108
        %p215 = pneg %p105
        %p216 = pneg %p134
        %p217 = pneg %p131
        %s218 = sand.u32 %s121, 1
        %s219 = scalar_lea.sflag [#allocation4], %s218
        %s220 = sand.u32 %s121, 1
        %s221 = smul.addr %s220, 64
        %s222 = scalar_lea.vmem [#allocation5], %s221
        %p223 = scmp.lt.s32.totalorder %s19, 1
        %s224 = scalar_select %p223, %s19, 1
        %s225 = smul.addr %s224, 8
        %s226 = smul.addr %s225, 8
        %s227 = scalar_lea.vmem %s0, %s226
        %p228 = scmp.lt.s32.totalorder %s19, 1
        %s229 = scalar_select %p228, %s19, 1
        %s230 = smul.addr %s229, 2
        %s231 = smul.addr %s230, 8
        %s232 = scalar_lea.vmem %s1, %s231
        %v234 = vld [vmem:[%s232] sm:$0xf]
        %v236 = vrot.slane %v234, 7
        %v238 = vrot.slane %v234, 6
        %v240 = vrot.slane %v234, 5
        %v242 = vrot.slane %v234, 4
        %vm244 = vcmask 1040384
        %v245 = vsel %vm244, %v234, %v236
        %vm246 = vcmask 1041408
        %v247 = vsel %vm246, %v245, %v236
        %vm248 = vcmask 1042432
        %v249 = vsel %vm248, %v247, %v238
        %vm250 = vcmask 1043456
        %v251 = vsel %vm250, %v249, %v238
        %vm252 = vcmask 1044480
        %v253 = vsel %vm252, %v251, %v240
        %vm254 = vcmask 1045504
        %v255 = vsel %vm254, %v253, %v240
        %vm256 = vcmask 1046528
        %v257 = vsel %vm256, %v255, %v242
        %v258 = vld [vmem:[%s232 + $0x4] sm:$0xf]
        %v260 = vrot.slane %v258, 7
        %v262 = vrot.slane %v258, 6
        %v264 = vrot.slane %v258, 5
        %v266 = vrot.slane %v258, 4
        %v268 = vsel %vm244, %v258, %v260
        %v269 = vsel %vm246, %v268, %v260
        %v270 = vsel %vm248, %v269, %v262
        %v271 = vsel %vm250, %v270, %v262
        %v272 = vsel %vm252, %v271, %v264
        %v273 = vsel %vm254, %v272, %v264
        %v274 = vsel %vm256, %v273, %v266
        %v275 = vld [vmem:[%s232 + $0x8] sm:$0xf]
        %v277 = vrot.slane %v275, 7
        %v279 = vrot.slane %v275, 6
        %v281 = vrot.slane %v275, 5
        %v283 = vrot.slane %v275, 4
        %v285 = vsel %vm244, %v275, %v277
        %v286 = vsel %vm246, %v285, %v277
        %v287 = vsel %vm248, %v286, %v279
        %v288 = vsel %vm250, %v287, %v279
        %v289 = vsel %vm252, %v288, %v281
        %v290 = vsel %vm254, %v289, %v281
        %v291 = vsel %vm256, %v290, %v283
        %v292 = vld [vmem:[%s232 + $0xc] sm:$0xf]
        %v294 = vrot.slane %v292, 7
        %v296 = vrot.slane %v292, 6
        %v298 = vrot.slane %v292, 5
        %v300 = vrot.slane %v292, 4
        %v302 = vsel %vm244, %v292, %v294
        %v303 = vsel %vm246, %v302, %v294
        %v304 = vsel %vm248, %v303, %v296
        %v305 = vsel %vm250, %v304, %v296
        %v306 = vsel %vm252, %v305, %v298
        %v307 = vsel %vm254, %v306, %v298
        %v308 = vsel %vm256, %v307, %v300
        %v309 = vld [vmem:[%s227] sm:$0xff]
        %v310 = vadd.f32 %v309, %v257
        %v312 = vrot.slane %v310, 1
        %v314 = vrot.slane %v310, 7
        %v316 = vrot.slane %v310, 5
        %v318 = vsel %vm244, %v312, %v314
        %v319 = vsel %vm244, %v314, %v316
        %v320 = vld [vmem:[%s227 + $0x8] sm:$0xff]
        %v321 = vadd.f32 %v320, %v257
        %v323 = vrot.slane %v321, 1
        %v325 = vrot.slane %v321, 7
        %v327 = vrot.slane %v321, 5
        %v329 = vsel %vm244, %v323, %v325
        %v330 = vsel %vm244, %v325, %v327
        %v331 = vld [vmem:[%s227 + $0x10] sm:$0xff]
        %v332 = vadd.f32 %v331, %v274
        %v334 = vrot.slane %v332, 1
        %v336 = vrot.slane %v332, 7
        %v338 = vrot.slane %v332, 5
        %v340 = vsel %vm244, %v334, %v336
        %v341 = vsel %vm244, %v336, %v338
        %v342 = vld [vmem:[%s227 + $0x18] sm:$0xff]
        %v343 = vadd.f32 %v342, %v274
        %v345 = vrot.slane %v343, 1
        %v347 = vrot.slane %v343, 7
        %v349 = vrot.slane %v343, 5
        %v351 = vsel %vm244, %v345, %v347
        %v352 = vsel %vm244, %v347, %v349
        %v353 = vld [vmem:[%s227 + $0x20] sm:$0xff]
        %v354 = vadd.f32 %v353, %v291
        %v356 = vrot.slane %v354, 1
        %v358 = vrot.slane %v354, 7
        %v360 = vrot.slane %v354, 5
        %v362 = vsel %vm244, %v356, %v358
        %v363 = vsel %vm244, %v358, %v360
        %v364 = vld [vmem:[%s227 + $0x28] sm:$0xff]
        %v365 = vadd.f32 %v364, %v291
        %v367 = vrot.slane %v365, 1
        %v369 = vrot.slane %v365, 7
        %v371 = vrot.slane %v365, 5
        %v373 = vsel %vm244, %v367, %v369
        %v374 = vsel %vm244, %v369, %v371
        %v375 = vld [vmem:[%s227 + $0x30] sm:$0xff]
        %v376 = vadd.f32 %v375, %v308
        %v378 = vrot.slane %v376, 1
        %v380 = vrot.slane %v376, 7
        %v382 = vrot.slane %v376, 5
        %v384 = vsel %vm244, %v378, %v380
        %v385 = vsel %vm244, %v380, %v382
        %v386 = vld [vmem:[%s227 + $0x38] sm:$0xff]
        %v387 = vadd.f32 %v386, %v308
        %v389 = vrot.slane %v387, 1
        %v391 = vrot.slane %v387, 7
        %v393 = vrot.slane %v387, 5
        %v395 = vsel %vm244, %v389, %v391
        %v396 = vsel %vm244, %v391, %v393
        %v399 = vrot.slane %v318, 6
        %v400 = vrot.slane %v319, 6
        %v401 = vsel %vm246, %v399, %v400
        %v406 = vrot.slane %v329, 4
        %v407 = vrot.slane %v330, 4
        %v408 = vsel %vm250, %v406, %v407
        %v413 = vrot.slane %v340, 2
        %v414 = vrot.slane %v341, 2
        %v415 = vsel %vm254, %v413, %v414
        %v420 = vrot.slane %v362, 6
        %v421 = vrot.slane %v363, 6
        %v422 = vsel %vm246, %v420, %v421
        %v427 = vrot.slane %v373, 4
        %v428 = vrot.slane %v374, 4
        %v429 = vsel %vm250, %v427, %v428
        %v434 = vrot.slane %v384, 2
        %v435 = vrot.slane %v385, 2
        %v436 = vsel %vm254, %v434, %v435
        %v439 = vrot.slane %v384, 6
        %v440 = vrot.slane %v385, 6
        %v441 = vsel %vm246, %v439, %v440
        %v444 = vrot.slane %v384, 4
        %v446 = vsel %vm246, %v330, %v399
        %v447 = vsel %vm250, %v401, %v406
        %v448 = vsel %vm254, %v408, %v413
        %v449 = vsel %vm246, %v352, %v420
        %v450 = vsel %vm250, %v422, %v427
        %v451 = vsel %vm254, %v429, %v434
        %v452 = vsel %vm246, %v396, %v439
        %v453 = vsel %vm250, %v441, %v444
        %v454 = vpack.c.bf16 %v329, %v329
        %v455 = vpack.c.bf16 %v446, %v446
        %v456 = vpack.c.bf16 %v447, %v447
        %v457 = vpack.c.bf16 %v448, %v448
        %v458 = vpack.c.bf16 %v415, %v415
        %v459 = vpack.c.bf16 %v351, %v351
        %v460 = vpack.c.bf16 %v449, %v449
        %v461 = vpack.c.bf16 %v450, %v450
        %v462 = vpack.c.bf16 %v451, %v451
        %v463 = vpack.c.bf16 %v436, %v436
        %v464 = vpack.c.bf16 %v395, %v395
        %v465 = vpack.c.bf16 %v452, %v452
        %v466 = vpack.c.bf16 %v453, %v453
        %v467 = vld [vmem:[%s3] sm:$0x1]
        %v469 = vperm.slane %v467, 0
        %v471 = vadd.f32 %v469, 0.0
        %v472 = vld [vmem:[#allocation2] sm:$0xf]
        %v473 = vld [vmem:[#allocation2 + $0x4] sm:$0xf]
        %v474 = vld [vmem:[#allocation2 + $0x8] sm:$0xf]
        %v475 = vld [vmem:[#allocation2 + $0xc] sm:$0xf]
        %v486 = vunpack.c.l.b16 %v454
        %v487 = vunpack.c.l.b16 %v455
        %v488 = vunpack.c.l.b16 %v456
        %v489 = vunpack.c.l.b16 %v457
        %v490 = vunpack.c.l.b16 %v458
        %v491 = vunpack.c.l.b16 %v459
        %v492 = vunpack.c.l.b16 %v460
        %v493 = vunpack.c.l.b16 %v461
        %v494 = vunpack.c.l.b16 %v462
        %v495 = vunpack.c.l.b16 %v463
        %v496 = vpack.c.b16 %v487, %v486
        %v497 = vpack.c.b16 %v489, %v488
        %v498 = vpack.c.b16 %v491, %v490
        %v499 = vpack.c.b16 %v493, %v492
        %v500 = vpack.c.b16 %v495, %v494
        %v505 = vunpack.c.l.b16 %v472
        %v506 = vunpack.c.l.b16 %v473
        %v507 = vunpack.c.l.b16 %v474
        %v508 = vunpack.c.l.b16 %v475
        %v509 = vpack.c.b16 %v506, %v505
        %v510 = vpack.c.b16 %v508, %v507
        %vm513 = vcmask 261120
        %v515 = vsel %vm513, %v496, 0
        %v518 = vsel %vm513, %v497, 0
        %v521 = vsel %vm513, %v498, 0
        %v524 = vsel %vm513, %v499, 0
        %v527 = vsel %vm513, %v500, 0
        %529 = vmatpush.bf16.msra.mxu0 0
        %530 = vmatpush.bf16.msra.mxu0 0
        %531 = vmatpush.bf16.msra.mxu0 0
        %532 = vmatpush.bf16.msra.mxu0 0
        %533 = vmatpush.bf16.msra.mxu0 0
        %534 = vmatpush.bf16.msra.mxu0 0
        %535 = vmatpush.bf16.msra.mxu0 %v510
        %536 = vmatpush.bf16.msra.mxu0 %v509
        %537 = vmatmul.bf16.gmra.mxu0 %v515
        %v538 = vpop.f32.mrf.mxu0
        %v539 = vadd.f32 0.0, %v538
        %v540 = vpop.f32.mrf.mxu0
        %v541 = vadd.f32 0.0, %v540
        %542 = vmatmul.bf16.gmra.mxu0 %v518
        %v543 = vpop.f32.mrf.mxu0
        %v544 = vadd.f32 0.0, %v543
        %v545 = vpop.f32.mrf.mxu0
        %v546 = vadd.f32 0.0, %v545
        %547 = vmatmul.bf16.gmra.mxu0 %v521
        %v548 = vpop.f32.mrf.mxu0
        %v549 = vadd.f32 0.0, %v548
        %v550 = vpop.f32.mrf.mxu0
        %v551 = vadd.f32 0.0, %v550
        %552 = vmatmul.bf16.gmra.mxu0 %v524
        %v553 = vpop.f32.mrf.mxu0
        %v554 = vadd.f32 0.0, %v553
        %v555 = vpop.f32.mrf.mxu0
        %v556 = vadd.f32 0.0, %v555
        %557 = vmatmul.bf16.gmra.mxu0 %v527
        %v558 = vpop.f32.mrf.mxu0
        %v559 = vadd.f32 0.0, %v558
        %v560 = vpop.f32.mrf.mxu0
        %v561 = vadd.f32 0.0, %v560
        %562 = vdwg.mxu0
        %v563 = vadd.f32 %v471, %v539
        %v564 = vadd.f32 %v471, %v541
        %v565 = vadd.f32 %v471, %v544
        %v566 = vadd.f32 %v471, %v546
        %v567 = vadd.f32 %v471, %v549
        %v568 = vadd.f32 %v471, %v551
        %v569 = vadd.f32 %v471, %v554
        %v570 = vadd.f32 %v471, %v556
        %v571 = vadd.f32 %v471, %v559
        %v572 = vadd.f32 %v471, %v561
        %s573 = scalar_lea.vmem [#allocation2], 16
        %v574 = vld [vmem:[%s573] sm:$0xf]
        %v575 = vld [vmem:[%s573 + $0x4] sm:$0xf]
        %v576 = vld [vmem:[%s573 + $0x8] sm:$0xf]
        %v577 = vld [vmem:[%s573 + $0xc] sm:$0xf]
        %v579 = vunpack.c.l.b16 %v464
        %v580 = vpack.c.b16 %v579, %v579
        %vm581 = vsmask.f32 7424
        %v582 = vshrl.u32 %v496, 16
        %v584 = vshll.u32 %v496, 16
        %v586 = vrot.slane %v584, 1
        %v587 = vor.u32 %v582, %v586
        %v588 = vshll.u32 %v497, 16
        %v590 = vrot.slane %v588, 1
        %v591 = vsel %vm581, %v587, %v590
        %v592 = vshrl.u32 %v497, 16
        %v594 = vor.u32 %v592, %v590
        %v595 = vshll.u32 %v498, 16
        %v597 = vrot.slane %v595, 1
        %v598 = vsel %vm581, %v594, %v597
        %v599 = vshrl.u32 %v498, 16
        %v601 = vor.u32 %v599, %v597
        %v602 = vshll.u32 %v499, 16
        %v604 = vrot.slane %v602, 1
        %v605 = vsel %vm581, %v601, %v604
        %v606 = vshrl.u32 %v499, 16
        %v608 = vor.u32 %v606, %v604
        %v609 = vshll.u32 %v500, 16
        %v611 = vrot.slane %v609, 1
        %v612 = vsel %vm581, %v608, %v611
        %v613 = vshrl.u32 %v500, 16
        %v615 = vor.u32 %v613, %v611
        %v617 = vshll.u32 %v580, 16
        %v619 = vrot.slane %v617, 1
        %v620 = vsel %vm581, %v615, %v619
        %v625 = vunpack.c.l.b16 %v574
        %v626 = vunpack.c.l.b16 %v575
        %v627 = vunpack.c.l.b16 %v576
        %v628 = vunpack.c.l.b16 %v577
        %v629 = vpack.c.b16 %v626, %v625
        %v630 = vpack.c.b16 %v628, %v627
        %v634 = vsel %vm513, %v591, 0
        %v637 = vsel %vm513, %v598, 0
        %v640 = vsel %vm513, %v605, 0
        %v643 = vsel %vm513, %v612, 0
        %v646 = vsel %vm513, %v620, 0
        %648 = vmatpush.bf16.msra.mxu0 0
        %649 = vmatpush.bf16.msra.mxu0 0
        %650 = vmatpush.bf16.msra.mxu0 0
        %651 = vmatpush.bf16.msra.mxu0 0
        %652 = vmatpush.bf16.msra.mxu0 0
        %653 = vmatpush.bf16.msra.mxu0 0
        %654 = vmatpush.bf16.msra.mxu0 %v630
        %655 = vmatpush.bf16.msra.mxu0 %v629
        %656 = vmatmul.bf16.gmra.mxu0 %v634
        %v657 = vpop.f32.mrf.mxu0
        %v658 = vadd.f32 0.0, %v657
        %v659 = vpop.f32.mrf.mxu0
        %v660 = vadd.f32 0.0, %v659
        %661 = vmatmul.bf16.gmra.mxu0 %v637
        %v662 = vpop.f32.mrf.mxu0
        %v663 = vadd.f32 0.0, %v662
        %v664 = vpop.f32.mrf.mxu0
        %v665 = vadd.f32 0.0, %v664
        %666 = vmatmul.bf16.gmra.mxu0 %v640
        %v667 = vpop.f32.mrf.mxu0
        %v668 = vadd.f32 0.0, %v667
        %v669 = vpop.f32.mrf.mxu0
        %v670 = vadd.f32 0.0, %v669
        %671 = vmatmul.bf16.gmra.mxu0 %v643
        %v672 = vpop.f32.mrf.mxu0
        %v673 = vadd.f32 0.0, %v672
        %v674 = vpop.f32.mrf.mxu0
        %v675 = vadd.f32 0.0, %v674
        %676 = vmatmul.bf16.gmra.mxu0 %v646
        %v677 = vpop.f32.mrf.mxu0
        %v678 = vadd.f32 0.0, %v677
        %v679 = vpop.f32.mrf.mxu0
        %v680 = vadd.f32 0.0, %v679
        %681 = vdwg.mxu0
        %v682 = vadd.f32 %v563, %v658
        %v683 = vadd.f32 %v564, %v660
        %v684 = vadd.f32 %v565, %v663
        %v685 = vadd.f32 %v566, %v665
        %v686 = vadd.f32 %v567, %v668
        %v687 = vadd.f32 %v568, %v670
        %v688 = vadd.f32 %v569, %v673
        %v689 = vadd.f32 %v570, %v675
        %v690 = vadd.f32 %v571, %v678
        %v691 = vadd.f32 %v572, %v680
        %s692 = scalar_lea.vmem [#allocation2], 32
        %v693 = vld [vmem:[%s692] sm:$0xf]
        %v694 = vld [vmem:[%s692 + $0x4] sm:$0xf]
        %v695 = vld [vmem:[%s692 + $0x8] sm:$0xf]
        %v696 = vld [vmem:[%s692 + $0xc] sm:$0xf]
        %vm697 = vcmask 1046528
        %v698 = vrot.slane %v496, 1
        %v699 = vrot.slane %v497, 1
        %v700 = vsel %vm697, %v698, %v699
        %v701 = vrot.slane %v498, 1
        %v702 = vsel %vm697, %v699, %v701
        %v703 = vrot.slane %v499, 1
        %v704 = vsel %vm697, %v701, %v703
        %v705 = vrot.slane %v500, 1
        %v706 = vsel %vm697, %v703, %v705
        %v707 = vrot.slane %v580, 1
        %v708 = vsel %vm697, %v705, %v707
        %v713 = vunpack.c.l.b16 %v693
        %v714 = vunpack.c.l.b16 %v694
        %v715 = vunpack.c.l.b16 %v695
        %v716 = vunpack.c.l.b16 %v696
        %v717 = vpack.c.b16 %v714, %v713
        %v718 = vpack.c.b16 %v716, %v715
        %v722 = vsel %vm513, %v700, 0
        %v725 = vsel %vm513, %v702, 0
        %v728 = vsel %vm513, %v704, 0
        %v731 = vsel %vm513, %v706, 0
        %v734 = vsel %vm513, %v708, 0
        %736 = vmatpush.bf16.msra.mxu0 0
        %737 = vmatpush.bf16.msra.mxu0 0
        %738 = vmatpush.bf16.msra.mxu0 0
        %739 = vmatpush.bf16.msra.mxu0 0
        %740 = vmatpush.bf16.msra.mxu0 0
        %741 = vmatpush.bf16.msra.mxu0 0
        %742 = vmatpush.bf16.msra.mxu0 %v718
        %743 = vmatpush.bf16.msra.mxu0 %v717
        %744 = vmatmul.bf16.gmra.mxu0 %v722
        %v745 = vpop.f32.mrf.mxu0
        %v746 = vadd.f32 0.0, %v745
        %v747 = vpop.f32.mrf.mxu0
        %v748 = vadd.f32 0.0, %v747
        %749 = vmatmul.bf16.gmra.mxu0 %v725
        %v750 = vpop.f32.mrf.mxu0
        %v751 = vadd.f32 0.0, %v750
        %v752 = vpop.f32.mrf.mxu0
        %v753 = vadd.f32 0.0, %v752
        %754 = vmatmul.bf16.gmra.mxu0 %v728
        %v755 = vpop.f32.mrf.mxu0
        %v756 = vadd.f32 0.0, %v755
        %v757 = vpop.f32.mrf.mxu0
        %v758 = vadd.f32 0.0, %v757
        %759 = vmatmul.bf16.gmra.mxu0 %v731
        %v760 = vpop.f32.mrf.mxu0
        %v761 = vadd.f32 0.0, %v760
        %v762 = vpop.f32.mrf.mxu0
        %v763 = vadd.f32 0.0, %v762
        %764 = vmatmul.bf16.gmra.mxu0 %v734
        %v765 = vpop.f32.mrf.mxu0
        %v766 = vadd.f32 0.0, %v765
        %v767 = vpop.f32.mrf.mxu0
        %v768 = vadd.f32 0.0, %v767
        %769 = vdwg.mxu0
        %v770 = vadd.f32 %v682, %v746
        %v771 = vadd.f32 %v683, %v748
        %v772 = vadd.f32 %v684, %v751
        %v773 = vadd.f32 %v685, %v753
        %v774 = vadd.f32 %v686, %v756
        %v775 = vadd.f32 %v687, %v758
        %v776 = vadd.f32 %v688, %v761
        %v777 = vadd.f32 %v689, %v763
        %v778 = vadd.f32 %v690, %v766
        %v779 = vadd.f32 %v691, %v768
        %s780 = scalar_lea.vmem [#allocation2], 48
        %v781 = vld [vmem:[%s780] sm:$0xf]
        %v782 = vld [vmem:[%s780 + $0x4] sm:$0xf]
        %v783 = vld [vmem:[%s780 + $0x8] sm:$0xf]
        %v784 = vld [vmem:[%s780 + $0xc] sm:$0xf]
        %v786 = vunpack.c.l.b16 %v465
        %v787 = vpack.c.b16 %v488, %v487
        %v788 = vpack.c.b16 %v490, %v489
        %v789 = vpack.c.b16 %v492, %v491
        %v790 = vpack.c.b16 %v494, %v493
        %v791 = vpack.c.b16 %v579, %v495
        %v792 = vpack.c.b16 %v786, %v786
        %v793 = vrot.slane %v787, 1
        %v794 = vrot.slane %v788, 1
        %v795 = vsel %vm697, %v793, %v794
        %v796 = vrot.slane %v789, 1
        %v797 = vsel %vm697, %v794, %v796
        %v798 = vrot.slane %v790, 1
        %v799 = vsel %vm697, %v796, %v798
        %v800 = vrot.slane %v791, 1
        %v801 = vsel %vm697, %v798, %v800
        %v802 = vrot.slane %v792, 1
        %v803 = vsel %vm697, %v800, %v802
        %v808 = vunpack.c.l.b16 %v781
        %v809 = vunpack.c.l.b16 %v782
        %v810 = vunpack.c.l.b16 %v783
        %v811 = vunpack.c.l.b16 %v784
        %v812 = vpack.c.b16 %v809, %v808
        %v813 = vpack.c.b16 %v811, %v810
        %v817 = vsel %vm513, %v795, 0
        %v820 = vsel %vm513, %v797, 0
        %v823 = vsel %vm513, %v799, 0
        %v826 = vsel %vm513, %v801, 0
        %v829 = vsel %vm513, %v803, 0
        %831 = vmatpush.bf16.msra.mxu0 0
        %832 = vmatpush.bf16.msra.mxu0 0
        %833 = vmatpush.bf16.msra.mxu0 0
        %834 = vmatpush.bf16.msra.mxu0 0
        %835 = vmatpush.bf16.msra.mxu0 0
        %836 = vmatpush.bf16.msra.mxu0 0
        %837 = vmatpush.bf16.msra.mxu0 %v813
        %838 = vmatpush.bf16.msra.mxu0 %v812
        %839 = vmatmul.bf16.gmra.mxu0 %v817
        %v840 = vpop.f32.mrf.mxu0
        %v841 = vadd.f32 0.0, %v840
        %v842 = vpop.f32.mrf.mxu0
        %v843 = vadd.f32 0.0, %v842
        %844 = vmatmul.bf16.gmra.mxu0 %v820
        %v845 = vpop.f32.mrf.mxu0
        %v846 = vadd.f32 0.0, %v845
        %v847 = vpop.f32.mrf.mxu0
        %v848 = vadd.f32 0.0, %v847
        %849 = vmatmul.bf16.gmra.mxu0 %v823
        %v850 = vpop.f32.mrf.mxu0
        %v851 = vadd.f32 0.0, %v850
        %v852 = vpop.f32.mrf.mxu0
        %v853 = vadd.f32 0.0, %v852
        %854 = vmatmul.bf16.gmra.mxu0 %v826
        %v855 = vpop.f32.mrf.mxu0
        %v856 = vadd.f32 0.0, %v855
        %v857 = vpop.f32.mrf.mxu0
        %v858 = vadd.f32 0.0, %v857
        %859 = vmatmul.bf16.gmra.mxu0 %v829
        %v860 = vpop.f32.mrf.mxu0
        %v861 = vadd.f32 0.0, %v860
        %v862 = vpop.f32.mrf.mxu0
        %v863 = vadd.f32 0.0, %v862
        %864 = vdwg.mxu0
        %v865 = vadd.f32 %v770, %v841
        %v866 = vadd.f32 %v771, %v843
        %v867 = vadd.f32 %v772, %v846
        %v868 = vadd.f32 %v773, %v848
        %v869 = vadd.f32 %v774, %v851
        %v870 = vadd.f32 %v775, %v853
        %v871 = vadd.f32 %v776, %v856
        %v872 = vadd.f32 %v777, %v858
        %v873 = vadd.f32 %v778, %v861
        %v874 = vadd.f32 %v779, %v863
        %s875 = scalar_lea.vmem [#allocation2], 64
        %v876 = vld [vmem:[%s875] sm:$0xf]
        %v877 = vld [vmem:[%s875 + $0x4] sm:$0xf]
        %v878 = vld [vmem:[%s875 + $0x8] sm:$0xf]
        %v879 = vld [vmem:[%s875 + $0xc] sm:$0xf]
        %vm880 = vsmask.f32 6400
        %v882 = vshrl.u32 %v787, 16
        %v884 = vrot.slane %v882, 1
        %v885 = vshll.u32 %v787, 16
        %v887 = vrot.slane %v885, 2
        %v888 = vor.u32 %v884, %v887
        %v890 = vshrl.u32 %v788, 16
        %v892 = vrot.slane %v890, 1
        %v893 = vshll.u32 %v788, 16
        %v895 = vrot.slane %v893, 2
        %v896 = vor.u32 %v892, %v895
        %v897 = vsel %vm880, %v888, %v896
        %v899 = vshrl.u32 %v789, 16
        %v901 = vrot.slane %v899, 1
        %v902 = vshll.u32 %v789, 16
        %v904 = vrot.slane %v902, 2
        %v905 = vor.u32 %v901, %v904
        %v906 = vsel %vm880, %v896, %v905
        %v908 = vshrl.u32 %v790, 16
        %v910 = vrot.slane %v908, 1
        %v911 = vshll.u32 %v790, 16
        %v913 = vrot.slane %v911, 2
        %v914 = vor.u32 %v910, %v913
        %v915 = vsel %vm880, %v905, %v914
        %v917 = vshrl.u32 %v791, 16
        %v919 = vrot.slane %v917, 1
        %v920 = vshll.u32 %v791, 16
        %v922 = vrot.slane %v920, 2
        %v923 = vor.u32 %v919, %v922
        %v924 = vsel %vm880, %v914, %v923
        %v926 = vshrl.u32 %v792, 16
        %v928 = vrot.slane %v926, 1
        %v929 = vshll.u32 %v792, 16
        %v931 = vrot.slane %v929, 2
        %v932 = vor.u32 %v928, %v931
        %v933 = vsel %vm880, %v923, %v932
        %v938 = vunpack.c.l.b16 %v876
        %v939 = vunpack.c.l.b16 %v877
        %v940 = vunpack.c.l.b16 %v878
        %v941 = vunpack.c.l.b16 %v879
        %v942 = vpack.c.b16 %v939, %v938
        %v943 = vpack.c.b16 %v941, %v940
        %v947 = vsel %vm513, %v897, 0
        %v950 = vsel %vm513, %v906, 0
        %v953 = vsel %vm513, %v915, 0
        %v956 = vsel %vm513, %v924, 0
        %v959 = vsel %vm513, %v933, 0
        %961 = vmatpush.bf16.msra.mxu0 0
        %962 = vmatpush.bf16.msra.mxu0 0
        %963 = vmatpush.bf16.msra.mxu0 0
        %964 = vmatpush.bf16.msra.mxu0 0
        %965 = vmatpush.bf16.msra.mxu0 0
        %966 = vmatpush.bf16.msra.mxu0 0
        %967 = vmatpush.bf16.msra.mxu0 %v943
        %968 = vmatpush.bf16.msra.mxu0 %v942
        %969 = vmatmul.bf16.gmra.mxu0 %v947
        %v970 = vpop.f32.mrf.mxu0
        %v971 = vadd.f32 0.0, %v970
        %v972 = vpop.f32.mrf.mxu0
        %v973 = vadd.f32 0.0, %v972
        %974 = vmatmul.bf16.gmra.mxu0 %v950
        %v975 = vpop.f32.mrf.mxu0
        %v976 = vadd.f32 0.0, %v975
        %v977 = vpop.f32.mrf.mxu0
        %v978 = vadd.f32 0.0, %v977
        %979 = vmatmul.bf16.gmra.mxu0 %v953
        %v980 = vpop.f32.mrf.mxu0
        %v981 = vadd.f32 0.0, %v980
        %v982 = vpop.f32.mrf.mxu0
        %v983 = vadd.f32 0.0, %v982
        %984 = vmatmul.bf16.gmra.mxu0 %v956
        %v985 = vpop.f32.mrf.mxu0
        %v986 = vadd.f32 0.0, %v985
        %v987 = vpop.f32.mrf.mxu0
        %v988 = vadd.f32 0.0, %v987
        %989 = vmatmul.bf16.gmra.mxu0 %v959
        %v990 = vpop.f32.mrf.mxu0
        %v991 = vadd.f32 0.0, %v990
        %v992 = vpop.f32.mrf.mxu0
        %v993 = vadd.f32 0.0, %v992
        %994 = vdwg.mxu0
        %v995 = vadd.f32 %v865, %v971
        %v996 = vadd.f32 %v866, %v973
        %v997 = vadd.f32 %v867, %v976
        %v998 = vadd.f32 %v868, %v978
        %v999 = vadd.f32 %v869, %v981
        %v1000 = vadd.f32 %v870, %v983
        %v1001 = vadd.f32 %v871, %v986
        %v1002 = vadd.f32 %v872, %v988
        %v1003 = vadd.f32 %v873, %v991
        %v1004 = vadd.f32 %v874, %v993
        %s1005 = scalar_lea.vmem [#allocation2], 80
        %v1006 = vld [vmem:[%s1005] sm:$0xf]
        %v1007 = vld [vmem:[%s1005 + $0x4] sm:$0xf]
        %v1008 = vld [vmem:[%s1005 + $0x8] sm:$0xf]
        %v1009 = vld [vmem:[%s1005 + $0xc] sm:$0xf]
        %vm1010 = vcmask 1045504
        %v1011 = vrot.slane %v787, 2
        %v1012 = vrot.slane %v788, 2
        %v1013 = vsel %vm1010, %v1011, %v1012
        %v1014 = vrot.slane %v789, 2
        %v1015 = vsel %vm1010, %v1012, %v1014
        %v1016 = vrot.slane %v790, 2
        %v1017 = vsel %vm1010, %v1014, %v1016
        %v1018 = vrot.slane %v791, 2
        %v1019 = vsel %vm1010, %v1016, %v1018
        %v1020 = vrot.slane %v792, 2
        %v1021 = vsel %vm1010, %v1018, %v1020
        %v1026 = vunpack.c.l.b16 %v1006
        %v1027 = vunpack.c.l.b16 %v1007
        %v1028 = vunpack.c.l.b16 %v1008
        %v1029 = vunpack.c.l.b16 %v1009
        %v1030 = vpack.c.b16 %v1027, %v1026
        %v1031 = vpack.c.b16 %v1029, %v1028
        %v1035 = vsel %vm513, %v1013, 0
        %v1038 = vsel %vm513, %v1015, 0
        %v1041 = vsel %vm513, %v1017, 0
        %v1044 = vsel %vm513, %v1019, 0
        %v1047 = vsel %vm513, %v1021, 0
        %1049 = vmatpush.bf16.msra.mxu0 0
        %1050 = vmatpush.bf16.msra.mxu0 0
        %1051 = vmatpush.bf16.msra.mxu0 0
        %1052 = vmatpush.bf16.msra.mxu0 0
        %1053 = vmatpush.bf16.msra.mxu0 0
        %1054 = vmatpush.bf16.msra.mxu0 0
        %1055 = vmatpush.bf16.msra.mxu0 %v1031
        %1056 = vmatpush.bf16.msra.mxu0 %v1030
        %1057 = vmatmul.bf16.gmra.mxu0 %v1035
        %v1058 = vpop.f32.mrf.mxu0
        %v1059 = vadd.f32 0.0, %v1058
        %v1060 = vpop.f32.mrf.mxu0
        %v1061 = vadd.f32 0.0, %v1060
        %1062 = vmatmul.bf16.gmra.mxu0 %v1038
        %v1063 = vpop.f32.mrf.mxu0
        %v1064 = vadd.f32 0.0, %v1063
        %v1065 = vpop.f32.mrf.mxu0
        %v1066 = vadd.f32 0.0, %v1065
        %1067 = vmatmul.bf16.gmra.mxu0 %v1041
        %v1068 = vpop.f32.mrf.mxu0
        %v1069 = vadd.f32 0.0, %v1068
        %v1070 = vpop.f32.mrf.mxu0
        %v1071 = vadd.f32 0.0, %v1070
        %1072 = vmatmul.bf16.gmra.mxu0 %v1044
        %v1073 = vpop.f32.mrf.mxu0
        %v1074 = vadd.f32 0.0, %v1073
        %v1075 = vpop.f32.mrf.mxu0
        %v1076 = vadd.f32 0.0, %v1075
        %1077 = vmatmul.bf16.gmra.mxu0 %v1047
        %v1078 = vpop.f32.mrf.mxu0
        %v1079 = vadd.f32 0.0, %v1078
        %v1080 = vpop.f32.mrf.mxu0
        %v1081 = vadd.f32 0.0, %v1080
        %1082 = vdwg.mxu0
        %v1083 = vadd.f32 %v995, %v1059
        %v1084 = vadd.f32 %v996, %v1061
        %v1085 = vadd.f32 %v997, %v1064
        %v1086 = vadd.f32 %v998, %v1066
        %v1087 = vadd.f32 %v999, %v1069
        %v1088 = vadd.f32 %v1000, %v1071
        %v1089 = vadd.f32 %v1001, %v1074
        %v1090 = vadd.f32 %v1002, %v1076
        %v1091 = vadd.f32 %v1003, %v1079
        %v1092 = vadd.f32 %v1004, %v1081
        %s1093 = scalar_lea.vmem [#allocation2], 96
        %v1094 = vld [vmem:[%s1093] sm:$0xf]
        %v1095 = vld [vmem:[%s1093 + $0x4] sm:$0xf]
        %v1096 = vld [vmem:[%s1093 + $0x8] sm:$0xf]
        %v1097 = vld [vmem:[%s1093 + $0xc] sm:$0xf]
        %v1099 = vunpack.c.l.b16 %v466
        %v1100 = vpack.c.b16 %v786, %v579
        %v1101 = vpack.c.b16 %v1099, %v1099
        %v1102 = vrot.slane %v497, 2
        %v1103 = vrot.slane %v498, 2
        %v1104 = vsel %vm1010, %v1102, %v1103
        %v1105 = vrot.slane %v499, 2
        %v1106 = vsel %vm1010, %v1103, %v1105
        %v1107 = vrot.slane %v500, 2
        %v1108 = vsel %vm1010, %v1105, %v1107
        %v1109 = vrot.slane %v1100, 2
        %v1110 = vsel %vm1010, %v1107, %v1109
        %v1111 = vrot.slane %v1101, 2
        %v1112 = vsel %vm1010, %v1109, %v1111
        %v1117 = vunpack.c.l.b16 %v1094
        %v1118 = vunpack.c.l.b16 %v1095
        %v1119 = vunpack.c.l.b16 %v1096
        %v1120 = vunpack.c.l.b16 %v1097
        %v1121 = vpack.c.b16 %v1118, %v1117
        %v1122 = vpack.c.b16 %v1120, %v1119
        %v1126 = vsel %vm513, %v1104, 0
        %v1129 = vsel %vm513, %v1106, 0
        %v1132 = vsel %vm513, %v1108, 0
        %v1135 = vsel %vm513, %v1110, 0
        %v1138 = vsel %vm513, %v1112, 0
        %1140 = vmatpush.bf16.msra.mxu0 0
        %1141 = vmatpush.bf16.msra.mxu0 0
        %1142 = vmatpush.bf16.msra.mxu0 0
        %1143 = vmatpush.bf16.msra.mxu0 0
        %1144 = vmatpush.bf16.msra.mxu0 0
        %1145 = vmatpush.bf16.msra.mxu0 0
        %1146 = vmatpush.bf16.msra.mxu0 %v1122
        %1147 = vmatpush.bf16.msra.mxu0 %v1121
        %1148 = vmatmul.bf16.gmra.mxu0 %v1126
        %v1149 = vpop.f32.mrf.mxu0
        %v1150 = vadd.f32 0.0, %v1149
        %v1151 = vpop.f32.mrf.mxu0
        %v1152 = vadd.f32 0.0, %v1151
        %1153 = vmatmul.bf16.gmra.mxu0 %v1129
        %v1154 = vpop.f32.mrf.mxu0
        %v1155 = vadd.f32 0.0, %v1154
        %v1156 = vpop.f32.mrf.mxu0
        %v1157 = vadd.f32 0.0, %v1156
        %1158 = vmatmul.bf16.gmra.mxu0 %v1132
        %v1159 = vpop.f32.mrf.mxu0
        %v1160 = vadd.f32 0.0, %v1159
        %v1161 = vpop.f32.mrf.mxu0
        %v1162 = vadd.f32 0.0, %v1161
        %1163 = vmatmul.bf16.gmra.mxu0 %v1135
        %v1164 = vpop.f32.mrf.mxu0
        %v1165 = vadd.f32 0.0, %v1164
        %v1166 = vpop.f32.mrf.mxu0
        %v1167 = vadd.f32 0.0, %v1166
        %1168 = vmatmul.bf16.gmra.mxu0 %v1138
        %v1169 = vpop.f32.mrf.mxu0
        %v1170 = vadd.f32 0.0, %v1169
        %v1171 = vpop.f32.mrf.mxu0
        %v1172 = vadd.f32 0.0, %v1171
        %1173 = vdwg.mxu0
        %v1174 = vadd.f32 %v1083, %v1150
        %v1175 = vadd.f32 %v1084, %v1152
        %v1176 = vadd.f32 %v1085, %v1155
        %v1177 = vadd.f32 %v1086, %v1157
        %v1178 = vadd.f32 %v1087, %v1160
        %v1179 = vadd.f32 %v1088, %v1162
        %v1180 = vadd.f32 %v1089, %v1165
        %v1181 = vadd.f32 %v1090, %v1167
        %v1182 = vadd.f32 %v1091, %v1170
        %v1183 = vadd.f32 %v1092, %v1172
        %s1184 = scalar_lea.vmem [#allocation2], 112
        %v1185 = vld [vmem:[%s1184] sm:$0xf]
        %v1186 = vld [vmem:[%s1184 + $0x4] sm:$0xf]
        %v1187 = vld [vmem:[%s1184 + $0x8] sm:$0xf]
        %v1188 = vld [vmem:[%s1184 + $0xc] sm:$0xf]
        %vm1189 = vsmask.f32 5376
        %v1190 = vrot.slane %v592, 2
        %v1191 = vrot.slane %v588, 3
        %v1192 = vor.u32 %v1190, %v1191
        %v1193 = vrot.slane %v599, 2
        %v1194 = vrot.slane %v595, 3
        %v1195 = vor.u32 %v1193, %v1194
        %v1196 = vsel %vm1189, %v1192, %v1195
        %v1197 = vrot.slane %v606, 2
        %v1198 = vrot.slane %v602, 3
        %v1199 = vor.u32 %v1197, %v1198
        %v1200 = vsel %vm1189, %v1195, %v1199
        %v1201 = vrot.slane %v613, 2
        %v1202 = vrot.slane %v609, 3
        %v1203 = vor.u32 %v1201, %v1202
        %v1204 = vsel %vm1189, %v1199, %v1203
        %v1206 = vshrl.u32 %v1100, 16
        %v1208 = vrot.slane %v1206, 2
        %v1209 = vshll.u32 %v1100, 16
        %v1211 = vrot.slane %v1209, 3
        %v1212 = vor.u32 %v1208, %v1211
        %v1213 = vsel %vm1189, %v1203, %v1212
        %v1215 = vshrl.u32 %v1101, 16
        %v1217 = vrot.slane %v1215, 2
        %v1218 = vshll.u32 %v1101, 16
        %v1220 = vrot.slane %v1218, 3
        %v1221 = vor.u32 %v1217, %v1220
        %v1222 = vsel %vm1189, %v1212, %v1221
        %v1227 = vunpack.c.l.b16 %v1185
        %v1228 = vunpack.c.l.b16 %v1186
        %v1229 = vunpack.c.l.b16 %v1187
        %v1230 = vunpack.c.l.b16 %v1188
        %v1231 = vpack.c.b16 %v1228, %v1227
        %v1232 = vpack.c.b16 %v1230, %v1229
        %v1236 = vsel %vm513, %v1196, 0
        %v1239 = vsel %vm513, %v1200, 0
        %v1242 = vsel %vm513, %v1204, 0
        %v1245 = vsel %vm513, %v1213, 0
        %v1248 = vsel %vm513, %v1222, 0
        %1250 = vmatpush.bf16.msra.mxu0 0
        %1251 = vmatpush.bf16.msra.mxu0 0
        %1252 = vmatpush.bf16.msra.mxu0 0
        %1253 = vmatpush.bf16.msra.mxu0 0
        %1254 = vmatpush.bf16.msra.mxu0 0
        %1255 = vmatpush.bf16.msra.mxu0 0
        %1256 = vmatpush.bf16.msra.mxu0 %v1232
        %1257 = vmatpush.bf16.msra.mxu0 %v1231
        %1258 = vmatmul.bf16.gmra.mxu0 %v1236
        %v1259 = vpop.f32.mrf.mxu0
        %v1260 = vadd.f32 0.0, %v1259
        %v1261 = vpop.f32.mrf.mxu0
        %v1262 = vadd.f32 0.0, %v1261
        %1263 = vmatmul.bf16.gmra.mxu0 %v1239
        %v1264 = vpop.f32.mrf.mxu0
        %v1265 = vadd.f32 0.0, %v1264
        %v1266 = vpop.f32.mrf.mxu0
        %v1267 = vadd.f32 0.0, %v1266
        %1268 = vmatmul.bf16.gmra.mxu0 %v1242
        %v1269 = vpop.f32.mrf.mxu0
        %v1270 = vadd.f32 0.0, %v1269
        %v1271 = vpop.f32.mrf.mxu0
        %v1272 = vadd.f32 0.0, %v1271
        %1273 = vmatmul.bf16.gmra.mxu0 %v1245
        %v1274 = vpop.f32.mrf.mxu0
        %v1275 = vadd.f32 0.0, %v1274
        %v1276 = vpop.f32.mrf.mxu0
        %v1277 = vadd.f32 0.0, %v1276
        %1278 = vmatmul.bf16.gmra.mxu0 %v1248
        %v1279 = vpop.f32.mrf.mxu0
        %v1280 = vadd.f32 0.0, %v1279
        %v1281 = vpop.f32.mrf.mxu0
        %v1282 = vadd.f32 0.0, %v1281
        %1283 = vdwg.mxu0
        %v1284 = vadd.f32 %v1174, %v1260
        %v1285 = vadd.f32 %v1175, %v1262
        %v1286 = vadd.f32 %v1176, %v1265
        %v1287 = vadd.f32 %v1177, %v1267
        %v1288 = vadd.f32 %v1178, %v1270
        %v1289 = vadd.f32 %v1179, %v1272
        %v1290 = vadd.f32 %v1180, %v1275
        %v1291 = vadd.f32 %v1181, %v1277
        %v1292 = vadd.f32 %v1182, %v1280
        %v1293 = vadd.f32 %v1183, %v1282
        %s1294 = scalar_lea.vmem [#allocation2], 128
        %v1295 = vld [vmem:[%s1294] sm:$0xf]
        %v1296 = vld [vmem:[%s1294 + $0x4] sm:$0xf]
        %v1297 = vld [vmem:[%s1294 + $0x8] sm:$0xf]
        %v1298 = vld [vmem:[%s1294 + $0xc] sm:$0xf]
        %vm1299 = vcmask 1044480
        %v1300 = vrot.slane %v497, 3
        %v1301 = vrot.slane %v498, 3
        %v1302 = vsel %vm1299, %v1300, %v1301
        %v1303 = vrot.slane %v499, 3
        %v1304 = vsel %vm1299, %v1301, %v1303
        %v1305 = vrot.slane %v500, 3
        %v1306 = vsel %vm1299, %v1303, %v1305
        %v1307 = vrot.slane %v1100, 3
        %v1308 = vsel %vm1299, %v1305, %v1307
        %v1309 = vrot.slane %v1101, 3
        %v1310 = vsel %vm1299, %v1307, %v1309
        %v1315 = vunpack.c.l.b16 %v1295
        %v1316 = vunpack.c.l.b16 %v1296
        %v1317 = vunpack.c.l.b16 %v1297
        %v1318 = vunpack.c.l.b16 %v1298
        %v1319 = vpack.c.b16 %v1316, %v1315
        %v1320 = vpack.c.b16 %v1318, %v1317
        %v1324 = vsel %vm513, %v1302, 0
        %v1327 = vsel %vm513, %v1304, 0
        %v1330 = vsel %vm513, %v1306, 0
        %v1333 = vsel %vm513, %v1308, 0
        %v1336 = vsel %vm513, %v1310, 0
        %1338 = vmatpush.bf16.msra.mxu0 0
        %1339 = vmatpush.bf16.msra.mxu0 0
        %1340 = vmatpush.bf16.msra.mxu0 0
        %1341 = vmatpush.bf16.msra.mxu0 0
        %1342 = vmatpush.bf16.msra.mxu0 0
        %1343 = vmatpush.bf16.msra.mxu0 0
        %1344 = vmatpush.bf16.msra.mxu0 %v1320
        %1345 = vmatpush.bf16.msra.mxu0 %v1319
        %1346 = vmatmul.bf16.gmra.mxu0 %v1324
        %v1347 = vpop.f32.mrf.mxu0
        %v1348 = vadd.f32 0.0, %v1347
        %v1349 = vpop.f32.mrf.mxu0
        %v1350 = vadd.f32 0.0, %v1349
        %1351 = vmatmul.bf16.gmra.mxu0 %v1327
        %v1352 = vpop.f32.mrf.mxu0
        %v1353 = vadd.f32 0.0, %v1352
        %v1354 = vpop.f32.mrf.mxu0
        %v1355 = vadd.f32 0.0, %v1354
        %1356 = vmatmul.bf16.gmra.mxu0 %v1330
        %v1357 = vpop.f32.mrf.mxu0
        %v1358 = vadd.f32 0.0, %v1357
        %v1359 = vpop.f32.mrf.mxu0
        %v1360 = vadd.f32 0.0, %v1359
        %1361 = vmatmul.bf16.gmra.mxu0 %v1333
        %v1362 = vpop.f32.mrf.mxu0
        %v1363 = vadd.f32 0.0, %v1362
        %v1364 = vpop.f32.mrf.mxu0
        %v1365 = vadd.f32 0.0, %v1364
        %1366 = vmatmul.bf16.gmra.mxu0 %v1336
        %v1367 = vpop.f32.mrf.mxu0
        %v1368 = vadd.f32 0.0, %v1367
        %v1369 = vpop.f32.mrf.mxu0
        %v1370 = vadd.f32 0.0, %v1369
        %1371 = vdwg.mxu0
        %v1372 = vadd.f32 %v1284, %v1348
        %v1373 = vadd.f32 %v1285, %v1350
        %v1374 = vadd.f32 %v1286, %v1353
        %v1375 = vadd.f32 %v1287, %v1355
        %v1376 = vadd.f32 %v1288, %v1358
        %v1377 = vadd.f32 %v1289, %v1360
        %v1378 = vadd.f32 %v1290, %v1363
        %v1379 = vadd.f32 %v1291, %v1365
        %v1380 = vadd.f32 %v1292, %v1368
        %v1381 = vadd.f32 %v1293, %v1370
        %1382 = vst.msk [vmem:[%s222] sm:$0xff] %vm513, %v1372
        %vm1383 = vcmask 261122
        %1384 = vst.msk [vmem:[%s222 + $0x6] sm:$0xfc] %vm1383, %v1373
        %vm1385 = vcmask 254976
        %1386 = vst.msk [vmem:[%s222 + $0xe] sm:$0x3] %vm1385, %v1374
        %vm1387 = vcmask 261124
        %1388 = vst.msk [vmem:[%s222 + $0xc] sm:$0xf0] %vm1387, %v1374
        %vm1389 = vcmask 257024
        %1390 = vst.msk [vmem:[%s222 + $0x14] sm:$0xf] %vm1389, %v1375
        %vm1391 = vcmask 261126
        %1392 = vst.msk [vmem:[%s222 + $0x12] sm:$0xc0] %vm1391, %v1375
        %vm1393 = vcmask 259072
        %1394 = vst.msk [vmem:[%s222 + $0x1a] sm:$0x3f] %vm1393, %v1376
        %1395 = vst.msk [vmem:[%s222 + $0x20] sm:$0xff] %vm513, %v1377
        %1396 = vst.msk [vmem:[%s222 + $0x26] sm:$0xfc] %vm1383, %v1378
        %1397 = vst.msk [vmem:[%s222 + $0x2e] sm:$0x3] %vm1385, %v1379
        %1398 = vst.msk [vmem:[%s222 + $0x2c] sm:$0xf0] %vm1387, %v1379
        %1399 = vst.msk [vmem:[%s222 + $0x34] sm:$0xf] %vm1389, %v1380
        %1400 = vst.msk [vmem:[%s222 + $0x32] sm:$0xc0] %vm1391, %v1380
        %1401 = vst.msk [vmem:[%s222 + $0x3a] sm:$0x3f] %vm1393, %v1381
        %s1402 = sand.u32 %s121, 1
        %s1403 = scalar_lea.sflag [#allocation4], %s1402
        %s1404 = sand.u32 %s121, 1
        %s1405 = smul.addr %s1404, 64
        %s1406 = scalar_lea.vmem [#allocation5], %s1405
        // Predicated region
        $region41: #{_lambda_.5} parent=35 // pred_check
          %p1407 = pneg %p131
        $region42: #{_lambda_.5} parent=35 // pred_check_branch
          %1409 = sbr.rel (%p1407) target = $region44
        $region43: #{_lambda_.5} parent=35 // pred_region
          %1411 = vsyncadd %s1403, 0
          %s1412 = smul.addr %s19, 8
          %s1413 = smul.addr %s1412, 8
          %s1414 = scalar_lea.hbm %s4, %s1413
          %s1415 = sshll.u32 %s1406, 4
          %s1416 = int_to_ptr.vmem [resolvable:$true] %s1415
          %s1417 = sshll.u32 %s1414, 4
          %s1418 = int_to_ptr.hbm [resolvable:$true] %s1417
          %1423 = dma.vmem_to_hbm [thread:$0]  %s1416, 1024, %s1418, %s1403, 128, 128, 8
        $region44: #{_lambda_.5} parent=35 // pred_fallthru
          _
      $region36: #{_lambda_.5} parent=5 // pred_fallthru
        _
      %p1424 = scmp.le.s32.totalorder 2, %s14
      // Predicated region
      $region45: #{_lambda_.5} parent=5 // pred_check
        %p1425 = pneg %p1424
      $region46: #{_lambda_.5} parent=5 // pred_check_branch
        %1427 = sbr.rel (%p1425) target = $region48
      $region47: #{_lambda_.5} parent=5 // pred_region
        %s1428 = ssub.s32 %s14, 2
        // Predicated region
        $region49: #{_lambda_.5} parent=47 // pred_check
          %p1429 = pneg %p137
        $region50: #{_lambda_.5} parent=47 // pred_check_branch
          %1431 = sbr.rel (%p1429) target = $region52
        $region51: #{_lambda_.5} parent=47 // pred_region
          %s1432 = sand.u32 %s122, 1
          %s1433 = scalar_lea.sflag [#allocation4], %s1432
          %s1434 = sand.u32 %s122, 1
          %s1435 = smul.addr %s1434, 64
          %s1436 = scalar_lea.vmem [#allocation5], %s1435
          %1438 = dma.done %s1433, 1024
        $region52: #{_lambda_.5} parent=47 // pred_fallthru
          _
      $region48: #{_lambda_.5} parent=5 // pred_fallthru
        _
    $region6: #{_lambda_.5} parent=1 // loop_footer
      %s18 = sadd.s32 1, %s14
    $region7: #{_lambda_.5} parent=1 // loop_footer_branch
      %13 = sbr.rel target = $region3
    $region8: #{_lambda_.5} parent=1 // loop_exit
      _
    %1439 = vsyncpa [#allocation3], 1
    %s1440 = scalar_lea.sflag [#allocation3], 1
    %1441 = vsyncpa %s1440, 1
    %1442 = vsyncpa [#allocation4], 1
    %s1443 = scalar_lea.sflag [#allocation4], 1
    %1444 = vsyncpa %s1443, 1

</llo_original>
